<compile_context>
chip_gen: v7x
topology: tpu7x:2x2x1
jax: 0.10.0
libtpu: 0.0.40
codegen_flags: <defaults>
</compile_context>

<pallas_src>
import numpy as np
import jax
import jax.numpy as jnp
from jax.experimental import pallas as pl
from jax.experimental.pallas import tpu as pltpu

# Model dimensions (from MLP_E.__init__)
NUM_FEATURES = 60
N_CODES = 5
EMB_SIZE = 30
HIDDEN = 30
NUM_NEW_FEATURES = 20
H1, H2 = 512, 128
BN_EPS = 1e-5

IN0 = NUM_FEATURES * N_CODES          # 300 (flattened x row)
D_FLAT = NUM_NEW_FEATURES * EMB_SIZE  # 600 (flattened fc output, feature-major)
OUT_PAD = 128                         # lane-dense padded output width (>= HIDDEN)


def _round_up(n, m):
    return ((n + m - 1) // m) * m


def _default_act_dtype(matmul_dtype):
    """bf16 activations on v6e/v7x; f32 on v5e (no native bf16 VPU) / exact mode."""
    if jnp.dtype(matmul_dtype) == jnp.dtype(jnp.float32):
        return jnp.float32
    try:
        kind = jax.devices()[0].device_kind.lower()
    except Exception:  # pragma: no cover - defensive
        kind = ""
    if "v6" in kind or "v7" in kind:
        return jnp.bfloat16
    return jnp.float32


# --------------------------------------------------------------------------
# Kernel: four dense + bias + ReLU layers on one batch tile.
# --------------------------------------------------------------------------
def _make_kernel(act_dtype):
    def mlp_e_kernel(x_ref,
                     wc_ref, bc_ref,
                     w1_ref, b1_ref,
                     w2_ref, b2_ref,
                     w3_ref, b3_ref,
                     out_ref):
        mm_dtype = wc_ref.dtype

        def dense_relu(z, w_ref, b_ref):
            y = jnp.dot(z.astype(mm_dtype), w_ref[...],
                        preferred_element_type=jnp.float32)
            return jnp.maximum(y + b_ref[...], 0.0).astype(act_dtype)

        h = dense_relu(x_ref[...], wc_ref, bc_ref)   # (TB, D1)  fused emb-mix+fc+relu
        h = dense_relu(h, w1_ref, b1_ref)            # (TB, 512) Linear+BN(folded)+ReLU
        h = dense_relu(h, w2_ref, b2_ref)            # (TB, 128)
        # Last layer: keep f32 accumulator precision straight into the output.
        y = jnp.dot(h.astype(mm_dtype), w3_ref[...],
                    preferred_element_type=jnp.float32)
        out_ref[...] = jnp.maximum(y + b3_ref[...], 0.0).astype(out_ref.dtype)

    return mlp_e_kernel


# --------------------------------------------------------------------------
# Parameter initialization (mirrors fresh PyTorch MLP_E parameters).
# --------------------------------------------------------------------------
def init_params(key):
    ks = jax.random.split(key, 5)

    # Embedding(5, 30, padding_idx=-1): row 4 (== -1 mod 5) zero-initialized.
    emb = jax.random.normal(ks[0], (N_CODES, EMB_SIZE), jnp.float32)
    emb = emb.at[N_CODES - 1].set(0.0)

    def linear(k, out_dim, in_dim):
        bound = 1.0 / (in_dim ** 0.5)
        kw, kb = jax.random.split(k)
        w = jax.random.uniform(kw, (out_dim, in_dim), jnp.float32, -bound, bound)
        b = jax.random.uniform(kb, (1, out_dim), jnp.float32, -bound, bound)
        return w, b

    fcw, fcb = linear(ks[1], NUM_NEW_FEATURES, NUM_FEATURES)
    w1, b1 = linear(ks[2], H1, D_FLAT)
    w2, b2 = linear(ks[3], H2, H1)
    w3, b3 = linear(ks[4], HIDDEN, H2)

    def bn(n):  # gamma, beta, running_mean, running_var (fresh BatchNorm1d)
        return (jnp.ones((1, n), jnp.float32), jnp.zeros((1, n), jnp.float32),
                jnp.zeros((1, n), jnp.float32), jnp.ones((1, n), jnp.float32))

    g1, be1, rm1, rv1 = bn(H1)
    g2, be2, rm2, rv2 = bn(H2)
    g3, be3, rm3, rv3 = bn(HIDDEN)

    return (emb, fcw, fcb,
            w1, b1, g1, be1, rm1, rv1,
            w2, b2, g2, be2, rm2, rv2,
            w3, b3, g3, be3, rm3, rv3)


# --------------------------------------------------------------------------
# One-time wrapper-side folding: renorm, emb+fc fusion, BN folding, transposed
# (in, out) weights, lane-dense padding (layer-1 width and last layer).
# --------------------------------------------------------------------------
def fold_and_pack_params(params, *, matmul_dtype=jnp.bfloat16, pad_dflat=True):
    (emb, fcw, fcb,
     w1, b1, g1, be1, rm1, rv1,
     w2, b2, g2, be2, rm2, rv2,
     w3, b3, g3, be3, rm3, rv3) = params

    # Embedding max_norm=1.0 renorm (hoisted out of the kernel).
    norm = jnp.sqrt(jnp.sum(emb * emb, axis=1, keepdims=True))
    emb_n = emb * jnp.where(norm > 1.0, 1.0 / (norm + 1e-7), 1.0)     # (5, 30)

    # Fuse embedding-mix + fc:
    #   flat[b, f*30+e] = relu( sum_{n,c} x[b,n,c]*fcw[f,n]*emb_n[c,e] + fcb[f] )
    # => Wc[n*5+c, f*30+e] = fcw[f,n] * emb_n[c,e];  bc[f*30+e] = fcb[f]
    wc = jnp.einsum('fn,ce->ncfe', fcw, emb_n).reshape(IN0, D_FLAT)   # (300, 600)
    bc = jnp.repeat(fcb.reshape(-1), EMB_SIZE).reshape(1, D_FLAT)     # (1, 600)

    def fold_bn(w, b, g, be, rm, rv):
        scale = g.reshape(-1) * jax.lax.rsqrt(rv.reshape(-1) + BN_EPS)
        w_t = w.T * scale[None, :]                                    # (in, out)
        b_f = (b.reshape(-1) - rm.reshape(-1)) * scale + be.reshape(-1)
        return w_t, b_f.reshape(1, -1)

    w1t, b1f = fold_bn(w1, b1, g1, be1, rm1, rv1)                     # (600, 512)
    w2t, b2f = fold_bn(w2, b2, g2, be2, rm2, rv2)                     # (512, 128)
    w3t, b3f = fold_bn(w3, b3, g3, be3, rm3, rv3)                     # (128, 30)

    # Pad layer-1 width 600 -> 640 (128-aligned lanes; zero cols -> relu -> 0,
    # matching zero rows in w1t, so numerics are unchanged).
    if pad_dflat:
        d1 = _round_up(D_FLAT, 128)                                   # 640
        wc = jnp.zeros((IN0, d1), jnp.float32).at[:, :D_FLAT].set(wc)
        bc = jnp.zeros((1, d1), jnp.float32).at[:, :D_FLAT].set(bc)
        w1t = jnp.zeros((d1, H1), jnp.float32).at[:D_FLAT, :].set(w1t)

    # Pad last layer to 128 output lanes (zero cols -> relu -> 0, sliced later).
    w3p = jnp.zeros((H2, OUT_PAD), jnp.float32).at[:, :HIDDEN].set(w3t)
    b3p = jnp.zeros((1, OUT_PAD), jnp.float32).at[:, :HIDDEN].set(b3f)

    cast = lambda w: w.astype(matmul_dtype)
    return (cast(wc), bc.astype(jnp.float32),
            cast(w1t), b1f.astype(jnp.float32),
            cast(w2t), b2f.astype(jnp.float32),
            cast(w3p), b3p.astype(jnp.float32))


# --------------------------------------------------------------------------
# Pallas wrapper: batch-gridded call, weights as constant VMEM blocks.
# --------------------------------------------------------------------------
def mlp_e_forward(x, folded_params, *, block_b=1024, act_dtype=None,
                  out_dtype=jnp.float32, vmem_limit_bytes=48 * 1024 * 1024):
    wc, bc, w1t, b1f, w2t, b2f, w3p, b3p = folded_params
    mm_dtype = wc.dtype
    if act_dtype is None:
        act_dtype = _default_act_dtype(mm_dtype)

    B = x.shape[0]
    # Free row-major reshape; cast once to the matmul dtype (halves x DMA in bf16).
    x_flat = x.reshape(B, IN0).astype(mm_dtype)

    # Batch tile: as large as block_b (amortizes ~0.35us/step), 8-aligned, and
    # >= 2 grid steps when B > 8 so both v7x TensorCores get work.
    tb = min(block_b, max(B, 8))
    if B > 8:
        tb = min(tb, _round_up((B + 1) // 2, 8))
    tb = _round_up(tb, 8)
    b_pad = _round_up(B, tb)
    if b_pad != B:
        x_flat = jnp.pad(x_flat, ((0, b_pad - B), (0, 0)))

    d1 = wc.shape[1]
    flops = 2 * b_pad * (IN0 * d1 + d1 * H1 + H1 * H2 + H2 * OUT_PAD)
    weight_bytes = sum(int(a.size) * a.dtype.itemsize for a in folded_params)
    bytes_accessed = (b_pad * IN0 * x_flat.dtype.itemsize
                      + b_pad * OUT_PAD * np.dtype(out_dtype).itemsize
                      + weight_bytes)
    cost = pl.CostEstimate(flops=int(flops), transcendentals=0,
                           bytes_accessed=int(bytes_accessed))

    def build(weight_pipeline_mode):
        def const_spec(a):
            if weight_pipeline_mode is None:
                return pl.BlockSpec(a.shape, lambda i: (0, 0))
            return pl.BlockSpec(a.shape, lambda i: (0, 0),
                                pipeline_mode=weight_pipeline_mode)

        return pl.pallas_call(
            _make_kernel(act_dtype),
            out_shape=jax.ShapeDtypeStruct((b_pad, OUT_PAD), out_dtype),
            grid_spec=pltpu.PrefetchScalarGridSpec(
                num_scalar_prefetch=0,
                grid=(b_pad // tb,),
                in_specs=[pl.BlockSpec((tb, IN0), lambda i: (i, 0)),
                          const_spec(wc), const_spec(bc),
                          const_spec(w1t), const_spec(b1f),
                          const_spec(w2t), const_spec(b2f),
                          const_spec(w3p), const_spec(b3p)],
                out_specs=pl.BlockSpec((tb, OUT_PAD), lambda i: (i, 0)),
            ),
            compiler_params=pltpu.CompilerParams(
                dimension_semantics=("parallel",),
                vmem_limit_bytes=vmem_limit_bytes,
            ),
            cost_estimate=cost,
        )

    args = (x_flat, wc, bc, w1t, b1f, w2t, b2f, w3p, b3p)
    try:
        # Weights/biases have constant index_maps -> single-buffer them to
        # free the redundant second VMEM copy.
        out = build(pl.Buffered(1))(*args)
    except Exception:
        # Fallback if this Pallas build rejects single-buffered operands.
        out = build(None)(*args)

    return out[:B, :HIDDEN]


# --------------------------------------------------------------------------
# Pure-JAX reference following the exact PyTorch op order (for verification).
# --------------------------------------------------------------------------
def mlp_e_reference(x, params):
    (emb, fcw, fcb,
     w1, b1, g1, be1, rm1, rv1,
     w2, b2, g2, be2, rm2, rv2,
     w3, b3, g3, be3, rm3, rv3) = params

    norm = jnp.sqrt(jnp.sum(emb * emb, axis=1, keepdims=True))
    emb_n = emb * jnp.where(norm > 1.0, 1.0 / (norm + 1e-7), 1.0)

    t1 = jnp.einsum('bnc,ce->bne', x, emb_n)                         # (B, 60, 30)
    h = jnp.einsum('bne,fn->bef', t1, fcw) + fcb.reshape(-1)         # (B, 30, 20)
    h = jnp.maximum(h, 0.0)
    flat = jnp.transpose(h, (0, 2, 1)).reshape(x.shape[0], -1)       # (B, 600)

    def lin_bn_relu(z, w, b, g, be, rm, rv):
        y = z @ w.T + b.reshape(-1)
        y = ((y - rm.reshape(-1)) * jax.lax.rsqrt(rv.reshape(-1) + BN_EPS)
             * g.reshape(-1) + be.reshape(-1))
        return jnp.maximum(y, 0.0)

    z = lin_bn_relu(flat, w1, b1, g1, be1, rm1, rv1)
    z = lin_bn_relu(z, w2, b2, g2, be2, rm2, rv2)
    z = lin_bn_relu(z, w3, b3, g3, be3, rm3, rv3)
    return z


if __name__ == "__main__":
    key = jax.random.PRNGKey(0)
    k_x, k_p = jax.random.split(key)

    B = 16
    # Input mirrors the PyTorch usage: (batch, num_features=60, n_codes=5).
    x = jax.random.uniform(k_x, (B, NUM_FEATURES, N_CODES), jnp.float32)

    raw_params = init_params(k_p)
    ref = mlp_e_reference(x, raw_params)

    # 1) Exact f32 mode: validates semantics at tight tolerance.
    folded_f32 = fold_and_pack_params(raw_params, matmul_dtype=jnp.float32)
    out_f32 = jax.block_until_ready(mlp_e_forward(x, folded_f32))
    assert out_f32.shape == (B, HIDDEN)
    assert bool(jnp.allclose(out_f32, ref, rtol=1e-3, atol=1e-3)), \
        float(jnp.max(jnp.abs(out_f32 - ref)))

    # 2) Default fast mode: bf16 MXU operands (+ bf16 activations on v6e/v7x),
    #    f32 accumulation.  Looser tolerance per bf16 operand rounding.
    folded = fold_and_pack_params(raw_params)
    out = jax.block_until_ready(mlp_e_forward(x, folded))
    out = out.astype(jnp.float32)
    assert out.shape == (B, HIDDEN)
    assert bool(jnp.all(jnp.isfinite(out)))
    assert bool(jnp.allclose(out, ref, rtol=3e-2, atol=3e-2)), \
        float(jnp.max(jnp.abs(out - ref)))

    print("KERNEL_OK")
</pallas_src>

<mosaic_0001>
module attributes {stable_mosaic.version = 11 : i64} {
  func.func @mlp_e_kernel(%arg0: i32, %arg1: memref<8x300xf32, #tpu.memory_space<vmem>>, %arg2: memref<300x640xf32, #tpu.memory_space<vmem>>, %arg3: memref<1x640xf32, #tpu.memory_space<vmem>>, %arg4: memref<640x512xf32, #tpu.memory_space<vmem>>, %arg5: memref<1x512xf32, #tpu.memory_space<vmem>>, %arg6: memref<512x128xf32, #tpu.memory_space<vmem>>, %arg7: memref<1x128xf32, #tpu.memory_space<vmem>>, %arg8: memref<128x128xf32, #tpu.memory_space<vmem>>, %arg9: memref<1x128xf32, #tpu.memory_space<vmem>>, %arg10: memref<8x128xf32, #tpu.memory_space<vmem>>) attributes {dimension_semantics = [#tpu.dimension_semantics<parallel>], iteration_bounds = array<i64: 2>, scalar_prefetch = 0 : i64, scratch_operands = 0 : i64, tpu.core_type = #tpu.core_type<tc>, window_params = [{transform_indices = @transform_0, window_bounds = array<i64: 8, 300>}, {pipeline_mode = #tpu.pipeline_mode<synchronous>, transform_indices = @transform_1, window_bounds = array<i64: 300, 640>}, {pipeline_mode = #tpu.pipeline_mode<synchronous>, transform_indices = @transform_2, window_bounds = array<i64: 1, 640>}, {pipeline_mode = #tpu.pipeline_mode<synchronous>, transform_indices = @transform_3, window_bounds = array<i64: 640, 512>}, {pipeline_mode = #tpu.pipeline_mode<synchronous>, transform_indices = @transform_4, window_bounds = array<i64: 1, 512>}, {pipeline_mode = #tpu.pipeline_mode<synchronous>, transform_indices = @transform_5, window_bounds = array<i64: 512, 128>}, {pipeline_mode = #tpu.pipeline_mode<synchronous>, transform_indices = @transform_6, window_bounds = array<i64: 1, 128>}, {pipeline_mode = #tpu.pipeline_mode<synchronous>, transform_indices = @transform_7, window_bounds = array<i64: 128, 128>}, {pipeline_mode = #tpu.pipeline_mode<synchronous>, transform_indices = @transform_8, window_bounds = array<i64: 1, 128>}, {transform_indices = @transform_9, window_bounds = array<i64: 8, 128>}]} {
    %c0 = arith.constant 0 : index
    %c0_0 = arith.constant 0 : index
    %0 = vector.load %arg1[%c0, %c0_0] : memref<8x300xf32, #tpu.memory_space<vmem>>, vector<8x300xf32>
    %c0_1 = arith.constant 0 : index
    %c0_2 = arith.constant 0 : index
    %1 = vector.load %arg2[%c0_1, %c0_2] : memref<300x640xf32, #tpu.memory_space<vmem>>, vector<300x640xf32>
    %cst = arith.constant dense<0.000000e+00> : vector<8x640xf32>
    %2 = tpu.matmul %0, %1, %cst {dimension_numbers = #tpu.dot_dimension_numbers<[1], [0], [0], [1], [0, 0, 1, 1], [], []>} : vector<8x300xf32>, vector<300x640xf32>, vector<8x640xf32> -> vector<8x640xf32>
    %c0_3 = arith.constant 0 : index
    %c0_4 = arith.constant 0 : index
    %3 = vector.load %arg3[%c0_3, %c0_4] : memref<1x640xf32, #tpu.memory_space<vmem>>, vector<1x640xf32>
    %4 = vector.broadcast %3 : vector<1x640xf32> to vector<8x640xf32>
    %5 = arith.addf %2, %4 : vector<8x640xf32>
    %cst_5 = arith.constant 0.000000e+00 : f32
    %6 = vector.broadcast %cst_5 : f32 to vector<8x640xf32>
    %7 = arith.maximumf %5, %6 : vector<8x640xf32>
    %c0_6 = arith.constant 0 : index
    %c0_7 = arith.constant 0 : index
    %8 = vector.load %arg4[%c0_6, %c0_7] : memref<640x512xf32, #tpu.memory_space<vmem>>, vector<640x512xf32>
    %cst_8 = arith.constant dense<0.000000e+00> : vector<8x512xf32>
    %9 = tpu.matmul %7, %8, %cst_8 {dimension_numbers = #tpu.dot_dimension_numbers<[1], [0], [0], [1], [0, 0, 1, 1], [], []>} : vector<8x640xf32>, vector<640x512xf32>, vector<8x512xf32> -> vector<8x512xf32>
    %c0_9 = arith.constant 0 : index
    %c0_10 = arith.constant 0 : index
    %10 = vector.load %arg5[%c0_9, %c0_10] : memref<1x512xf32, #tpu.memory_space<vmem>>, vector<1x512xf32>
    %11 = vector.broadcast %10 : vector<1x512xf32> to vector<8x512xf32>
    %12 = arith.addf %9, %11 : vector<8x512xf32>
    %cst_11 = arith.constant 0.000000e+00 : f32
    %13 = vector.broadcast %cst_11 : f32 to vector<8x512xf32>
    %14 = arith.maximumf %12, %13 : vector<8x512xf32>
    %c0_12 = arith.constant 0 : index
    %c0_13 = arith.constant 0 : index
    %15 = vector.load %arg6[%c0_12, %c0_13] : memref<512x128xf32, #tpu.memory_space<vmem>>, vector<512x128xf32>
    %cst_14 = arith.constant dense<0.000000e+00> : vector<8x128xf32>
    %16 = tpu.matmul %14, %15, %cst_14 {dimension_numbers = #tpu.dot_dimension_numbers<[1], [0], [0], [1], [0, 0, 1, 1], [], []>} : vector<8x512xf32>, vector<512x128xf32>, vector<8x128xf32> -> vector<8x128xf32>
    %c0_15 = arith.constant 0 : index
    %c0_16 = arith.constant 0 : index
    %17 = vector.load %arg7[%c0_15, %c0_16] : memref<1x128xf32, #tpu.memory_space<vmem>>, vector<1x128xf32>
    %18 = vector.broadcast %17 : vector<1x128xf32> to vector<8x128xf32>
    %19 = arith.addf %16, %18 : vector<8x128xf32>
    %cst_17 = arith.constant 0.000000e+00 : f32
    %20 = vector.broadcast %cst_17 : f32 to vector<8x128xf32>
    %21 = arith.maximumf %19, %20 : vector<8x128xf32>
    %c0_18 = arith.constant 0 : index
    %c0_19 = arith.constant 0 : index
    %22 = vector.load %arg8[%c0_18, %c0_19] : memref<128x128xf32, #tpu.memory_space<vmem>>, vector<128x128xf32>
    %cst_20 = arith.constant dense<0.000000e+00> : vector<8x128xf32>
    %23 = tpu.matmul %21, %22, %cst_20 {dimension_numbers = #tpu.dot_dimension_numbers<[1], [0], [0], [1], [0, 0, 1, 1], [], []>} : vector<8x128xf32>, vector<128x128xf32>, vector<8x128xf32> -> vector<8x128xf32>
    %c0_21 = arith.constant 0 : index
    %c0_22 = arith.constant 0 : index
    %24 = vector.load %arg9[%c0_21, %c0_22] : memref<1x128xf32, #tpu.memory_space<vmem>>, vector<1x128xf32>
    %25 = vector.broadcast %24 : vector<1x128xf32> to vector<8x128xf32>
    %26 = arith.addf %23, %25 : vector<8x128xf32>
    %cst_23 = arith.constant 0.000000e+00 : f32
    %27 = vector.broadcast %cst_23 : f32 to vector<8x128xf32>
    %28 = arith.maximumf %26, %27 : vector<8x128xf32>
    %c0_24 = arith.constant 0 : index
    %c0_25 = arith.constant 0 : index
    %29 = vector.load %arg10[%c0_24, %c0_25] : memref<8x128xf32, #tpu.memory_space<vmem>>, vector<8x128xf32>
    tpu.vector_store %arg10[%c0_24, %c0_25], %28 {strides = array<i32>} : memref<8x128xf32, #tpu.memory_space<vmem>>, vector<8x128xf32>,
    return
  }
  func.func @transform_0(%arg0: i32) -> (i32, i32) {
    %c0_i32 = arith.constant 0 : i32
    %c0_i32_0 = arith.constant 0 : i32
    return %arg0, %c0_i32 : i32, i32
  }
  func.func @transform_1(%arg0: i32) -> (i32, i32) {
    %c0_i32 = arith.constant 0 : i32
    %c0_i32_0 = arith.constant 0 : i32
    %c0_i32_1 = arith.constant 0 : i32
    return %c0_i32, %c0_i32_0 : i32, i32
  }
  func.func @transform_2(%arg0: i32) -> (i32, i32) {
    %c0_i32 = arith.constant 0 : i32
    %c0_i32_0 = arith.constant 0 : i32
    %c0_i32_1 = arith.constant 0 : i32
    return %c0_i32, %c0_i32_0 : i32, i32
  }
  func.func @transform_3(%arg0: i32) -> (i32, i32) {
    %c0_i32 = arith.constant 0 : i32
    %c0_i32_0 = arith.constant 0 : i32
    %c0_i32_1 = arith.constant 0 : i32
    return %c0_i32, %c0_i32_0 : i32, i32
  }
  func.func @transform_4(%arg0: i32) -> (i32, i32) {
    %c0_i32 = arith.constant 0 : i32
    %c0_i32_0 = arith.constant 0 : i32
    %c0_i32_1 = arith.constant 0 : i32
    return %c0_i32, %c0_i32_0 : i32, i32
  }
  func.func @transform_5(%arg0: i32) -> (i32, i32) {
    %c0_i32 = arith.constant 0 : i32
    %c0_i32_0 = arith.constant 0 : i32
    %c0_i32_1 = arith.constant 0 : i32
    return %c0_i32, %c0_i32_0 : i32, i32
  }
  func.func @transform_6(%arg0: i32) -> (i32, i32) {
    %c0_i32 = arith.constant 0 : i32
    %c0_i32_0 = arith.constant 0 : i32
    %c0_i32_1 = arith.constant 0 : i32
    return %c0_i32, %c0_i32_0 : i32, i32
  }
  func.func @transform_7(%arg0: i32) -> (i32, i32) {
    %c0_i32 = arith.constant 0 : i32
    %c0_i32_0 = arith.constant 0 : i32
    %c0_i32_1 = arith.constant 0 : i32
    return %c0_i32, %c0_i32_0 : i32, i32
  }
  func.func @transform_8(%arg0: i32) -> (i32, i32) {
    %c0_i32 = arith.constant 0 : i32
    %c0_i32_0 = arith.constant 0 : i32
    %c0_i32_1 = arith.constant 0 : i32
    return %c0_i32, %c0_i32_0 : i32, i32
  }
  func.func @transform_9(%arg0: i32) -> (i32, i32) {
    %c0_i32 = arith.constant 0 : i32
    %c0_i32_0 = arith.constant 0 : i32
    return %arg0, %c0_i32 : i32, i32
  }
}

module attributes {stable_mosaic.version = 11 : i64} {
  func.func @mlp_e_kernel(%arg0: i32, %arg1: memref<8x300xf32, #tpu.memory_space<vmem>>, %arg2: memref<300x640xf32, #tpu.memory_space<vmem>>, %arg3: memref<1x640xf32, #tpu.memory_space<vmem>>, %arg4: memref<640x512xf32, #tpu.memory_space<vmem>>, %arg5: memref<1x512xf32, #tpu.memory_space<vmem>>, %arg6: memref<512x128xf32, #tpu.memory_space<vmem>>, %arg7: memref<1x128xf32, #tpu.memory_space<vmem>>, %arg8: memref<128x128xf32, #tpu.memory_space<vmem>>, %arg9: memref<1x128xf32, #tpu.memory_space<vmem>>, %arg10: memref<8x128xf32, #tpu.memory_space<vmem>>) attributes {dimension_semantics = [#tpu.dimension_semantics<parallel>], iteration_bounds = array<i64: 2>, scalar_prefetch = 0 : i64, scratch_operands = 0 : i64, tpu.core_type = #tpu.core_type<tc>, window_params = [{transform_indices = @transform_0, window_bounds = array<i64: 8, 300>}, {pipeline_mode = #tpu.pipeline_mode<synchronous>, transform_indices = @transform_1, window_bounds = array<i64: 300, 640>}, {pipeline_mode = #tpu.pipeline_mode<synchronous>, transform_indices = @transform_2, window_bounds = array<i64: 1, 640>}, {pipeline_mode = #tpu.pipeline_mode<synchronous>, transform_indices = @transform_3, window_bounds = array<i64: 640, 512>}, {pipeline_mode = #tpu.pipeline_mode<synchronous>, transform_indices = @transform_4, window_bounds = array<i64: 1, 512>}, {pipeline_mode = #tpu.pipeline_mode<synchronous>, transform_indices = @transform_5, window_bounds = array<i64: 512, 128>}, {pipeline_mode = #tpu.pipeline_mode<synchronous>, transform_indices = @transform_6, window_bounds = array<i64: 1, 128>}, {pipeline_mode = #tpu.pipeline_mode<synchronous>, transform_indices = @transform_7, window_bounds = array<i64: 128, 128>}, {pipeline_mode = #tpu.pipeline_mode<synchronous>, transform_indices = @transform_8, window_bounds = array<i64: 1, 128>}, {transform_indices = @transform_9, window_bounds = array<i64: 8, 128>}]} {
    %c0 = arith.constant 0 : index
    %c0_0 = arith.constant 0 : index
    %0 = vector.load %arg1[%c0, %c0_0] : memref<8x300xf32, #tpu.memory_space<vmem>>, vector<8x300xf32>
    %c0_1 = arith.constant 0 : index
    %c0_2 = arith.constant 0 : index
    %1 = vector.load %arg2[%c0_1, %c0_2] : memref<300x640xf32, #tpu.memory_space<vmem>>, vector<300x640xf32>
    %cst = arith.constant dense<0.000000e+00> : vector<8x640xf32>
    %2 = tpu.matmul %0, %1, %cst {dimension_numbers = #tpu.dot_dimension_numbers<[1], [0], [0], [1], [0, 0, 1, 1], [], []>} : vector<8x300xf32>, vector<300x640xf32>, vector<8x640xf32> -> vector<8x640xf32>
    %c0_3 = arith.constant 0 : index
    %c0_4 = arith.constant 0 : index
    %3 = vector.load %arg3[%c0_3, %c0_4] : memref<1x640xf32, #tpu.memory_space<vmem>>, vector<1x640xf32>
    %4 = vector.broadcast %3 : vector<1x640xf32> to vector<8x640xf32>
    %5 = arith.addf %2, %4 : vector<8x640xf32>
    %cst_5 = arith.constant 0.000000e+00 : f32
    %6 = vector.broadcast %cst_5 : f32 to vector<8x640xf32>
    %7 = arith.maximumf %5, %6 : vector<8x640xf32>
    %c0_6 = arith.constant 0 : index
    %c0_7 = arith.constant 0 : index
    %8 = vector.load %arg4[%c0_6, %c0_7] : memref<640x512xf32, #tpu.memory_space<vmem>>, vector<640x512xf32>
    %cst_8 = arith.constant dense<0.000000e+00> : vector<8x512xf32>
    %9 = tpu.matmul %7, %8, %cst_8 {dimension_numbers = #tpu.dot_dimension_numbers<[1], [0], [0], [1], [0, 0, 1, 1], [], []>} : vector<8x640xf32>, vector<640x512xf32>, vector<8x512xf32> -> vector<8x512xf32>
    %c0_9 = arith.constant 0 : index
    %c0_10 = arith.constant 0 : index
    %10 = vector.load %arg5[%c0_9, %c0_10] : memref<1x512xf32, #tpu.memory_space<vmem>>, vector<1x512xf32>
    %11 = vector.broadcast %10 : vector<1x512xf32> to vector<8x512xf32>
    %12 = arith.addf %9, %11 : vector<8x512xf32>
    %cst_11 = arith.constant 0.000000e+00 : f32
    %13 = vector.broadcast %cst_11 : f32 to vector<8x512xf32>
    %14 = arith.maximumf %12, %13 : vector<8x512xf32>
    %c0_12 = arith.constant 0 : index
    %c0_13 = arith.constant 0 : index
    %15 = vector.load %arg6[%c0_12, %c0_13] : memref<512x128xf32, #tpu.memory_space<vmem>>, vector<512x128xf32>
    %cst_14 = arith.constant dense<0.000000e+00> : vector<8x128xf32>
    %16 = tpu.matmul %14, %15, %cst_14 {dimension_numbers = #tpu.dot_dimension_numbers<[1], [0], [0], [1], [0, 0, 1, 1], [], []>} : vector<8x512xf32>, vector<512x128xf32>, vector<8x128xf32> -> vector<8x128xf32>
    %c0_15 = arith.constant 0 : index
    %c0_16 = arith.constant 0 : index
    %17 = vector.load %arg7[%c0_15, %c0_16] : memref<1x128xf32, #tpu.memory_space<vmem>>, vector<1x128xf32>
    %18 = vector.broadcast %17 : vector<1x128xf32> to vector<8x128xf32>
    %19 = arith.addf %16, %18 : vector<8x128xf32>
    %cst_17 = arith.constant 0.000000e+00 : f32
    %20 = vector.broadcast %cst_17 : f32 to vector<8x128xf32>
    %21 = arith.maximumf %19, %20 : vector<8x128xf32>
    %c0_18 = arith.constant 0 : index
    %c0_19 = arith.constant 0 : index
    %22 = vector.load %arg8[%c0_18, %c0_19] : memref<128x128xf32, #tpu.memory_space<vmem>>, vector<128x128xf32>
    %cst_20 = arith.constant dense<0.000000e+00> : vector<8x128xf32>
    %23 = tpu.matmul %21, %22, %cst_20 {dimension_numbers = #tpu.dot_dimension_numbers<[1], [0], [0], [1], [0, 0, 1, 1], [], []>} : vector<8x128xf32>, vector<128x128xf32>, vector<8x128xf32> -> vector<8x128xf32>
    %c0_21 = arith.constant 0 : index
    %c0_22 = arith.constant 0 : index
    %24 = vector.load %arg9[%c0_21, %c0_22] : memref<1x128xf32, #tpu.memory_space<vmem>>, vector<1x128xf32>
    %25 = vector.broadcast %24 : vector<1x128xf32> to vector<8x128xf32>
    %26 = arith.addf %23, %25 : vector<8x128xf32>
    %cst_23 = arith.constant 0.000000e+00 : f32
    %27 = vector.broadcast %cst_23 : f32 to vector<8x128xf32>
    %28 = arith.maximumf %26, %27 : vector<8x128xf32>
    %c0_24 = arith.constant 0 : index
    %c0_25 = arith.constant 0 : index
    %29 = vector.load %arg10[%c0_24, %c0_25] : memref<8x128xf32, #tpu.memory_space<vmem>>, vector<8x128xf32>
    tpu.vector_store %arg10[%c0_24, %c0_25], %28 {strides = array<i32>} : memref<8x128xf32, #tpu.memory_space<vmem>>, vector<8x128xf32>,
    return
  }
  func.func @transform_0(%arg0: i32) -> (i32, i32) {
    %c0_i32 = arith.constant 0 : i32
    %c0_i32_0 = arith.constant 0 : i32
    return %arg0, %c0_i32 : i32, i32
  }
  func.func @transform_1(%arg0: i32) -> (i32, i32) {
    %c0_i32 = arith.constant 0 : i32
    %c0_i32_0 = arith.constant 0 : i32
    %c0_i32_1 = arith.constant 0 : i32
    return %c0_i32, %c0_i32_0 : i32, i32
  }
  func.func @transform_2(%arg0: i32) -> (i32, i32) {
    %c0_i32 = arith.constant 0 : i32
    %c0_i32_0 = arith.constant 0 : i32
    %c0_i32_1 = arith.constant 0 : i32
    return %c0_i32, %c0_i32_0 : i32, i32
  }
  func.func @transform_3(%arg0: i32) -> (i32, i32) {
    %c0_i32 = arith.constant 0 : i32
    %c0_i32_0 = arith.constant 0 : i32
    %c0_i32_1 = arith.constant 0 : i32
    return %c0_i32, %c0_i32_0 : i32, i32
  }
  func.func @transform_4(%arg0: i32) -> (i32, i32) {
    %c0_i32 = arith.constant 0 : i32
    %c0_i32_0 = arith.constant 0 : i32
    %c0_i32_1 = arith.constant 0 : i32
    return %c0_i32, %c0_i32_0 : i32, i32
  }
  func.func @transform_5(%arg0: i32) -> (i32, i32) {
    %c0_i32 = arith.constant 0 : i32
    %c0_i32_0 = arith.constant 0 : i32
    %c0_i32_1 = arith.constant 0 : i32
    return %c0_i32, %c0_i32_0 : i32, i32
  }
  func.func @transform_6(%arg0: i32) -> (i32, i32) {
    %c0_i32 = arith.constant 0 : i32
    %c0_i32_0 = arith.constant 0 : i32
    %c0_i32_1 = arith.constant 0 : i32
    return %c0_i32, %c0_i32_0 : i32, i32
  }
  func.func @transform_7(%arg0: i32) -> (i32, i32) {
    %c0_i32 = arith.constant 0 : i32
    %c0_i32_0 = arith.constant 0 : i32
    %c0_i32_1 = arith.constant 0 : i32
    return %c0_i32, %c0_i32_0 : i32, i32
  }
  func.func @transform_8(%arg0: i32) -> (i32, i32) {
    %c0_i32 = arith.constant 0 : i32
    %c0_i32_0 = arith.constant 0 : i32
    %c0_i32_1 = arith.constant 0 : i32
    return %c0_i32, %c0_i32_0 : i32, i32
  }
  func.func @transform_9(%arg0: i32) -> (i32, i32) {
    %c0_i32 = arith.constant 0 : i32
    %c0_i32_0 = arith.constant 0 : i32
    return %arg0, %c0_i32 : i32, i32
  }
}

</mosaic_0001>

<llo_original>
// kernel: tpu_custom_call.1
$region0: #{tpu_custom_call.1}
  #allocation0 [shape = 'u32[]', space=smem, size = 0x4, offset = 0x4, fixed_abs, tag = 'smem constant byte address 0x4 - core index']
  #allocation1 [shape = 'u32[144,128]{1,0:T(1,128)}', space=vmem, size = 0x12000, scoped, tag = 'internal scratch']
  %s0 = inlined_call_operand.hbm [shape: f32[16,300], index: 0, kind: input, shape index: {}]
  %s1 = inlined_call_operand.hbm [shape: f32[300,640], index: 1, kind: input, shape index: {}]
  %s2 = inlined_call_operand.hbm [shape: f32[1,640], index: 2, kind: input, shape index: {}]
  %s3 = inlined_call_operand.hbm [shape: f32[640,512], index: 3, kind: input, shape index: {}]
  %s4 = inlined_call_operand.hbm [shape: f32[1,512], index: 4, kind: input, shape index: {}]
  %s5 = inlined_call_operand.hbm [shape: f32[512,128], index: 5, kind: input, shape index: {}]
  %s6 = inlined_call_operand.hbm [shape: f32[1,128], index: 6, kind: input, shape index: {}]
  %s7 = inlined_call_operand.hbm [shape: f32[128,128], index: 7, kind: input, shape index: {}]
  %s8 = inlined_call_operand.hbm [shape: f32[1,128], index: 8, kind: input, shape index: {}]
  %s9 = inlined_call_operand.hbm [shape: f32[16,128], index: 9, kind: output, shape index: {}]
  %s10 = sld [smem:[#allocation0]]
  $region105: #{tpu_custom_call.1} parent=0
    _
  %s12 = ssub.s32 1, %s10
  %s13 = scalar_select 0, %s12, %s10
  $region1: #{tpu_custom_call.1} parent=0
    #allocation2 [shape = 'u8[24576]{0}', space=vmem, size = 0x6000, scoped, tag = 'input window, operand 0']
    #allocation3 [shape = 's32[2]{0}', space=sflag, size = 0x8, scoped, tag = 'scoped memory for tpu_custom_call.1']
    #allocation4 [shape = 's32[2]{0}', space=sflag, size = 0x8, scoped, tag = 'scoped memory for tpu_custom_call.1']
    #allocation5 [shape = 'u8[778240]{0}', space=vmem, size = 0xbe000, scoped, tag = 'input window, operand 1, single buffered']
    #allocation6 [shape = 's32[1]{0}', space=sflag, size = 0x4, scoped, tag = 'scoped memory for tpu_custom_call.1']
    #allocation7 [shape = 'u8[2560]{0}', space=vmem, size = 0xc00, scoped, tag = 'input window, operand 2, single buffered']
    #allocation8 [shape = 'u8[1310720]{0}', space=vmem, size = 0x140000, scoped, tag = 'input window, operand 3, single buffered']
    #allocation9 [shape = 's32[1]{0}', space=sflag, size = 0x4, scoped, tag = 'scoped memory for tpu_custom_call.1']
    #allocation10 [shape = 'u8[2048]{0}', space=vmem, size = 0x800, scoped, tag = 'input window, operand 4, single buffered']
    #allocation11 [shape = 'u8[262144]{0}', space=vmem, size = 0x40000, scoped, tag = 'input window, operand 5, single buffered']
    #allocation12 [shape = 's32[1]{0}', space=sflag, size = 0x4, scoped, tag = 'scoped memory for tpu_custom_call.1']
    #allocation13 [shape = 'u8[512]{0}', space=vmem, size = 0x400, scoped, tag = 'input window, operand 6, single buffered']
    #allocation14 [shape = 'u8[65536]{0}', space=vmem, size = 0x10000, scoped, tag = 'input window, operand 7, single buffered']
    #allocation15 [shape = 's32[1]{0}', space=sflag, size = 0x4, scoped, tag = 'scoped memory for tpu_custom_call.1']
    #allocation16 [shape = 'u8[512]{0}', space=vmem, size = 0x400, scoped, tag = 'input window, operand 8, single buffered']
    #allocation17 [shape = 'u8[8192]{0}', space=vmem, size = 0x2000, scoped, tag = 'output window, operand 0']
    %14 = vsyncpa [#allocation3], 0
    %s15 = scalar_lea.sflag [#allocation3], 1
    %16 = vsyncpa %s15, 0
    %17 = vsyncpa [#allocation6], 0
    %18 = vsyncpa [#allocation9], 0
    %19 = vsyncpa [#allocation12], 0
    %20 = vsyncpa [#allocation15], 0
    %21 = vsyncpa [#allocation4], 0
    %s22 = scalar_lea.sflag [#allocation4], 1
    %23 = vsyncpa %s22, 0
    loop: start=0, step=1, limit=4
    $region2: #{tpu_custom_call.1} parent=1 // loop_pre_header
      _
    $region3: #{tpu_custom_call.1} parent=1 // loop_header
      %s25 = sphi 0, %s29
      %p26 = scmp.ge.s32.totalorder %s25, 4
      %s35 = sphi 0, %s37
      %s38 = sphi 0, %s35
      %s39 = sphi 0, %s38
      %s55 = sphi 0, %s39
      %s59 = sphi 0, %s59
      %s61 = sphi 0, %s59
      %s62 = sphi 0, %s61
      %s76 = sphi 0, %s62
      %s80 = sphi 0, %s80
      %s82 = sphi 0, %s80
      %s83 = sphi 0, %s82
      %s97 = sphi 0, %s83
      %s101 = sphi 0, %s101
      %s103 = sphi 0, %s101
      %s104 = sphi 0, %s103
      %s118 = sphi 0, %s104
      %s122 = sphi 0, %s122
      %s124 = sphi 0, %s122
      %s125 = sphi 0, %s124
      %s139 = sphi 0, %s125
      %s143 = sphi 0, %s143
      %s145 = sphi 0, %s143
      %s146 = sphi 0, %s145
      %s160 = sphi 0, %s146
      %s164 = sphi 0, %s164
      %s166 = sphi 0, %s164
      %s167 = sphi 0, %s166
      %s181 = sphi 0, %s167
      %s185 = sphi 0, %s185
      %s187 = sphi 0, %s185
      %s188 = sphi 0, %s187
      %s202 = sphi 0, %s188
      %s206 = sphi 0, %s206
      %s208 = sphi 0, %s206
      %s209 = sphi 0, %s208
      %s223 = sphi 0, %s209
      %s229 = sphi 0, %s231
      %s232 = sphi 0, %s229
      %s233 = sphi 0, %s232
      %s249 = sphi 0, %s233
    $region4: #{tpu_custom_call.1} parent=1 // loop_header_branch
      %28 = sbr.rel (%p26) target = $region8
    $region5: #{tpu_custom_call.1} parent=1 // loop_body
      %s30 = ssub.s32 %s25, 1
      %s31 = ssub.s32 %s25, 2
      %s32 = sadd.s32 %s25, 1
      %s33 = ssub.s32 %s25, %s32
      %p34 = scmp.eq.s32.totalorder %s33, 0
      %s36 = sadd.s32 %s35, 1
      %s37 = scalar_select %p34, %s35, %s36
      %p40 = pneg %p34
      %p41 = scmp.eq.s32.totalorder %s25, 1
      %p42 = por %p40, %p41
      %p43 = scmp.ne.s32.totalorder %s35, %s38
      %p44 = scmp.eq.s32.totalorder %s25, 0
      %p45 = por %p43, %p44
      %p46 = scmp.ne.s32.totalorder %s35, %s38
      %p47 = scmp.eq.s32.totalorder %s30, 1
      %p48 = por %p46, %p47
      %p49 = scmp.ne.s32.totalorder %s38, %s39
      %p50 = scmp.eq.s32.totalorder %s30, 0
      %p51 = por %p49, %p50
      %p52 = scmp.ne.s32.totalorder %s38, %s39
      %p53 = scmp.eq.s32.totalorder %s31, 1
      %p54 = por %p52, %p53
      %p56 = scmp.ne.s32.totalorder %s39, %s55
      %p57 = scmp.eq.s32.totalorder %s31, 0
      %p58 = por %p56, %p57
      %s60 = sadd.s32 %s59, 1
      %p63 = scmp.eq.s32.totalorder %s25, 1
      %p64 = scmp.ne.s32.totalorder %s59, %s61
      %p65 = scmp.eq.s32.totalorder %s25, 0
      %p66 = por %p64, %p65
      %p67 = scmp.ne.s32.totalorder %s59, %s61
      %p68 = scmp.eq.s32.totalorder %s30, 1
      %p69 = por %p67, %p68
      %p70 = scmp.ne.s32.totalorder %s61, %s62
      %p71 = scmp.eq.s32.totalorder %s30, 0
      %p72 = por %p70, %p71
      %p73 = scmp.ne.s32.totalorder %s61, %s62
      %p74 = scmp.eq.s32.totalorder %s31, 1
      %p75 = por %p73, %p74
      %p77 = scmp.ne.s32.totalorder %s62, %s76
      %p78 = scmp.eq.s32.totalorder %s31, 0
      %p79 = por %p77, %p78
      %s81 = sadd.s32 %s80, 1
      %p84 = scmp.eq.s32.totalorder %s25, 1
      %p85 = scmp.ne.s32.totalorder %s80, %s82
      %p86 = scmp.eq.s32.totalorder %s25, 0
      %p87 = por %p85, %p86
      %p88 = scmp.ne.s32.totalorder %s80, %s82
      %p89 = scmp.eq.s32.totalorder %s30, 1
      %p90 = por %p88, %p89
      %p91 = scmp.ne.s32.totalorder %s82, %s83
      %p92 = scmp.eq.s32.totalorder %s30, 0
      %p93 = por %p91, %p92
      %p94 = scmp.ne.s32.totalorder %s82, %s83
      %p95 = scmp.eq.s32.totalorder %s31, 1
      %p96 = por %p94, %p95
      %p98 = scmp.ne.s32.totalorder %s83, %s97
      %p99 = scmp.eq.s32.totalorder %s31, 0
      %p100 = por %p98, %p99
      %s102 = sadd.s32 %s101, 1
      %p105 = scmp.eq.s32.totalorder %s25, 1
      %p106 = scmp.ne.s32.totalorder %s101, %s103
      %p107 = scmp.eq.s32.totalorder %s25, 0
      %p108 = por %p106, %p107
      %p109 = scmp.ne.s32.totalorder %s101, %s103
      %p110 = scmp.eq.s32.totalorder %s30, 1
      %p111 = por %p109, %p110
      %p112 = scmp.ne.s32.totalorder %s103, %s104
      %p113 = scmp.eq.s32.totalorder %s30, 0
      %p114 = por %p112, %p113
      %p115 = scmp.ne.s32.totalorder %s103, %s104
      %p116 = scmp.eq.s32.totalorder %s31, 1
      %p117 = por %p115, %p116
      %p119 = scmp.ne.s32.totalorder %s104, %s118
      %p120 = scmp.eq.s32.totalorder %s31, 0
      %p121 = por %p119, %p120
      %s123 = sadd.s32 %s122, 1
      %p126 = scmp.eq.s32.totalorder %s25, 1
      %p127 = scmp.ne.s32.totalorder %s122, %s124
      %p128 = scmp.eq.s32.totalorder %s25, 0
      %p129 = por %p127, %p128
      %p130 = scmp.ne.s32.totalorder %s122, %s124
      %p131 = scmp.eq.s32.totalorder %s30, 1
      %p132 = por %p130, %p131
      %p133 = scmp.ne.s32.totalorder %s124, %s125
      %p134 = scmp.eq.s32.totalorder %s30, 0
      %p135 = por %p133, %p134
      %p136 = scmp.ne.s32.totalorder %s124, %s125
      %p137 = scmp.eq.s32.totalorder %s31, 1
      %p138 = por %p136, %p137
      %p140 = scmp.ne.s32.totalorder %s125, %s139
      %p141 = scmp.eq.s32.totalorder %s31, 0
      %p142 = por %p140, %p141
      %s144 = sadd.s32 %s143, 1
      %p147 = scmp.eq.s32.totalorder %s25, 1
      %p148 = scmp.ne.s32.totalorder %s143, %s145
      %p149 = scmp.eq.s32.totalorder %s25, 0
      %p150 = por %p148, %p149
      %p151 = scmp.ne.s32.totalorder %s143, %s145
      %p152 = scmp.eq.s32.totalorder %s30, 1
      %p153 = por %p151, %p152
      %p154 = scmp.ne.s32.totalorder %s145, %s146
      %p155 = scmp.eq.s32.totalorder %s30, 0
      %p156 = por %p154, %p155
      %p157 = scmp.ne.s32.totalorder %s145, %s146
      %p158 = scmp.eq.s32.totalorder %s31, 1
      %p159 = por %p157, %p158
      %p161 = scmp.ne.s32.totalorder %s146, %s160
      %p162 = scmp.eq.s32.totalorder %s31, 0
      %p163 = por %p161, %p162
      %s165 = sadd.s32 %s164, 1
      %p168 = scmp.eq.s32.totalorder %s25, 1
      %p169 = scmp.ne.s32.totalorder %s164, %s166
      %p170 = scmp.eq.s32.totalorder %s25, 0
      %p171 = por %p169, %p170
      %p172 = scmp.ne.s32.totalorder %s164, %s166
      %p173 = scmp.eq.s32.totalorder %s30, 1
      %p174 = por %p172, %p173
      %p175 = scmp.ne.s32.totalorder %s166, %s167
      %p176 = scmp.eq.s32.totalorder %s30, 0
      %p177 = por %p175, %p176
      %p178 = scmp.ne.s32.totalorder %s166, %s167
      %p179 = scmp.eq.s32.totalorder %s31, 1
      %p180 = por %p178, %p179
      %p182 = scmp.ne.s32.totalorder %s167, %s181
      %p183 = scmp.eq.s32.totalorder %s31, 0
      %p184 = por %p182, %p183
      %s186 = sadd.s32 %s185, 1
      %p189 = scmp.eq.s32.totalorder %s25, 1
      %p190 = scmp.ne.s32.totalorder %s185, %s187
      %p191 = scmp.eq.s32.totalorder %s25, 0
      %p192 = por %p190, %p191
      %p193 = scmp.ne.s32.totalorder %s185, %s187
      %p194 = scmp.eq.s32.totalorder %s30, 1
      %p195 = por %p193, %p194
      %p196 = scmp.ne.s32.totalorder %s187, %s188
      %p197 = scmp.eq.s32.totalorder %s30, 0
      %p198 = por %p196, %p197
      %p199 = scmp.ne.s32.totalorder %s187, %s188
      %p200 = scmp.eq.s32.totalorder %s31, 1
      %p201 = por %p199, %p200
      %p203 = scmp.ne.s32.totalorder %s188, %s202
      %p204 = scmp.eq.s32.totalorder %s31, 0
      %p205 = por %p203, %p204
      %s207 = sadd.s32 %s206, 1
      %p210 = scmp.eq.s32.totalorder %s25, 1
      %p211 = scmp.ne.s32.totalorder %s206, %s208
      %p212 = scmp.eq.s32.totalorder %s25, 0
      %p213 = por %p211, %p212
      %p214 = scmp.ne.s32.totalorder %s206, %s208
      %p215 = scmp.eq.s32.totalorder %s30, 1
      %p216 = por %p214, %p215
      %p217 = scmp.ne.s32.totalorder %s208, %s209
      %p218 = scmp.eq.s32.totalorder %s30, 0
      %p219 = por %p217, %p218
      %p220 = scmp.ne.s32.totalorder %s208, %s209
      %p221 = scmp.eq.s32.totalorder %s31, 1
      %p222 = por %p220, %p221
      %p224 = scmp.ne.s32.totalorder %s209, %s223
      %p225 = scmp.eq.s32.totalorder %s31, 0
      %p226 = por %p224, %p225
      %s227 = ssub.s32 %s25, %s32
      %p228 = scmp.eq.s32.totalorder %s227, 0
      %s230 = sadd.s32 %s229, 1
      %s231 = scalar_select %p228, %s229, %s230
      %p234 = pneg %p228
      %p235 = scmp.eq.s32.totalorder %s25, 1
      %p236 = por %p234, %p235
      %p237 = scmp.ne.s32.totalorder %s229, %s232
      %p238 = scmp.eq.s32.totalorder %s25, 0
      %p239 = por %p237, %p238
      %p240 = scmp.ne.s32.totalorder %s229, %s232
      %p241 = scmp.eq.s32.totalorder %s30, 1
      %p242 = por %p240, %p241
      %p243 = scmp.ne.s32.totalorder %s232, %s233
      %p244 = scmp.eq.s32.totalorder %s30, 0
      %p245 = por %p243, %p244
      %p246 = scmp.ne.s32.totalorder %s232, %s233
      %p247 = scmp.eq.s32.totalorder %s31, 1
      %p248 = por %p246, %p247
      %p250 = scmp.ne.s32.totalorder %s233, %s249
      %p251 = scmp.eq.s32.totalorder %s31, 0
      %p252 = por %p250, %p251
      %p253 = scmp.le.s32.totalorder 1, %s25
      %p254 = scmp.lt.s32.totalorder %s25, 3
      %p255 = pnand %p253, %p254
      %p256 = pneg %p255
      // Predicated region
      $region9: #{tpu_custom_call.1} parent=5 // pred_check
        _
      $region10: #{tpu_custom_call.1} parent=5 // pred_check_branch
        %258 = sbr.rel (%p255) target = $region12
      $region11: #{tpu_custom_call.1} parent=5 // pred_region
        %s259 = ssub.s32 %s25, 1
        // Predicated region
        $region13: #{tpu_custom_call.1} parent=11 // pred_check
          %p260 = pneg %p72
        $region14: #{tpu_custom_call.1} parent=11 // pred_check_branch
          %262 = sbr.rel (%p260) target = $region16
        $region15: #{tpu_custom_call.1} parent=11 // pred_region
          %s264 = ssub.s32 24320, 24320
          %265 = vsyncadd [#allocation6], %s264
          %s266 = sshll.u32 [#allocation5], 4
          %s267 = int_to_ptr.vmem [resolvable:$true] %s266
          %272 = dma.hbm_to_vmem [thread:$0]  %s1, 24320, %s267, [#allocation6], 640, 640, 40
        $region16: #{tpu_custom_call.1} parent=11 // pred_fallthru
          _
        // Predicated region
        $region17: #{tpu_custom_call.1} parent=11 // pred_check
          %p273 = pneg %p93
        $region18: #{tpu_custom_call.1} parent=11 // pred_check_branch
          %275 = sbr.rel (%p273) target = $region20
        $region19: #{tpu_custom_call.1} parent=11 // pred_region
          %s277 = ssub.s32 80, 80
          %278 = vsyncadd [#allocation6], %s277
          %s280 = sshll.u32 [#allocation7], 4
          %s281 = int_to_ptr.vmem [resolvable:$true] %s280
          %283 = dma.hbm_to_vmem [thread:$0]  %s2, 80, %s281, [#allocation6]
        $region20: #{tpu_custom_call.1} parent=11 // pred_fallthru
          _
        // Predicated region
        $region21: #{tpu_custom_call.1} parent=11 // pred_check
          %p284 = pneg %p114
        $region22: #{tpu_custom_call.1} parent=11 // pred_check_branch
          %286 = sbr.rel (%p284) target = $region24
        $region23: #{tpu_custom_call.1} parent=11 // pred_region
          %s288 = ssub.s32 40960, 40960
          %289 = vsyncadd [#allocation9], %s288
          %s290 = sshll.u32 [#allocation8], 4
          %s291 = int_to_ptr.vmem [resolvable:$true] %s290
          %296 = dma.hbm_to_vmem [thread:$0]  %s3, 40960, %s291, [#allocation9], 512, 512, 32
        $region24: #{tpu_custom_call.1} parent=11 // pred_fallthru
          _
        // Predicated region
        $region25: #{tpu_custom_call.1} parent=11 // pred_check
          %p297 = pneg %p135
        $region26: #{tpu_custom_call.1} parent=11 // pred_check_branch
          %299 = sbr.rel (%p297) target = $region28
        $region27: #{tpu_custom_call.1} parent=11 // pred_region
          %s301 = ssub.s32 64, 64
          %302 = vsyncadd [#allocation9], %s301
          %s304 = sshll.u32 [#allocation10], 4
          %s305 = int_to_ptr.vmem [resolvable:$true] %s304
          %307 = dma.hbm_to_vmem [thread:$0]  %s4, 64, %s305, [#allocation9]
        $region28: #{tpu_custom_call.1} parent=11 // pred_fallthru
          _
        // Predicated region
        $region29: #{tpu_custom_call.1} parent=11 // pred_check
          %p308 = pneg %p156
        $region30: #{tpu_custom_call.1} parent=11 // pred_check_branch
          %310 = sbr.rel (%p308) target = $region32
        $region31: #{tpu_custom_call.1} parent=11 // pred_region
          %s312 = ssub.s32 8192, 8192
          %313 = vsyncadd [#allocation12], %s312
          %s314 = sshll.u32 [#allocation11], 4
          %s315 = int_to_ptr.vmem [resolvable:$true] %s314
          %320 = dma.hbm_to_vmem [thread:$0]  %s5, 8192, %s315, [#allocation12], 128, 128, 8
        $region32: #{tpu_custom_call.1} parent=11 // pred_fallthru
          _
        // Predicated region
        $region33: #{tpu_custom_call.1} parent=11 // pred_check
          %p321 = pneg %p177
        $region34: #{tpu_custom_call.1} parent=11 // pred_check_branch
          %323 = sbr.rel (%p321) target = $region36
        $region35: #{tpu_custom_call.1} parent=11 // pred_region
          %s325 = ssub.s32 16, 16
          %326 = vsyncadd [#allocation12], %s325
          %s328 = sshll.u32 [#allocation13], 4
          %s329 = int_to_ptr.vmem [resolvable:$true] %s328
          %331 = dma.hbm_to_vmem [thread:$0]  %s6, 16, %s329, [#allocation12]
        $region36: #{tpu_custom_call.1} parent=11 // pred_fallthru
          _
        // Predicated region
        $region37: #{tpu_custom_call.1} parent=11 // pred_check
          %p332 = pneg %p198
        $region38: #{tpu_custom_call.1} parent=11 // pred_check_branch
          %334 = sbr.rel (%p332) target = $region40
        $region39: #{tpu_custom_call.1} parent=11 // pred_region
          %s336 = ssub.s32 2048, 2048
          %337 = vsyncadd [#allocation15], %s336
          %s338 = sshll.u32 [#allocation14], 4
          %s339 = int_to_ptr.vmem [resolvable:$true] %s338
          %344 = dma.hbm_to_vmem [thread:$0]  %s7, 2048, %s339, [#allocation15], 128, 128, 8
        $region40: #{tpu_custom_call.1} parent=11 // pred_fallthru
          _
        // Predicated region
        $region41: #{tpu_custom_call.1} parent=11 // pred_check
          %p345 = pneg %p219
        $region42: #{tpu_custom_call.1} parent=11 // pred_check_branch
          %347 = sbr.rel (%p345) target = $region44
        $region43: #{tpu_custom_call.1} parent=11 // pred_region
          %s349 = ssub.s32 16, 16
          %350 = vsyncadd [#allocation15], %s349
          %s352 = sshll.u32 [#allocation16], 4
          %s353 = int_to_ptr.vmem [resolvable:$true] %s352
          %355 = dma.hbm_to_vmem [thread:$0]  %s8, 16, %s353, [#allocation15]
        $region44: #{tpu_custom_call.1} parent=11 // pred_fallthru
          _
      $region12: #{tpu_custom_call.1} parent=5 // pred_fallthru
        _
      %p356 = scmp.lt.s32.totalorder %s25, 2
      // Predicated region
      $region45: #{tpu_custom_call.1} parent=5 // pred_check
        %p357 = pneg %p356
      $region46: #{tpu_custom_call.1} parent=5 // pred_check_branch
        %359 = sbr.rel (%p357) target = $region48
      $region47: #{tpu_custom_call.1} parent=5 // pred_region
        // Predicated region
        $region49: #{tpu_custom_call.1} parent=47 // pred_check
          %p360 = pneg %p45
        $region50: #{tpu_custom_call.1} parent=47 // pred_check_branch
          %362 = sbr.rel (%p360) target = $region52
        $region51: #{tpu_custom_call.1} parent=47 // pred_region
          %s363 = sand.u32 %s35, 1
          %s364 = scalar_lea.sflag [#allocation3], %s363
          %s365 = sand.u32 %s35, 1
          %s366 = smul.addr %s365, 24
          %s367 = scalar_lea.vmem [#allocation2], %s366
          %s369 = ssub.s32 384, 384
          %370 = vsyncadd %s364, %s369
          %s371 = smul.addr %s25, 3
          %s372 = smul.addr %s371, 128
          %s373 = scalar_lea.hbm %s0, %s372
          %s375 = sshll.u32 %s367, 4
          %s376 = int_to_ptr.vmem [resolvable:$true] %s375
          %378 = dma.hbm_to_vmem [thread:$0]  %s373, 384, %s376, %s364
        $region52: #{tpu_custom_call.1} parent=47 // pred_fallthru
          _
      $region48: #{tpu_custom_call.1} parent=5 // pred_fallthru
        _
      %p379 = scmp.le.s32.totalorder 1, %s25
      %p380 = scmp.lt.s32.totalorder %s25, 3
      %p381 = pnand %p379, %p380
      %p382 = pneg %p381
      // Predicated region
      $region53: #{tpu_custom_call.1} parent=5 // pred_check
        _
      $region54: #{tpu_custom_call.1} parent=5 // pred_check_branch
        %384 = sbr.rel (%p381) target = $region56
      $region55: #{tpu_custom_call.1} parent=5 // pred_region
        %s385 = ssub.s32 %s25, 1
        %s386 = sand.u32 %s38, 1
        %s387 = scalar_lea.sflag [#allocation3], %s386
        %s388 = sand.u32 %s38, 1
        %s389 = smul.addr %s388, 24
        %s390 = scalar_lea.vmem [#allocation2], %s389
        // Predicated region
        $region57: #{tpu_custom_call.1} parent=55 // pred_check
          %p391 = pneg %p51
        $region58: #{tpu_custom_call.1} parent=55 // pred_check_branch
          %393 = sbr.rel (%p391) target = $region60
        $region59: #{tpu_custom_call.1} parent=55 // pred_region
          %394 = dma.done %s387, 384
        $region60: #{tpu_custom_call.1} parent=55 // pred_fallthru
          _
        // Predicated region
        $region61: #{tpu_custom_call.1} parent=55 // pred_check
          %p395 = pneg %p72
        $region62: #{tpu_custom_call.1} parent=55 // pred_check_branch
          %397 = sbr.rel (%p395) target = $region64
        $region63: #{tpu_custom_call.1} parent=55 // pred_region
          %398 = dma.done [#allocation6], 24320
        $region64: #{tpu_custom_call.1} parent=55 // pred_fallthru
          _
        // Predicated region
        $region65: #{tpu_custom_call.1} parent=55 // pred_check
          %p399 = pneg %p93
        $region66: #{tpu_custom_call.1} parent=55 // pred_check_branch
          %401 = sbr.rel (%p399) target = $region68
        $region67: #{tpu_custom_call.1} parent=55 // pred_region
          %402 = dma.done [#allocation6], 80
        $region68: #{tpu_custom_call.1} parent=55 // pred_fallthru
          _
        // Predicated region
        $region69: #{tpu_custom_call.1} parent=55 // pred_check
          %p403 = pneg %p114
        $region70: #{tpu_custom_call.1} parent=55 // pred_check_branch
          %405 = sbr.rel (%p403) target = $region72
        $region71: #{tpu_custom_call.1} parent=55 // pred_region
          %406 = dma.done [#allocation9], 40960
        $region72: #{tpu_custom_call.1} parent=55 // pred_fallthru
          _
        // Predicated region
        $region73: #{tpu_custom_call.1} parent=55 // pred_check
          %p407 = pneg %p135
        $region74: #{tpu_custom_call.1} parent=55 // pred_check_branch
          %409 = sbr.rel (%p407) target = $region76
        $region75: #{tpu_custom_call.1} parent=55 // pred_region
          %410 = dma.done [#allocation9], 64
        $region76: #{tpu_custom_call.1} parent=55 // pred_fallthru
          _
        // Predicated region
        $region77: #{tpu_custom_call.1} parent=55 // pred_check
          %p411 = pneg %p156
        $region78: #{tpu_custom_call.1} parent=55 // pred_check_branch
          %413 = sbr.rel (%p411) target = $region80
        $region79: #{tpu_custom_call.1} parent=55 // pred_region
          %414 = dma.done [#allocation12], 8192
        $region80: #{tpu_custom_call.1} parent=55 // pred_fallthru
          _
        // Predicated region
        $region81: #{tpu_custom_call.1} parent=55 // pred_check
          %p415 = pneg %p177
        $region82: #{tpu_custom_call.1} parent=55 // pred_check_branch
          %417 = sbr.rel (%p415) target = $region84
        $region83: #{tpu_custom_call.1} parent=55 // pred_region
          %418 = dma.done [#allocation12], 16
        $region84: #{tpu_custom_call.1} parent=55 // pred_fallthru
          _
        // Predicated region
        $region85: #{tpu_custom_call.1} parent=55 // pred_check
          %p419 = pneg %p198
        $region86: #{tpu_custom_call.1} parent=55 // pred_check_branch
          %421 = sbr.rel (%p419) target = $region88
        $region87: #{tpu_custom_call.1} parent=55 // pred_region
          %422 = dma.done [#allocation15], 2048
        $region88: #{tpu_custom_call.1} parent=55 // pred_fallthru
          _
        // Predicated region
        $region89: #{tpu_custom_call.1} parent=55 // pred_check
          %p423 = pneg %p219
        $region90: #{tpu_custom_call.1} parent=55 // pred_check_branch
          %425 = sbr.rel (%p423) target = $region92
        $region91: #{tpu_custom_call.1} parent=55 // pred_region
          %426 = dma.done [#allocation15], 16
        $region92: #{tpu_custom_call.1} parent=55 // pred_fallthru
          _
        %s427 = sand.u32 %s38, 1
        %s428 = scalar_lea.sflag [#allocation3], %s427
        %s429 = sand.u32 %s38, 1
        %s430 = smul.addr %s429, 24
        %s431 = scalar_lea.vmem [#allocation2], %s430
        %p432 = pneg %p51
        %p433 = pneg %p48
        %p434 = pneg %p72
        %p435 = pneg %p69
        %p436 = pneg %p93
        %p437 = pneg %p90
        %p438 = pneg %p114
        %p439 = pneg %p111
        %p440 = pneg %p135
        %p441 = pneg %p132
        %p442 = pneg %p156
        %p443 = pneg %p153
        %p444 = pneg %p177
        %p445 = pneg %p174
        %p446 = pneg %p198
        %p447 = pneg %p195
        %p448 = pneg %p219
        %p449 = pneg %p216
        %p450 = pneg %p245
        %p451 = pneg %p242
        %s452 = sand.u32 %s232, 1
        %s453 = scalar_lea.sflag [#allocation4], %s452
        %s454 = sand.u32 %s232, 1
        %s455 = smul.addr %s454, 8
        %s456 = scalar_lea.vmem [#allocation17], %s455
        %v457 = vld [vmem:[%s390] sm:$0xff]
        %v458 = vld [vmem:[%s390 + $0x8] sm:$0xff]
        %v459 = vld [vmem:[%s390 + $0x10] sm:$0xff]
        %v460 = vld [vmem:[#allocation5] sm:$0xff]
        %v461 = vld [vmem:[#allocation5 + $0x8] sm:$0xff]
        %v462 = vld [vmem:[#allocation5 + $0x10] sm:$0xff]
        %v463 = vld [vmem:[#allocation5 + $0x18] sm:$0xff]
        %v464 = vld [vmem:[#allocation5 + $0x20] sm:$0xff]
        %v465 = vld [vmem:[#allocation5 + $0x28] sm:$0xff]
        %v466 = vld [vmem:[#allocation5 + $0x30] sm:$0xff]
        %v467 = vld [vmem:[#allocation5 + $0x38] sm:$0xff]
        %v468 = vld [vmem:[#allocation5 + $0x40] sm:$0xff]
        %v469 = vld [vmem:[#allocation5 + $0x48] sm:$0xff]
        %v470 = vld [vmem:[#allocation5 + $0x50] sm:$0xff]
        %v471 = vld [vmem:[#allocation5 + $0x58] sm:$0xff]
        %v472 = vld [vmem:[#allocation5 + $0x60] sm:$0xff]
        %v473 = vld [vmem:[#allocation5 + $0x68] sm:$0xff]
        %v474 = vld [vmem:[#allocation5 + $0x70] sm:$0xff]
        %v475 = vld [vmem:[#allocation5 + $0x78] sm:$0xff]
        %v476 = vld [vmem:[#allocation5 + $0x80] sm:$0xff]
        %v477 = vld [vmem:[#allocation5 + $0x88] sm:$0xff]
        %v478 = vld [vmem:[#allocation5 + $0x90] sm:$0xff]
        %v479 = vld [vmem:[#allocation5 + $0x98] sm:$0xff]
        %v480 = vld [vmem:[#allocation5 + $0xa0] sm:$0xff]
        %v481 = vld [vmem:[#allocation5 + $0xa8] sm:$0xff]
        %v482 = vld [vmem:[#allocation5 + $0xb0] sm:$0xff]
        %v483 = vld [vmem:[#allocation5 + $0xb8] sm:$0xff]
        %v484 = vld [vmem:[#allocation5 + $0xc0] sm:$0xff]
        %v485 = vld [vmem:[#allocation5 + $0xc8] sm:$0xff]
        %v486 = vld [vmem:[#allocation5 + $0xd0] sm:$0xff]
        %v487 = vld [vmem:[#allocation5 + $0xd8] sm:$0xff]
        %v488 = vld [vmem:[#allocation5 + $0xe0] sm:$0xff]
        %v489 = vld [vmem:[#allocation5 + $0xe8] sm:$0xff]
        %v490 = vld [vmem:[#allocation5 + $0xf0] sm:$0xff]
        %v491 = vld [vmem:[#allocation5 + $0xf8] sm:$0xff]
        %v492 = vld [vmem:[#allocation5 + $0x100] sm:$0xff]
        %v493 = vld [vmem:[#allocation5 + $0x108] sm:$0xff]
        %v494 = vld [vmem:[#allocation5 + $0x110] sm:$0xff]
        %v495 = vld [vmem:[#allocation5 + $0x118] sm:$0xff]
        %v496 = vld [vmem:[#allocation5 + $0x120] sm:$0xff]
        %v497 = vld [vmem:[#allocation5 + $0x128] sm:$0xff]
        %v498 = vld [vmem:[#allocation5 + $0x130] sm:$0xff]
        %v499 = vld [vmem:[#allocation5 + $0x138] sm:$0xff]
        %v500 = vld [vmem:[#allocation5 + $0x140] sm:$0xff]
        %v501 = vld [vmem:[#allocation5 + $0x148] sm:$0xff]
        %v502 = vld [vmem:[#allocation5 + $0x150] sm:$0xff]
        %v503 = vld [vmem:[#allocation5 + $0x158] sm:$0xff]
        %v504 = vld [vmem:[#allocation5 + $0x160] sm:$0xff]
        %v505 = vld [vmem:[#allocation5 + $0x168] sm:$0xff]
        %v506 = vld [vmem:[#allocation5 + $0x170] sm:$0xff]
        %v507 = vld [vmem:[#allocation5 + $0x178] sm:$0xff]
        %v508 = vld [vmem:[#allocation5 + $0x180] sm:$0xff]
        %v509 = vld [vmem:[#allocation5 + $0x188] sm:$0xff]
        %v510 = vld [vmem:[#allocation5 + $0x190] sm:$0xff]
        %v511 = vld [vmem:[#allocation5 + $0x198] sm:$0xff]
        %v512 = vld [vmem:[#allocation5 + $0x1a0] sm:$0xff]
        %v513 = vld [vmem:[#allocation5 + $0x1a8] sm:$0xff]
        %v514 = vld [vmem:[#allocation5 + $0x1b0] sm:$0xff]
        %v515 = vld [vmem:[#allocation5 + $0x1b8] sm:$0xff]
        %v516 = vld [vmem:[#allocation5 + $0x1c0] sm:$0xff]
        %v517 = vld [vmem:[#allocation5 + $0x1c8] sm:$0xff]
        %v518 = vld [vmem:[#allocation5 + $0x1d0] sm:$0xff]
        %v519 = vld [vmem:[#allocation5 + $0x1d8] sm:$0xff]
        %v520 = vld [vmem:[#allocation5 + $0x1e0] sm:$0xff]
        %v521 = vld [vmem:[#allocation5 + $0x1e8] sm:$0xff]
        %v522 = vld [vmem:[#allocation5 + $0x1f0] sm:$0xff]
        %v523 = vld [vmem:[#allocation5 + $0x1f8] sm:$0xff]
        %v524 = vld [vmem:[#allocation5 + $0x200] sm:$0xff]
        %v525 = vld [vmem:[#allocation5 + $0x208] sm:$0xff]
        %v526 = vld [vmem:[#allocation5 + $0x210] sm:$0xff]
        %v527 = vld [vmem:[#allocation5 + $0x218] sm:$0xff]
        %v528 = vld [vmem:[#allocation5 + $0x220] sm:$0xff]
        %v529 = vld [vmem:[#allocation5 + $0x228] sm:$0xff]
        %v530 = vld [vmem:[#allocation5 + $0x230] sm:$0xff]
        %v531 = vld [vmem:[#allocation5 + $0x238] sm:$0xff]
        %v532 = vld [vmem:[#allocation5 + $0x240] sm:$0xff]
        %v533 = vld [vmem:[#allocation5 + $0x248] sm:$0xff]
        %v534 = vld [vmem:[#allocation5 + $0x250] sm:$0xff]
        %v535 = vld [vmem:[#allocation5 + $0x258] sm:$0xff]
        %v536 = vld [vmem:[#allocation5 + $0x260] sm:$0xff]
        %v537 = vld [vmem:[#allocation5 + $0x268] sm:$0xff]
        %v538 = vld [vmem:[#allocation5 + $0x270] sm:$0xff]
        %v539 = vld [vmem:[#allocation5 + $0x278] sm:$0xff]
        %v540 = vld [vmem:[#allocation5 + $0x280] sm:$0xff]
        %v541 = vld [vmem:[#allocation5 + $0x288] sm:$0xff]
        %v542 = vld [vmem:[#allocation5 + $0x290] sm:$0xff]
        %v543 = vld [vmem:[#allocation5 + $0x298] sm:$0xff]
        %v544 = vld [vmem:[#allocation5 + $0x2a0] sm:$0xff]
        %v545 = vld [vmem:[#allocation5 + $0x2a8] sm:$0xff]
        %v546 = vld [vmem:[#allocation5 + $0x2b0] sm:$0xff]
        %v547 = vld [vmem:[#allocation5 + $0x2b8] sm:$0xff]
        %v548 = vld [vmem:[#allocation5 + $0x2c0] sm:$0xff]
        %v549 = vld [vmem:[#allocation5 + $0x2c8] sm:$0xff]
        %v550 = vld [vmem:[#allocation5 + $0x2d0] sm:$0xff]
        %v551 = vld [vmem:[#allocation5 + $0x2d8] sm:$0xff]
        %v552 = vld [vmem:[#allocation5 + $0x2e0] sm:$0xff]
        %v553 = vld [vmem:[#allocation5 + $0x2e8] sm:$0xff]
        %v554 = vld [vmem:[#allocation5 + $0x2f0] sm:$0xff]
        %v555 = vld [vmem:[#allocation5 + $0x2f8] sm:$0xff]
        %v556 = vld [vmem:[#allocation5 + $0x300] sm:$0xff]
        %v557 = vld [vmem:[#allocation5 + $0x308] sm:$0xff]
        %v558 = vld [vmem:[#allocation5 + $0x310] sm:$0xff]
        %v559 = vld [vmem:[#allocation5 + $0x318] sm:$0xff]
        %v560 = vld [vmem:[#allocation5 + $0x320] sm:$0xff]
        %v561 = vld [vmem:[#allocation5 + $0x328] sm:$0xff]
        %v562 = vld [vmem:[#allocation5 + $0x330] sm:$0xff]
        %v563 = vld [vmem:[#allocation5 + $0x338] sm:$0xff]
        %v564 = vld [vmem:[#allocation5 + $0x340] sm:$0xff]
        %v565 = vld [vmem:[#allocation5 + $0x348] sm:$0xff]
        %v566 = vld [vmem:[#allocation5 + $0x350] sm:$0xff]
        %v567 = vld [vmem:[#allocation5 + $0x358] sm:$0xff]
        %v568 = vld [vmem:[#allocation5 + $0x360] sm:$0xff]
        %v569 = vld [vmem:[#allocation5 + $0x368] sm:$0xff]
        %v570 = vld [vmem:[#allocation5 + $0x370] sm:$0xff]
        %v571 = vld [vmem:[#allocation5 + $0x378] sm:$0xff]
        %v572 = vld [vmem:[#allocation5 + $0x380] sm:$0xff]
        %v573 = vld [vmem:[#allocation5 + $0x388] sm:$0xff]
        %v574 = vld [vmem:[#allocation5 + $0x390] sm:$0xff]
        %v575 = vld [vmem:[#allocation5 + $0x398] sm:$0xff]
        %v576 = vld [vmem:[#allocation5 + $0x3a0] sm:$0xff]
        %v577 = vld [vmem:[#allocation5 + $0x3a8] sm:$0xff]
        %v578 = vld [vmem:[#allocation5 + $0x3b0] sm:$0xff]
        %v579 = vld [vmem:[#allocation5 + $0x3b8] sm:$0xff]
        %v580 = vld [vmem:[#allocation5 + $0x3c0] sm:$0xff]
        %v581 = vld [vmem:[#allocation5 + $0x3c8] sm:$0xff]
        %v582 = vld [vmem:[#allocation5 + $0x3d0] sm:$0xff]
        %v583 = vld [vmem:[#allocation5 + $0x3d8] sm:$0xff]
        %v584 = vld [vmem:[#allocation5 + $0x3e0] sm:$0xff]
        %v585 = vld [vmem:[#allocation5 + $0x3e8] sm:$0xff]
        %v586 = vld [vmem:[#allocation5 + $0x3f0] sm:$0xff]
        %v587 = vld [vmem:[#allocation5 + $0x3f8] sm:$0xff]
        %v588 = vld [vmem:[#allocation5 + $0x400] sm:$0xff]
        %v589 = vld [vmem:[#allocation5 + $0x408] sm:$0xff]
        %v590 = vld [vmem:[#allocation5 + $0x410] sm:$0xff]
        %v591 = vld [vmem:[#allocation5 + $0x418] sm:$0xff]
        %v592 = vld [vmem:[#allocation5 + $0x420] sm:$0xff]
        %v593 = vld [vmem:[#allocation5 + $0x428] sm:$0xff]
        %v594 = vld [vmem:[#allocation5 + $0x430] sm:$0xff]
        %v595 = vld [vmem:[#allocation5 + $0x438] sm:$0xff]
        %v596 = vld [vmem:[#allocation5 + $0x440] sm:$0xff]
        %v597 = vld [vmem:[#allocation5 + $0x448] sm:$0xff]
        %v598 = vld [vmem:[#allocation5 + $0x450] sm:$0xff]
        %v599 = vld [vmem:[#allocation5 + $0x458] sm:$0xff]
        %v600 = vld [vmem:[#allocation5 + $0x460] sm:$0xff]
        %v601 = vld [vmem:[#allocation5 + $0x468] sm:$0xff]
        %v602 = vld [vmem:[#allocation5 + $0x470] sm:$0xff]
        %v603 = vld [vmem:[#allocation5 + $0x478] sm:$0xff]
        %v604 = vld [vmem:[#allocation5 + $0x480] sm:$0xff]
        %v605 = vld [vmem:[#allocation5 + $0x488] sm:$0xff]
        %v606 = vld [vmem:[#allocation5 + $0x490] sm:$0xff]
        %v607 = vld [vmem:[#allocation5 + $0x498] sm:$0xff]
        %v608 = vld [vmem:[#allocation5 + $0x4a0] sm:$0xff]
        %v609 = vld [vmem:[#allocation5 + $0x4a8] sm:$0xff]
        %v610 = vld [vmem:[#allocation5 + $0x4b0] sm:$0xff]
        %v611 = vld [vmem:[#allocation5 + $0x4b8] sm:$0xff]
        %v612 = vld [vmem:[#allocation5 + $0x4c0] sm:$0xff]
        %v613 = vld [vmem:[#allocation5 + $0x4c8] sm:$0xff]
        %v614 = vld [vmem:[#allocation5 + $0x4d0] sm:$0xff]
        %v615 = vld [vmem:[#allocation5 + $0x4d8] sm:$0xff]
        %v616 = vld [vmem:[#allocation5 + $0x4e0] sm:$0xff]
        %v617 = vld [vmem:[#allocation5 + $0x4e8] sm:$0xff]
        %v618 = vld [vmem:[#allocation5 + $0x4f0] sm:$0xff]
        %v619 = vld [vmem:[#allocation5 + $0x4f8] sm:$0xff]
        %v620 = vld [vmem:[#allocation5 + $0x500] sm:$0xff]
        %v621 = vld [vmem:[#allocation5 + $0x508] sm:$0xff]
        %v622 = vld [vmem:[#allocation5 + $0x510] sm:$0xff]
        %v623 = vld [vmem:[#allocation5 + $0x518] sm:$0xff]
        %v624 = vld [vmem:[#allocation5 + $0x520] sm:$0xff]
        %v625 = vld [vmem:[#allocation5 + $0x528] sm:$0xff]
        %v626 = vld [vmem:[#allocation5 + $0x530] sm:$0xff]
        %v627 = vld [vmem:[#allocation5 + $0x538] sm:$0xff]
        %v628 = vld [vmem:[#allocation5 + $0x540] sm:$0xff]
        %v629 = vld [vmem:[#allocation5 + $0x548] sm:$0xff]
        %v630 = vld [vmem:[#allocation5 + $0x550] sm:$0xff]
        %v631 = vld [vmem:[#allocation5 + $0x558] sm:$0xff]
        %v632 = vld [vmem:[#allocation5 + $0x560] sm:$0xff]
        %v633 = vld [vmem:[#allocation5 + $0x568] sm:$0xff]
        %v634 = vld [vmem:[#allocation5 + $0x570] sm:$0xff]
        %v635 = vld [vmem:[#allocation5 + $0x578] sm:$0xff]
        %v636 = vld [vmem:[#allocation5 + $0x580] sm:$0xff]
        %v637 = vld [vmem:[#allocation5 + $0x588] sm:$0xff]
        %v638 = vld [vmem:[#allocation5 + $0x590] sm:$0xff]
        %v639 = vld [vmem:[#allocation5 + $0x598] sm:$0xff]
        %v640 = vld [vmem:[#allocation5 + $0x5a0] sm:$0xff]
        %v641 = vld [vmem:[#allocation5 + $0x5a8] sm:$0xff]
        %v642 = vld [vmem:[#allocation5 + $0x5b0] sm:$0xff]
        %v643 = vld [vmem:[#allocation5 + $0x5b8] sm:$0xff]
        %v644 = vld [vmem:[#allocation5 + $0x5c0] sm:$0xff]
        %v645 = vld [vmem:[#allocation5 + $0x5c8] sm:$0xf]
        %v646 = vld [vmem:[#allocation5 + $0x5d0] sm:$0xf]
        %v647 = vld [vmem:[#allocation5 + $0x5d8] sm:$0xf]
        %v648 = vld [vmem:[#allocation5 + $0x5e0] sm:$0xf]
        %v649 = vld [vmem:[#allocation5 + $0x5e8] sm:$0xf]
        %v650 = vld [vmem:[#allocation7] sm:$0x1f]
        %v652 = vlaneseq
        %v653 = vshrl.u32 %v652, 7
        %v654 = vsub.s32 0, %v653
        %v655 = vrot.slane %v650, %v654
        %v656 = vlaneseq
        %v657 = vshrl.u32 %v656, 7
        %v658 = vsub.s32 1, %v657
        %v659 = vrot.slane %v650, %v658
        %v660 = vlaneseq
        %v661 = vshrl.u32 %v660, 7
        %v662 = vsub.s32 2, %v661
        %v663 = vrot.slane %v650, %v662
        %v664 = vlaneseq
        %v665 = vshrl.u32 %v664, 7
        %v666 = vsub.s32 3, %v665
        %v667 = vrot.slane %v650, %v666
        %v668 = vlaneseq
        %v669 = vshrl.u32 %v668, 7
        %v670 = vsub.s32 4, %v669
        %v671 = vrot.slane %v650, %v670
        %vm677 = vcmask 359424
        %v679 = vsel %vm677, %v459, 0
        %vm681 = vcmask 1043456
        %v683 = vsel %vm681, %v645, 0
        %v686 = vsel %vm681, %v646, 0
        %v689 = vsel %vm681, %v647, 0
        %v692 = vsel %vm681, %v648, 0
        %v695 = vsel %vm681, %v649, 0
        %697 = vmatprep.subr.mxu0 %v461
        %698 = vmatpush1.msra.mxu0 %v460
        %699 = vmatprep.subr.mxu0 %v466
        %700 = vmatpush1.msra.mxu0 %v465
        %701 = vmatprep.subr.mxu0 %v471
        %702 = vmatpush1.msra.mxu0 %v470
        %703 = vmatprep.subr.mxu0 %v476
        %704 = vmatpush1.msra.mxu0 %v475
        %705 = vmatprep.subr.mxu0 %v481
        %706 = vmatpush1.msra.mxu0 %v480
        %707 = vmatprep.subr.mxu0 %v486
        %708 = vmatpush1.msra.mxu0 %v485
        %709 = vmatprep.subr.mxu0 %v491
        %710 = vmatpush1.msra.mxu0 %v490
        %711 = vmatprep.subr.mxu0 %v496
        %712 = vmatpush1.msra.mxu0 %v495
        %713 = vmatprep.subr.mxu0 %v501
        %714 = vmatpush1.msra.mxu0 %v500
        %715 = vmatprep.subr.mxu0 %v506
        %716 = vmatpush1.msra.mxu0 %v505
        %717 = vmatprep.subr.mxu0 %v511
        %718 = vmatpush1.msra.mxu0 %v510
        %719 = vmatprep.subr.mxu0 %v516
        %720 = vmatpush1.msra.mxu0 %v515
        %721 = vmatprep.subr.mxu0 %v521
        %722 = vmatpush1.msra.mxu0 %v520
        %723 = vmatprep.subr.mxu0 %v526
        %724 = vmatpush1.msra.mxu0 %v525
        %725 = vmatprep.subr.mxu0 %v531
        %726 = vmatpush1.msra.mxu0 %v530
        %727 = vmatprep.subr.mxu0 %v536
        %728 = vmatpush1.msra.mxu0 %v535
        %729 = vmatprep.subr.mxu0 %v541
        %730 = vmatpush1.msra.mxu0 %v540
        %731 = vmatprep.subr.mxu0 %v546
        %732 = vmatpush1.msra.mxu0 %v545
        %733 = vmatprep.subr.mxu0 %v551
        %734 = vmatpush1.msra.mxu0 %v550
        %735 = vmatprep.subr.mxu0 %v556
        %736 = vmatpush1.msra.mxu0 %v555
        %737 = vmatprep.subr.mxu0 %v561
        %738 = vmatpush1.msra.mxu0 %v560
        %739 = vmatprep.subr.mxu0 %v566
        %740 = vmatpush1.msra.mxu0 %v565
        %741 = vmatprep.subr.mxu0 %v571
        %742 = vmatpush1.msra.mxu0 %v570
        %743 = vmatprep.subr.mxu0 %v576
        %744 = vmatpush1.msra.mxu0 %v575
        %745 = vmatprep.subr.mxu0 %v581
        %746 = vmatpush1.msra.mxu0 %v580
        %747 = vmatprep.subr.mxu0 %v586
        %748 = vmatpush1.msra.mxu0 %v585
        %749 = vmatprep.subr.mxu0 %v591
        %750 = vmatpush1.msra.mxu0 %v590
        %751 = vmatprep.subr.mxu0 %v596
        %752 = vmatpush1.msra.mxu0 %v595
        %753 = vmatprep.subr.mxu0 %v601
        %754 = vmatpush1.msra.mxu0 %v600
        %755 = vmatprep.subr.mxu0 %v606
        %756 = vmatpush1.msra.mxu0 %v605
        %757 = vmatprep.subr.mxu0 %v611
        %758 = vmatpush1.msra.mxu0 %v610
        %759 = vmatprep.subr.mxu0 %v616
        %760 = vmatpush1.msra.mxu0 %v615
        %761 = vmatprep.mubr.f32.mxu0 %v458
        %762 = vmatmul.mubr.f32.gmra.mrb[0].mxu0 %v457
        %v763 = vpop.f32.mrb[0].mxu0
        %v764 = vadd.f32 %v655, %v763
        %v765 = vpop.f32.mrb[0].mxu0
        %v766 = vadd.f32 %v659, %v765
        %767 = vdwg.mxu0
        %768 = vmatprep.subr.mxu0 %v621
        %769 = vmatpush1.msra.mxu0 %v620
        %770 = vmatprep.subr.mxu0 %v626
        %771 = vmatpush1.msra.mxu0 %v625
        %772 = vmatprep.subr.mxu0 %v631
        %773 = vmatpush1.msra.mxu0 %v630
        %774 = vmatprep.subr.mxu0 %v636
        %775 = vmatpush1.msra.mxu0 %v635
        %776 = vmatprep.subr.mxu0 %v641
        %777 = vmatpush1.msra.mxu0 %v640
        %778 = vmatprep.subr.mxu0 %v686
        %779 = vmatpush1.msra.mxu0 %v683
        %780 = vmatprep.subr.mxu0 0.0
        %781 = vmatpush1.msra.mxu0 0.0
        %782 = vmatprep.subr.mxu0 0.0
        %783 = vmatpush1.msra.mxu0 0.0
        %784 = vmatprep.subr.mxu0 0.0
        %785 = vmatpush1.msra.mxu0 0.0
        %786 = vmatprep.subr.mxu0 0.0
        %787 = vmatpush1.msra.mxu0 0.0
        %788 = vmatprep.subr.mxu0 0.0
        %789 = vmatpush1.msra.mxu0 0.0
        %790 = vmatprep.subr.mxu0 0.0
        %791 = vmatpush1.msra.mxu0 0.0
        %792 = vmatprep.subr.mxu0 0.0
        %793 = vmatpush1.msra.mxu0 0.0
        %794 = vmatprep.subr.mxu0 0.0
        %795 = vmatpush1.msra.mxu0 0.0
        %796 = vmatprep.subr.mxu0 0.0
        %797 = vmatpush1.msra.mxu0 0.0
        %798 = vmatprep.subr.mxu0 0.0
        %799 = vmatpush1.msra.mxu0 0.0
        %800 = vmatprep.subr.mxu0 0.0
        %801 = vmatpush1.msra.mxu0 0.0
        %802 = vmatprep.subr.mxu0 0.0
        %803 = vmatpush1.msra.mxu0 0.0
        %804 = vmatprep.subr.mxu0 0.0
        %805 = vmatpush1.msra.mxu0 0.0
        %806 = vmatprep.subr.mxu0 0.0
        %807 = vmatpush1.msra.mxu0 0.0
        %808 = vmatprep.subr.mxu0 0.0
        %809 = vmatpush1.msra.mxu0 0.0
        %810 = vmatprep.subr.mxu0 0.0
        %811 = vmatpush1.msra.mxu0 0.0
        %812 = vmatprep.subr.mxu0 0.0
        %813 = vmatpush1.msra.mxu0 0.0
        %814 = vmatprep.subr.mxu0 0.0
        %815 = vmatpush1.msra.mxu0 0.0
        %816 = vmatprep.subr.mxu0 0.0
        %817 = vmatpush1.msra.mxu0 0.0
        %818 = vmatprep.subr.mxu0 0.0
        %819 = vmatpush1.msra.mxu0 0.0
        %820 = vmatprep.subr.mxu0 0.0
        %821 = vmatpush1.msra.mxu0 0.0
        %822 = vmatprep.subr.mxu0 0.0
        %823 = vmatpush1.msra.mxu0 0.0
        %824 = vmatprep.subr.mxu0 0.0
        %825 = vmatpush1.msra.mxu0 0.0
        %826 = vmatprep.subr.mxu0 0.0
        %827 = vmatpush1.msra.mxu0 0.0
        %828 = vmatprep.subr.mxu0 0.0
        %829 = vmatpush1.msra.mxu0 0.0
        %830 = vmatprep.subr.mxu0 0.0
        %831 = vmatpush1.msra.mxu0 0.0
        %832 = vmatprep.mubr.f32.mxu0 0.0
        %833 = vmatmul.mubr.f32.gmra.mrb[0].mxu0 %v679
        %v834 = vpop.f32.mrb[0].mxu0
        %v835 = vadd.f32 %v764, %v834
        %v836 = vpop.f32.mrb[0].mxu0
        %v837 = vadd.f32 %v766, %v836
        %838 = vdwg.mxu0
        %839 = vmatprep.subr.mxu0 %v463
        %840 = vmatpush1.msra.mxu0 %v462
        %841 = vmatprep.subr.mxu0 %v468
        %842 = vmatpush1.msra.mxu0 %v467
        %843 = vmatprep.subr.mxu0 %v473
        %844 = vmatpush1.msra.mxu0 %v472
        %845 = vmatprep.subr.mxu0 %v478
        %846 = vmatpush1.msra.mxu0 %v477
        %847 = vmatprep.subr.mxu0 %v483
        %848 = vmatpush1.msra.mxu0 %v482
        %849 = vmatprep.subr.mxu0 %v488
        %850 = vmatpush1.msra.mxu0 %v487
        %851 = vmatprep.subr.mxu0 %v493
        %852 = vmatpush1.msra.mxu0 %v492
        %853 = vmatprep.subr.mxu0 %v498
        %854 = vmatpush1.msra.mxu0 %v497
        %855 = vmatprep.subr.mxu0 %v503
        %856 = vmatpush1.msra.mxu0 %v502
        %857 = vmatprep.subr.mxu0 %v508
        %858 = vmatpush1.msra.mxu0 %v507
        %859 = vmatprep.subr.mxu0 %v513
        %860 = vmatpush1.msra.mxu0 %v512
        %861 = vmatprep.subr.mxu0 %v518
        %862 = vmatpush1.msra.mxu0 %v517
        %863 = vmatprep.subr.mxu0 %v523
        %864 = vmatpush1.msra.mxu0 %v522
        %865 = vmatprep.subr.mxu0 %v528
        %866 = vmatpush1.msra.mxu0 %v527
        %867 = vmatprep.subr.mxu0 %v533
        %868 = vmatpush1.msra.mxu0 %v532
        %869 = vmatprep.subr.mxu0 %v538
        %870 = vmatpush1.msra.mxu0 %v537
        %871 = vmatprep.subr.mxu0 %v543
        %872 = vmatpush1.msra.mxu0 %v542
        %873 = vmatprep.subr.mxu0 %v548
        %874 = vmatpush1.msra.mxu0 %v547
        %875 = vmatprep.subr.mxu0 %v553
        %876 = vmatpush1.msra.mxu0 %v552
        %877 = vmatprep.subr.mxu0 %v558
        %878 = vmatpush1.msra.mxu0 %v557
        %879 = vmatprep.subr.mxu0 %v563
        %880 = vmatpush1.msra.mxu0 %v562
        %881 = vmatprep.subr.mxu0 %v568
        %882 = vmatpush1.msra.mxu0 %v567
        %883 = vmatprep.subr.mxu0 %v573
        %884 = vmatpush1.msra.mxu0 %v572
        %885 = vmatprep.subr.mxu0 %v578
        %886 = vmatpush1.msra.mxu0 %v577
        %887 = vmatprep.subr.mxu0 %v583
        %888 = vmatpush1.msra.mxu0 %v582
        %889 = vmatprep.subr.mxu0 %v588
        %890 = vmatpush1.msra.mxu0 %v587
        %891 = vmatprep.subr.mxu0 %v593
        %892 = vmatpush1.msra.mxu0 %v592
        %893 = vmatprep.subr.mxu0 %v598
        %894 = vmatpush1.msra.mxu0 %v597
        %895 = vmatprep.subr.mxu0 %v603
        %896 = vmatpush1.msra.mxu0 %v602
        %897 = vmatprep.subr.mxu0 %v608
        %898 = vmatpush1.msra.mxu0 %v607
        %899 = vmatprep.subr.mxu0 %v613
        %900 = vmatpush1.msra.mxu0 %v612
        %901 = vmatprep.subr.mxu0 %v618
        %902 = vmatpush1.msra.mxu0 %v617
        %903 = vmatprep.mubr.f32.mxu0 %v458
        %904 = vmatmul.mubr.f32.gmra.mrb[0].mxu0 %v457
        %v905 = vpop.f32.mrb[0].mxu0
        %v906 = vadd.f32 %v663, %v905
        %v907 = vpop.f32.mrb[0].mxu0
        %v908 = vadd.f32 %v667, %v907
        %909 = vdwg.mxu0
        %910 = vmatprep.subr.mxu0 %v623
        %911 = vmatpush1.msra.mxu0 %v622
        %912 = vmatprep.subr.mxu0 %v628
        %913 = vmatpush1.msra.mxu0 %v627
        %914 = vmatprep.subr.mxu0 %v633
        %915 = vmatpush1.msra.mxu0 %v632
        %916 = vmatprep.subr.mxu0 %v638
        %917 = vmatpush1.msra.mxu0 %v637
        %918 = vmatprep.subr.mxu0 %v643
        %919 = vmatpush1.msra.mxu0 %v642
        %920 = vmatprep.subr.mxu0 %v692
        %921 = vmatpush1.msra.mxu0 %v689
        %922 = vmatprep.subr.mxu0 0.0
        %923 = vmatpush1.msra.mxu0 0.0
        %924 = vmatprep.subr.mxu0 0.0
        %925 = vmatpush1.msra.mxu0 0.0
        %926 = vmatprep.subr.mxu0 0.0
        %927 = vmatpush1.msra.mxu0 0.0
        %928 = vmatprep.subr.mxu0 0.0
        %929 = vmatpush1.msra.mxu0 0.0
        %930 = vmatprep.subr.mxu0 0.0
        %931 = vmatpush1.msra.mxu0 0.0
        %932 = vmatprep.subr.mxu0 0.0
        %933 = vmatpush1.msra.mxu0 0.0
        %934 = vmatprep.subr.mxu0 0.0
        %935 = vmatpush1.msra.mxu0 0.0
        %936 = vmatprep.subr.mxu0 0.0
        %937 = vmatpush1.msra.mxu0 0.0
        %938 = vmatprep.subr.mxu0 0.0
        %939 = vmatpush1.msra.mxu0 0.0
        %940 = vmatprep.subr.mxu0 0.0
        %941 = vmatpush1.msra.mxu0 0.0
        %942 = vmatprep.subr.mxu0 0.0
        %943 = vmatpush1.msra.mxu0 0.0
        %944 = vmatprep.subr.mxu0 0.0
        %945 = vmatpush1.msra.mxu0 0.0
        %946 = vmatprep.subr.mxu0 0.0
        %947 = vmatpush1.msra.mxu0 0.0
        %948 = vmatprep.subr.mxu0 0.0
        %949 = vmatpush1.msra.mxu0 0.0
        %950 = vmatprep.subr.mxu0 0.0
        %951 = vmatpush1.msra.mxu0 0.0
        %952 = vmatprep.subr.mxu0 0.0
        %953 = vmatpush1.msra.mxu0 0.0
        %954 = vmatprep.subr.mxu0 0.0
        %955 = vmatpush1.msra.mxu0 0.0
        %956 = vmatprep.subr.mxu0 0.0
        %957 = vmatpush1.msra.mxu0 0.0
        %958 = vmatprep.subr.mxu0 0.0
        %959 = vmatpush1.msra.mxu0 0.0
        %960 = vmatprep.subr.mxu0 0.0
        %961 = vmatpush1.msra.mxu0 0.0
        %962 = vmatprep.subr.mxu0 0.0
        %963 = vmatpush1.msra.mxu0 0.0
        %964 = vmatprep.subr.mxu0 0.0
        %965 = vmatpush1.msra.mxu0 0.0
        %966 = vmatprep.subr.mxu0 0.0
        %967 = vmatpush1.msra.mxu0 0.0
        %968 = vmatprep.subr.mxu0 0.0
        %969 = vmatpush1.msra.mxu0 0.0
        %970 = vmatprep.subr.mxu0 0.0
        %971 = vmatpush1.msra.mxu0 0.0
        %972 = vmatprep.subr.mxu0 0.0
        %973 = vmatpush1.msra.mxu0 0.0
        %974 = vmatprep.mubr.f32.mxu0 0.0
        %975 = vmatmul.mubr.f32.gmra.mrb[0].mxu0 %v679
        %v976 = vpop.f32.mrb[0].mxu0
        %v977 = vadd.f32 %v906, %v976
        %v978 = vpop.f32.mrb[0].mxu0
        %v979 = vadd.f32 %v908, %v978
        %980 = vdwg.mxu0
        %981 = vmatprep.subr.mxu0 0.0
        %982 = vmatpush1.msra.mxu0 %v464
        %983 = vmatprep.subr.mxu0 0.0
        %984 = vmatpush1.msra.mxu0 %v469
        %985 = vmatprep.subr.mxu0 0.0
        %986 = vmatpush1.msra.mxu0 %v474
        %987 = vmatprep.subr.mxu0 0.0
        %988 = vmatpush1.msra.mxu0 %v479
        %989 = vmatprep.subr.mxu0 0.0
        %990 = vmatpush1.msra.mxu0 %v484
        %991 = vmatprep.subr.mxu0 0.0
        %992 = vmatpush1.msra.mxu0 %v489
        %993 = vmatprep.subr.mxu0 0.0
        %994 = vmatpush1.msra.mxu0 %v494
        %995 = vmatprep.subr.mxu0 0.0
        %996 = vmatpush1.msra.mxu0 %v499
        %997 = vmatprep.subr.mxu0 0.0
        %998 = vmatpush1.msra.mxu0 %v504
        %999 = vmatprep.subr.mxu0 0.0
        %1000 = vmatpush1.msra.mxu0 %v509
        %1001 = vmatprep.subr.mxu0 0.0
        %1002 = vmatpush1.msra.mxu0 %v514
        %1003 = vmatprep.subr.mxu0 0.0
        %1004 = vmatpush1.msra.mxu0 %v519
        %1005 = vmatprep.subr.mxu0 0.0
        %1006 = vmatpush1.msra.mxu0 %v524
        %1007 = vmatprep.subr.mxu0 0.0
        %1008 = vmatpush1.msra.mxu0 %v529
        %1009 = vmatprep.subr.mxu0 0.0
        %1010 = vmatpush1.msra.mxu0 %v534
        %1011 = vmatprep.subr.mxu0 0.0
        %1012 = vmatpush1.msra.mxu0 %v539
        %1013 = vmatprep.subr.mxu0 0.0
        %1014 = vmatpush1.msra.mxu0 %v544
        %1015 = vmatprep.subr.mxu0 0.0
        %1016 = vmatpush1.msra.mxu0 %v549
        %1017 = vmatprep.subr.mxu0 0.0
        %1018 = vmatpush1.msra.mxu0 %v554
        %1019 = vmatprep.subr.mxu0 0.0
        %1020 = vmatpush1.msra.mxu0 %v559
        %1021 = vmatprep.subr.mxu0 0.0
        %1022 = vmatpush1.msra.mxu0 %v564
        %1023 = vmatprep.subr.mxu0 0.0
        %1024 = vmatpush1.msra.mxu0 %v569
        %1025 = vmatprep.subr.mxu0 0.0
        %1026 = vmatpush1.msra.mxu0 %v574
        %1027 = vmatprep.subr.mxu0 0.0
        %1028 = vmatpush1.msra.mxu0 %v579
        %1029 = vmatprep.subr.mxu0 0.0
        %1030 = vmatpush1.msra.mxu0 %v584
        %1031 = vmatprep.subr.mxu0 0.0
        %1032 = vmatpush1.msra.mxu0 %v589
        %1033 = vmatprep.subr.mxu0 0.0
        %1034 = vmatpush1.msra.mxu0 %v594
        %1035 = vmatprep.subr.mxu0 0.0
        %1036 = vmatpush1.msra.mxu0 %v599
        %1037 = vmatprep.subr.mxu0 0.0
        %1038 = vmatpush1.msra.mxu0 %v604
        %1039 = vmatprep.subr.mxu0 0.0
        %1040 = vmatpush1.msra.mxu0 %v609
        %1041 = vmatprep.subr.mxu0 0.0
        %1042 = vmatpush1.msra.mxu0 %v614
        %1043 = vmatprep.subr.mxu0 0.0
        %1044 = vmatpush1.msra.mxu0 %v619
        %1045 = vmatprep.mubr.f32.mxu0 %v458
        %1046 = vmatmul.mubr.f32.gmra.mrb[0].mxu0 %v457
        %v1047 = vpop.f32.mrb[0].mxu0
        %v1048 = vadd.f32 %v671, %v1047
        %v1049 = vpop.f32.mrb[0].mxu0
        %1050 = vdwg.mxu0
        %1051 = vmatprep.subr.mxu0 0.0
        %1052 = vmatpush1.msra.mxu0 %v624
        %1053 = vmatprep.subr.mxu0 0.0
        %1054 = vmatpush1.msra.mxu0 %v629
        %1055 = vmatprep.subr.mxu0 0.0
        %1056 = vmatpush1.msra.mxu0 %v634
        %1057 = vmatprep.subr.mxu0 0.0
        %1058 = vmatpush1.msra.mxu0 %v639
        %1059 = vmatprep.subr.mxu0 0.0
        %1060 = vmatpush1.msra.mxu0 %v644
        %1061 = vmatprep.subr.mxu0 0.0
        %1062 = vmatpush1.msra.mxu0 %v695
        %1063 = vmatprep.subr.mxu0 0.0
        %1064 = vmatpush1.msra.mxu0 0.0
        %1065 = vmatprep.subr.mxu0 0.0
        %1066 = vmatpush1.msra.mxu0 0.0
        %1067 = vmatprep.subr.mxu0 0.0
        %1068 = vmatpush1.msra.mxu0 0.0
        %1069 = vmatprep.subr.mxu0 0.0
        %1070 = vmatpush1.msra.mxu0 0.0
        %1071 = vmatprep.subr.mxu0 0.0
        %1072 = vmatpush1.msra.mxu0 0.0
        %1073 = vmatprep.subr.mxu0 0.0
        %1074 = vmatpush1.msra.mxu0 0.0
        %1075 = vmatprep.subr.mxu0 0.0
        %1076 = vmatpush1.msra.mxu0 0.0
        %1077 = vmatprep.subr.mxu0 0.0
        %1078 = vmatpush1.msra.mxu0 0.0
        %1079 = vmatprep.subr.mxu0 0.0
        %1080 = vmatpush1.msra.mxu0 0.0
        %1081 = vmatprep.subr.mxu0 0.0
        %1082 = vmatpush1.msra.mxu0 0.0
        %1083 = vmatprep.subr.mxu0 0.0
        %1084 = vmatpush1.msra.mxu0 0.0
        %1085 = vmatprep.subr.mxu0 0.0
        %1086 = vmatpush1.msra.mxu0 0.0
        %1087 = vmatprep.subr.mxu0 0.0
        %1088 = vmatpush1.msra.mxu0 0.0
        %1089 = vmatprep.subr.mxu0 0.0
        %1090 = vmatpush1.msra.mxu0 0.0
        %1091 = vmatprep.subr.mxu0 0.0
        %1092 = vmatpush1.msra.mxu0 0.0
        %1093 = vmatprep.subr.mxu0 0.0
        %1094 = vmatpush1.msra.mxu0 0.0
        %1095 = vmatprep.subr.mxu0 0.0
        %1096 = vmatpush1.msra.mxu0 0.0
        %1097 = vmatprep.subr.mxu0 0.0
        %1098 = vmatpush1.msra.mxu0 0.0
        %1099 = vmatprep.subr.mxu0 0.0
        %1100 = vmatpush1.msra.mxu0 0.0
        %1101 = vmatprep.subr.mxu0 0.0
        %1102 = vmatpush1.msra.mxu0 0.0
        %1103 = vmatprep.subr.mxu0 0.0
        %1104 = vmatpush1.msra.mxu0 0.0
        %1105 = vmatprep.subr.mxu0 0.0
        %1106 = vmatpush1.msra.mxu0 0.0
        %1107 = vmatprep.subr.mxu0 0.0
        %1108 = vmatpush1.msra.mxu0 0.0
        %1109 = vmatprep.subr.mxu0 0.0
        %1110 = vmatpush1.msra.mxu0 0.0
        %1111 = vmatprep.subr.mxu0 0.0
        %1112 = vmatpush1.msra.mxu0 0.0
        %1113 = vmatprep.subr.mxu0 0.0
        %1114 = vmatpush1.msra.mxu0 0.0
        %1115 = vmatprep.mubr.f32.mxu0 0.0
        %1116 = vmatmul.mubr.f32.gmra.mrb[0].mxu0 %v679
        %v1117 = vpop.f32.mrb[0].mxu0
        %v1118 = vadd.f32 %v1048, %v1117
        %v1119 = vpop.f32.mrb[0].mxu0
        %1120 = vdwg.mxu0
        %v1121 = vmax.f32 %v835, 0.0
        %v1122 = vmax.f32 %v837, 0.0
        %v1123 = vmax.f32 %v977, 0.0
        %v1124 = vmax.f32 %v979, 0.0
        %v1125 = vmax.f32 %v1118, 0.0
        %v1126 = vld [vmem:[#allocation8] sm:$0xff]
        %v1127 = vld [vmem:[#allocation8 + $0x8] sm:$0xff]
        %v1128 = vld [vmem:[#allocation8 + $0x10] sm:$0xff]
        %v1129 = vld [vmem:[#allocation8 + $0x18] sm:$0xff]
        %v1130 = vld [vmem:[#allocation8 + $0x20] sm:$0xff]
        %v1131 = vld [vmem:[#allocation8 + $0x28] sm:$0xff]
        %v1132 = vld [vmem:[#allocation8 + $0x30] sm:$0xff]
        %v1133 = vld [vmem:[#allocation8 + $0x38] sm:$0xff]
        %v1134 = vld [vmem:[#allocation8 + $0x40] sm:$0xff]
        %v1135 = vld [vmem:[#allocation8 + $0x48] sm:$0xff]
        %v1136 = vld [vmem:[#allocation8 + $0x50] sm:$0xff]
        %v1137 = vld [vmem:[#allocation8 + $0x58] sm:$0xff]
        %v1138 = vld [vmem:[#allocation8 + $0x60] sm:$0xff]
        %v1139 = vld [vmem:[#allocation8 + $0x68] sm:$0xff]
        %v1140 = vld [vmem:[#allocation8 + $0x70] sm:$0xff]
        %v1141 = vld [vmem:[#allocation8 + $0x78] sm:$0xff]
        %v1142 = vld [vmem:[#allocation8 + $0x80] sm:$0xff]
        %v1143 = vld [vmem:[#allocation8 + $0x88] sm:$0xff]
        %v1144 = vld [vmem:[#allocation8 + $0x90] sm:$0xff]
        %v1145 = vld [vmem:[#allocation8 + $0x98] sm:$0xff]
        %v1146 = vld [vmem:[#allocation8 + $0xa0] sm:$0xff]
        %v1147 = vld [vmem:[#allocation8 + $0xa8] sm:$0xff]
        %v1148 = vld [vmem:[#allocation8 + $0xb0] sm:$0xff]
        %v1149 = vld [vmem:[#allocation8 + $0xb8] sm:$0xff]
        %v1150 = vld [vmem:[#allocation8 + $0xc0] sm:$0xff]
        %v1151 = vld [vmem:[#allocation8 + $0xc8] sm:$0xff]
        %v1152 = vld [vmem:[#allocation8 + $0xd0] sm:$0xff]
        %v1153 = vld [vmem:[#allocation8 + $0xd8] sm:$0xff]
        %v1154 = vld [vmem:[#allocation8 + $0xe0] sm:$0xff]
        %v1155 = vld [vmem:[#allocation8 + $0xe8] sm:$0xff]
        %v1156 = vld [vmem:[#allocation8 + $0xf0] sm:$0xff]
        %v1157 = vld [vmem:[#allocation8 + $0xf8] sm:$0xff]
        %v1158 = vld [vmem:[#allocation8 + $0x100] sm:$0xff]
        %v1159 = vld [vmem:[#allocation8 + $0x108] sm:$0xff]
        %v1160 = vld [vmem:[#allocation8 + $0x110] sm:$0xff]
        %v1161 = vld [vmem:[#allocation8 + $0x118] sm:$0xff]
        %v1162 = vld [vmem:[#allocation8 + $0x120] sm:$0xff]
        %v1163 = vld [vmem:[#allocation8 + $0x128] sm:$0xff]
        %v1164 = vld [vmem:[#allocation8 + $0x130] sm:$0xff]
        %v1165 = vld [vmem:[#allocation8 + $0x138] sm:$0xff]
        %v1166 = vld [vmem:[#allocation8 + $0x140] sm:$0xff]
        %v1167 = vld [vmem:[#allocation8 + $0x148] sm:$0xff]
        %v1168 = vld [vmem:[#allocation8 + $0x150] sm:$0xff]
        %v1169 = vld [vmem:[#allocation8 + $0x158] sm:$0xff]
        %v1170 = vld [vmem:[#allocation8 + $0x160] sm:$0xff]
        %v1171 = vld [vmem:[#allocation8 + $0x168] sm:$0xff]
        %v1172 = vld [vmem:[#allocation8 + $0x170] sm:$0xff]
        %v1173 = vld [vmem:[#allocation8 + $0x178] sm:$0xff]
        %v1174 = vld [vmem:[#allocation8 + $0x180] sm:$0xff]
        %v1175 = vld [vmem:[#allocation8 + $0x188] sm:$0xff]
        %v1176 = vld [vmem:[#allocation8 + $0x190] sm:$0xff]
        %v1177 = vld [vmem:[#allocation8 + $0x198] sm:$0xff]
        %v1178 = vld [vmem:[#allocation8 + $0x1a0] sm:$0xff]
        %v1179 = vld [vmem:[#allocation8 + $0x1a8] sm:$0xff]
        %v1180 = vld [vmem:[#allocation8 + $0x1b0] sm:$0xff]
        %v1181 = vld [vmem:[#allocation8 + $0x1b8] sm:$0xff]
        %v1182 = vld [vmem:[#allocation8 + $0x1c0] sm:$0xff]
        %v1183 = vld [vmem:[#allocation8 + $0x1c8] sm:$0xff]
        %v1184 = vld [vmem:[#allocation8 + $0x1d0] sm:$0xff]
        %v1185 = vld [vmem:[#allocation8 + $0x1d8] sm:$0xff]
        %v1186 = vld [vmem:[#allocation8 + $0x1e0] sm:$0xff]
        %v1187 = vld [vmem:[#allocation8 + $0x1e8] sm:$0xff]
        %v1188 = vld [vmem:[#allocation8 + $0x1f0] sm:$0xff]
        %v1189 = vld [vmem:[#allocation8 + $0x1f8] sm:$0xff]
        %v1190 = vld [vmem:[#allocation8 + $0x200] sm:$0xff]
        %v1191 = vld [vmem:[#allocation8 + $0x208] sm:$0xff]
        %v1192 = vld [vmem:[#allocation8 + $0x210] sm:$0xff]
        %v1193 = vld [vmem:[#allocation8 + $0x218] sm:$0xff]
        %v1194 = vld [vmem:[#allocation8 + $0x220] sm:$0xff]
        %v1195 = vld [vmem:[#allocation8 + $0x228] sm:$0xff]
        %v1196 = vld [vmem:[#allocation8 + $0x230] sm:$0xff]
        %v1197 = vld [vmem:[#allocation8 + $0x238] sm:$0xff]
        %v1198 = vld [vmem:[#allocation8 + $0x240] sm:$0xff]
        %v1199 = vld [vmem:[#allocation8 + $0x248] sm:$0xff]
        %v1200 = vld [vmem:[#allocation8 + $0x250] sm:$0xff]
        %v1201 = vld [vmem:[#allocation8 + $0x258] sm:$0xff]
        %v1202 = vld [vmem:[#allocation8 + $0x260] sm:$0xff]
        %v1203 = vld [vmem:[#allocation8 + $0x268] sm:$0xff]
        %v1204 = vld [vmem:[#allocation8 + $0x270] sm:$0xff]
        %v1205 = vld [vmem:[#allocation8 + $0x278] sm:$0xff]
        %v1206 = vld [vmem:[#allocation8 + $0x280] sm:$0xff]
        %v1207 = vld [vmem:[#allocation8 + $0x288] sm:$0xff]
        %v1208 = vld [vmem:[#allocation8 + $0x290] sm:$0xff]
        %v1209 = vld [vmem:[#allocation8 + $0x298] sm:$0xff]
        %v1210 = vld [vmem:[#allocation8 + $0x2a0] sm:$0xff]
        %v1211 = vld [vmem:[#allocation8 + $0x2a8] sm:$0xff]
        %v1212 = vld [vmem:[#allocation8 + $0x2b0] sm:$0xff]
        %v1213 = vld [vmem:[#allocation8 + $0x2b8] sm:$0xff]
        %v1214 = vld [vmem:[#allocation8 + $0x2c0] sm:$0xff]
        %v1215 = vld [vmem:[#allocation8 + $0x2c8] sm:$0xff]
        %v1216 = vld [vmem:[#allocation8 + $0x2d0] sm:$0xff]
        %v1217 = vld [vmem:[#allocation8 + $0x2d8] sm:$0xff]
        %v1218 = vld [vmem:[#allocation8 + $0x2e0] sm:$0xff]
        %v1219 = vld [vmem:[#allocation8 + $0x2e8] sm:$0xff]
        %v1220 = vld [vmem:[#allocation8 + $0x2f0] sm:$0xff]
        %v1221 = vld [vmem:[#allocation8 + $0x2f8] sm:$0xff]
        %v1222 = vld [vmem:[#allocation8 + $0x300] sm:$0xff]
        %v1223 = vld [vmem:[#allocation8 + $0x308] sm:$0xff]
        %v1224 = vld [vmem:[#allocation8 + $0x310] sm:$0xff]
        %v1225 = vld [vmem:[#allocation8 + $0x318] sm:$0xff]
        %v1226 = vld [vmem:[#allocation8 + $0x320] sm:$0xff]
        %v1227 = vld [vmem:[#allocation8 + $0x328] sm:$0xff]
        %v1228 = vld [vmem:[#allocation8 + $0x330] sm:$0xff]
        %v1229 = vld [vmem:[#allocation8 + $0x338] sm:$0xff]
        %v1230 = vld [vmem:[#allocation8 + $0x340] sm:$0xff]
        %v1231 = vld [vmem:[#allocation8 + $0x348] sm:$0xff]
        %v1232 = vld [vmem:[#allocation8 + $0x350] sm:$0xff]
        %v1233 = vld [vmem:[#allocation8 + $0x358] sm:$0xff]
        %v1234 = vld [vmem:[#allocation8 + $0x360] sm:$0xff]
        %v1235 = vld [vmem:[#allocation8 + $0x368] sm:$0xff]
        %v1236 = vld [vmem:[#allocation8 + $0x370] sm:$0xff]
        %v1237 = vld [vmem:[#allocation8 + $0x378] sm:$0xff]
        %v1238 = vld [vmem:[#allocation8 + $0x380] sm:$0xff]
        %v1239 = vld [vmem:[#allocation8 + $0x388] sm:$0xff]
        %v1240 = vld [vmem:[#allocation8 + $0x390] sm:$0xff]
        %v1241 = vld [vmem:[#allocation8 + $0x398] sm:$0xff]
        %v1242 = vld [vmem:[#allocation8 + $0x3a0] sm:$0xff]
        %v1243 = vld [vmem:[#allocation8 + $0x3a8] sm:$0xff]
        %v1244 = vld [vmem:[#allocation8 + $0x3b0] sm:$0xff]
        %v1245 = vld [vmem:[#allocation8 + $0x3b8] sm:$0xff]
        %v1246 = vld [vmem:[#allocation8 + $0x3c0] sm:$0xff]
        %v1247 = vld [vmem:[#allocation8 + $0x3c8] sm:$0xff]
        %v1248 = vld [vmem:[#allocation8 + $0x3d0] sm:$0xff]
        %v1249 = vld [vmem:[#allocation8 + $0x3d8] sm:$0xff]
        %v1250 = vld [vmem:[#allocation8 + $0x3e0] sm:$0xff]
        %v1251 = vld [vmem:[#allocation8 + $0x3e8] sm:$0xff]
        %v1252 = vld [vmem:[#allocation8 + $0x3f0] sm:$0xff]
        %v1253 = vld [vmem:[#allocation8 + $0x3f8] sm:$0xff]
        %v1254 = vld [vmem:[#allocation8 + $0x400] sm:$0xff]
        %v1255 = vld [vmem:[#allocation8 + $0x408] sm:$0xff]
        %v1256 = vld [vmem:[#allocation8 + $0x410] sm:$0xff]
        %v1257 = vld [vmem:[#allocation8 + $0x418] sm:$0xff]
        %v1258 = vld [vmem:[#allocation8 + $0x420] sm:$0xff]
        %v1259 = vld [vmem:[#allocation8 + $0x428] sm:$0xff]
        %v1260 = vld [vmem:[#allocation8 + $0x430] sm:$0xff]
        %v1261 = vld [vmem:[#allocation8 + $0x438] sm:$0xff]
        %v1262 = vld [vmem:[#allocation8 + $0x440] sm:$0xff]
        %v1263 = vld [vmem:[#allocation8 + $0x448] sm:$0xff]
        %v1264 = vld [vmem:[#allocation8 + $0x450] sm:$0xff]
        %v1265 = vld [vmem:[#allocation8 + $0x458] sm:$0xff]
        %v1266 = vld [vmem:[#allocation8 + $0x460] sm:$0xff]
        %v1267 = vld [vmem:[#allocation8 + $0x468] sm:$0xff]
        %v1268 = vld [vmem:[#allocation8 + $0x470] sm:$0xff]
        %v1269 = vld [vmem:[#allocation8 + $0x478] sm:$0xff]
        %v1270 = vld [vmem:[#allocation8 + $0x480] sm:$0xff]
        %v1271 = vld [vmem:[#allocation8 + $0x488] sm:$0xff]
        %v1272 = vld [vmem:[#allocation8 + $0x490] sm:$0xff]
        %v1273 = vld [vmem:[#allocation8 + $0x498] sm:$0xff]
        %v1274 = vld [vmem:[#allocation8 + $0x4a0] sm:$0xff]
        %v1275 = vld [vmem:[#allocation8 + $0x4a8] sm:$0xff]
        %v1276 = vld [vmem:[#allocation8 + $0x4b0] sm:$0xff]
        %v1277 = vld [vmem:[#allocation8 + $0x4b8] sm:$0xff]
        %v1278 = vld [vmem:[#allocation8 + $0x4c0] sm:$0xff]
        %v1279 = vld [vmem:[#allocation8 + $0x4c8] sm:$0xff]
        %v1280 = vld [vmem:[#allocation8 + $0x4d0] sm:$0xff]
        %v1281 = vld [vmem:[#allocation8 + $0x4d8] sm:$0xff]
        %v1282 = vld [vmem:[#allocation8 + $0x4e0] sm:$0xff]
        %v1283 = vld [vmem:[#allocation8 + $0x4e8] sm:$0xff]
        %v1284 = vld [vmem:[#allocation8 + $0x4f0] sm:$0xff]
        %v1285 = vld [vmem:[#allocation8 + $0x4f8] sm:$0xff]
        %v1286 = vld [vmem:[#allocation8 + $0x500] sm:$0xff]
        %v1287 = vld [vmem:[#allocation8 + $0x508] sm:$0xff]
        %v1288 = vld [vmem:[#allocation8 + $0x510] sm:$0xff]
        %v1289 = vld [vmem:[#allocation8 + $0x518] sm:$0xff]
        %v1290 = vld [vmem:[#allocation8 + $0x520] sm:$0xff]
        %v1291 = vld [vmem:[#allocation8 + $0x528] sm:$0xff]
        %v1292 = vld [vmem:[#allocation8 + $0x530] sm:$0xff]
        %v1293 = vld [vmem:[#allocation8 + $0x538] sm:$0xff]
        %v1294 = vld [vmem:[#allocation8 + $0x540] sm:$0xff]
        %v1295 = vld [vmem:[#allocation8 + $0x548] sm:$0xff]
        %v1296 = vld [vmem:[#allocation8 + $0x550] sm:$0xff]
        %v1297 = vld [vmem:[#allocation8 + $0x558] sm:$0xff]
        %v1298 = vld [vmem:[#allocation8 + $0x560] sm:$0xff]
        %v1299 = vld [vmem:[#allocation8 + $0x568] sm:$0xff]
        %v1300 = vld [vmem:[#allocation8 + $0x570] sm:$0xff]
        %v1301 = vld [vmem:[#allocation8 + $0x578] sm:$0xff]
        %v1302 = vld [vmem:[#allocation8 + $0x580] sm:$0xff]
        %v1303 = vld [vmem:[#allocation8 + $0x588] sm:$0xff]
        %v1304 = vld [vmem:[#allocation8 + $0x590] sm:$0xff]
        %v1305 = vld [vmem:[#allocation8 + $0x598] sm:$0xff]
        %v1306 = vld [vmem:[#allocation8 + $0x5a0] sm:$0xff]
        %v1307 = vld [vmem:[#allocation8 + $0x5a8] sm:$0xff]
        %v1308 = vld [vmem:[#allocation8 + $0x5b0] sm:$0xff]
        %v1309 = vld [vmem:[#allocation8 + $0x5b8] sm:$0xff]
        %v1310 = vld [vmem:[#allocation8 + $0x5c0] sm:$0xff]
        %v1311 = vld [vmem:[#allocation8 + $0x5c8] sm:$0xff]
        %v1312 = vld [vmem:[#allocation8 + $0x5d0] sm:$0xff]
        %v1313 = vld [vmem:[#allocation8 + $0x5d8] sm:$0xff]
        %v1314 = vld [vmem:[#allocation8 + $0x5e0] sm:$0xff]
        %v1315 = vld [vmem:[#allocation8 + $0x5e8] sm:$0xff]
        %v1316 = vld [vmem:[#allocation8 + $0x5f0] sm:$0xff]
        %v1317 = vld [vmem:[#allocation8 + $0x5f8] sm:$0xff]
        %v1318 = vld [vmem:[#allocation8 + $0x600] sm:$0xff]
        %v1319 = vld [vmem:[#allocation8 + $0x608] sm:$0xff]
        %v1320 = vld [vmem:[#allocation8 + $0x610] sm:$0xff]
        %v1321 = vld [vmem:[#allocation8 + $0x618] sm:$0xff]
        %v1322 = vld [vmem:[#allocation8 + $0x620] sm:$0xff]
        %v1323 = vld [vmem:[#allocation8 + $0x628] sm:$0xff]
        %v1324 = vld [vmem:[#allocation8 + $0x630] sm:$0xff]
        %v1325 = vld [vmem:[#allocation8 + $0x638] sm:$0xff]
        %v1326 = vld [vmem:[#allocation8 + $0x640] sm:$0xff]
        %v1327 = vld [vmem:[#allocation8 + $0x648] sm:$0xff]
        %v1328 = vld [vmem:[#allocation8 + $0x650] sm:$0xff]
        %v1329 = vld [vmem:[#allocation8 + $0x658] sm:$0xff]
        %v1330 = vld [vmem:[#allocation8 + $0x660] sm:$0xff]
        %v1331 = vld [vmem:[#allocation8 + $0x668] sm:$0xff]
        %v1332 = vld [vmem:[#allocation8 + $0x670] sm:$0xff]
        %v1333 = vld [vmem:[#allocation8 + $0x678] sm:$0xff]
        %v1334 = vld [vmem:[#allocation8 + $0x680] sm:$0xff]
        %v1335 = vld [vmem:[#allocation8 + $0x688] sm:$0xff]
        %v1336 = vld [vmem:[#allocation8 + $0x690] sm:$0xff]
        %v1337 = vld [vmem:[#allocation8 + $0x698] sm:$0xff]
        %v1338 = vld [vmem:[#allocation8 + $0x6a0] sm:$0xff]
        %v1339 = vld [vmem:[#allocation8 + $0x6a8] sm:$0xff]
        %v1340 = vld [vmem:[#allocation8 + $0x6b0] sm:$0xff]
        %v1341 = vld [vmem:[#allocation8 + $0x6b8] sm:$0xff]
        %v1342 = vld [vmem:[#allocation8 + $0x6c0] sm:$0xff]
        %v1343 = vld [vmem:[#allocation8 + $0x6c8] sm:$0xff]
        %v1344 = vld [vmem:[#allocation8 + $0x6d0] sm:$0xff]
        %v1345 = vld [vmem:[#allocation8 + $0x6d8] sm:$0xff]
        %v1346 = vld [vmem:[#allocation8 + $0x6e0] sm:$0xff]
        %v1347 = vld [vmem:[#allocation8 + $0x6e8] sm:$0xff]
        %v1348 = vld [vmem:[#allocation8 + $0x6f0] sm:$0xff]
        %v1349 = vld [vmem:[#allocation8 + $0x6f8] sm:$0xff]
        %v1350 = vld [vmem:[#allocation8 + $0x700] sm:$0xff]
        %v1351 = vld [vmem:[#allocation8 + $0x708] sm:$0xff]
        %v1352 = vld [vmem:[#allocation8 + $0x710] sm:$0xff]
        %v1353 = vld [vmem:[#allocation8 + $0x718] sm:$0xff]
        %v1354 = vld [vmem:[#allocation8 + $0x720] sm:$0xff]
        %v1355 = vld [vmem:[#allocation8 + $0x728] sm:$0xff]
        %v1356 = vld [vmem:[#allocation8 + $0x730] sm:$0xff]
        %v1357 = vld [vmem:[#allocation8 + $0x738] sm:$0xff]
        %v1358 = vld [vmem:[#allocation8 + $0x740] sm:$0xff]
        %v1359 = vld [vmem:[#allocation8 + $0x748] sm:$0xff]
        %v1360 = vld [vmem:[#allocation8 + $0x750] sm:$0xff]
        %v1361 = vld [vmem:[#allocation8 + $0x758] sm:$0xff]
        %v1362 = vld [vmem:[#allocation8 + $0x760] sm:$0xff]
        %v1363 = vld [vmem:[#allocation8 + $0x768] sm:$0xff]
        %v1364 = vld [vmem:[#allocation8 + $0x770] sm:$0xff]
        %v1365 = vld [vmem:[#allocation8 + $0x778] sm:$0xff]
        %v1366 = vld [vmem:[#allocation8 + $0x780] sm:$0xff]
        %v1367 = vld [vmem:[#allocation8 + $0x788] sm:$0xff]
        %v1368 = vld [vmem:[#allocation8 + $0x790] sm:$0xff]
        %v1369 = vld [vmem:[#allocation8 + $0x798] sm:$0xff]
        %v1370 = vld [vmem:[#allocation8 + $0x7a0] sm:$0xff]
        %v1371 = vld [vmem:[#allocation8 + $0x7a8] sm:$0xff]
        %v1372 = vld [vmem:[#allocation8 + $0x7b0] sm:$0xff]
        %v1373 = vld [vmem:[#allocation8 + $0x7b8] sm:$0xff]
        %v1374 = vld [vmem:[#allocation8 + $0x7c0] sm:$0xff]
        %v1375 = vld [vmem:[#allocation8 + $0x7c8] sm:$0xff]
        %v1376 = vld [vmem:[#allocation8 + $0x7d0] sm:$0xff]
        %v1377 = vld [vmem:[#allocation8 + $0x7d8] sm:$0xff]
        %v1378 = vld [vmem:[#allocation8 + $0x7e0] sm:$0xff]
        %v1379 = vld [vmem:[#allocation8 + $0x7e8] sm:$0xff]
        %v1380 = vld [vmem:[#allocation8 + $0x7f0] sm:$0xff]
        %v1381 = vld [vmem:[#allocation8 + $0x7f8] sm:$0xff]
        %v1382 = vld [vmem:[#allocation8 + $0x800] sm:$0xff]
        %v1383 = vld [vmem:[#allocation8 + $0x808] sm:$0xff]
        %v1384 = vld [vmem:[#allocation8 + $0x810] sm:$0xff]
        %v1385 = vld [vmem:[#allocation8 + $0x818] sm:$0xff]
        %v1386 = vld [vmem:[#allocation8 + $0x820] sm:$0xff]
        %v1387 = vld [vmem:[#allocation8 + $0x828] sm:$0xff]
        %v1388 = vld [vmem:[#allocation8 + $0x830] sm:$0xff]
        %v1389 = vld [vmem:[#allocation8 + $0x838] sm:$0xff]
        %v1390 = vld [vmem:[#allocation8 + $0x840] sm:$0xff]
        %v1391 = vld [vmem:[#allocation8 + $0x848] sm:$0xff]
        %v1392 = vld [vmem:[#allocation8 + $0x850] sm:$0xff]
        %v1393 = vld [vmem:[#allocation8 + $0x858] sm:$0xff]
        %v1394 = vld [vmem:[#allocation8 + $0x860] sm:$0xff]
        %v1395 = vld [vmem:[#allocation8 + $0x868] sm:$0xff]
        %v1396 = vld [vmem:[#allocation8 + $0x870] sm:$0xff]
        %v1397 = vld [vmem:[#allocation8 + $0x878] sm:$0xff]
        %v1398 = vld [vmem:[#allocation8 + $0x880] sm:$0xff]
        %v1399 = vld [vmem:[#allocation8 + $0x888] sm:$0xff]
        %v1400 = vld [vmem:[#allocation8 + $0x890] sm:$0xff]
        %v1401 = vld [vmem:[#allocation8 + $0x898] sm:$0xff]
        %v1402 = vld [vmem:[#allocation8 + $0x8a0] sm:$0xff]
        %v1403 = vld [vmem:[#allocation8 + $0x8a8] sm:$0xff]
        %v1404 = vld [vmem:[#allocation8 + $0x8b0] sm:$0xff]
        %v1405 = vld [vmem:[#allocation8 + $0x8b8] sm:$0xff]
        %v1406 = vld [vmem:[#allocation8 + $0x8c0] sm:$0xff]
        %v1407 = vld [vmem:[#allocation8 + $0x8c8] sm:$0xff]
        %v1408 = vld [vmem:[#allocation8 + $0x8d0] sm:$0xff]
        %v1409 = vld [vmem:[#allocation8 + $0x8d8] sm:$0xff]
        %v1410 = vld [vmem:[#allocation8 + $0x8e0] sm:$0xff]
        %v1411 = vld [vmem:[#allocation8 + $0x8e8] sm:$0xff]
        %v1412 = vld [vmem:[#allocation8 + $0x8f0] sm:$0xff]
        %v1413 = vld [vmem:[#allocation8 + $0x8f8] sm:$0xff]
        %v1414 = vld [vmem:[#allocation8 + $0x900] sm:$0xff]
        %v1415 = vld [vmem:[#allocation8 + $0x908] sm:$0xff]
        %v1416 = vld [vmem:[#allocation8 + $0x910] sm:$0xff]
        %v1417 = vld [vmem:[#allocation8 + $0x918] sm:$0xff]
        %v1418 = vld [vmem:[#allocation8 + $0x920] sm:$0xff]
        %v1419 = vld [vmem:[#allocation8 + $0x928] sm:$0xff]
        %v1420 = vld [vmem:[#allocation8 + $0x930] sm:$0xff]
        %v1421 = vld [vmem:[#allocation8 + $0x938] sm:$0xff]
        %v1422 = vld [vmem:[#allocation8 + $0x940] sm:$0xff]
        %v1423 = vld [vmem:[#allocation8 + $0x948] sm:$0xff]
        %v1424 = vld [vmem:[#allocation8 + $0x950] sm:$0xff]
        %v1425 = vld [vmem:[#allocation8 + $0x958] sm:$0xff]
        %v1426 = vld [vmem:[#allocation8 + $0x960] sm:$0xff]
        %v1427 = vld [vmem:[#allocation8 + $0x968] sm:$0xff]
        %v1428 = vld [vmem:[#allocation8 + $0x970] sm:$0xff]
        %v1429 = vld [vmem:[#allocation8 + $0x978] sm:$0xff]
        %v1430 = vld [vmem:[#allocation8 + $0x980] sm:$0xff]
        %v1431 = vld [vmem:[#allocation8 + $0x988] sm:$0xff]
        %v1432 = vld [vmem:[#allocation8 + $0x990] sm:$0xff]
        %v1433 = vld [vmem:[#allocation8 + $0x998] sm:$0xff]
        %v1434 = vld [vmem:[#allocation8 + $0x9a0] sm:$0xff]
        %v1435 = vld [vmem:[#allocation8 + $0x9a8] sm:$0xff]
        %v1436 = vld [vmem:[#allocation8 + $0x9b0] sm:$0xff]
        %v1437 = vld [vmem:[#allocation8 + $0x9b8] sm:$0xff]
        %v1438 = vld [vmem:[#allocation8 + $0x9c0] sm:$0xff]
        %v1439 = vld [vmem:[#allocation8 + $0x9c8] sm:$0xff]
        %v1440 = vld [vmem:[#allocation8 + $0x9d0] sm:$0xff]
        %v1441 = vld [vmem:[#allocation8 + $0x9d8] sm:$0xff]
        %v1442 = vld [vmem:[#allocation8 + $0x9e0] sm:$0xff]
        %v1443 = vld [vmem:[#allocation8 + $0x9e8] sm:$0xff]
        %v1444 = vld [vmem:[#allocation8 + $0x9f0] sm:$0xff]
        %v1445 = vld [vmem:[#allocation8 + $0x9f8] sm:$0xff]
        %v1446 = vld [vmem:[#allocation10] sm:$0xf]
        %v1448 = vlaneseq
        %v1449 = vshrl.u32 %v1448, 7
        %v1450 = vsub.s32 0, %v1449
        %v1451 = vrot.slane %v1446, %v1450
        %v1452 = vlaneseq
        %v1453 = vshrl.u32 %v1452, 7
        %v1454 = vsub.s32 1, %v1453
        %v1455 = vrot.slane %v1446, %v1454
        %v1456 = vlaneseq
        %v1457 = vshrl.u32 %v1456, 7
        %v1458 = vsub.s32 2, %v1457
        %v1459 = vrot.slane %v1446, %v1458
        %v1460 = vlaneseq
        %v1461 = vshrl.u32 %v1460, 7
        %v1462 = vsub.s32 3, %v1461
        %v1463 = vrot.slane %v1446, %v1462
        %1468 = vmatprep.subr.mxu0 %v1127
        %1469 = vmatpush1.msra.mxu0 %v1126
        %1470 = vmatprep.subr.mxu0 %v1131
        %1471 = vmatpush1.msra.mxu0 %v1130
        %1472 = vmatprep.subr.mxu0 %v1135
        %1473 = vmatpush1.msra.mxu0 %v1134
        %1474 = vmatprep.subr.mxu0 %v1139
        %1475 = vmatpush1.msra.mxu0 %v1138
        %1476 = vmatprep.subr.mxu0 %v1143
        %1477 = vmatpush1.msra.mxu0 %v1142
        %1478 = vmatprep.subr.mxu0 %v1147
        %1479 = vmatpush1.msra.mxu0 %v1146
        %1480 = vmatprep.subr.mxu0 %v1151
        %1481 = vmatpush1.msra.mxu0 %v1150
        %1482 = vmatprep.subr.mxu0 %v1155
        %1483 = vmatpush1.msra.mxu0 %v1154
        %1484 = vmatprep.subr.mxu0 %v1159
        %1485 = vmatpush1.msra.mxu0 %v1158
        %1486 = vmatprep.subr.mxu0 %v1163
        %1487 = vmatpush1.msra.mxu0 %v1162
        %1488 = vmatprep.subr.mxu0 %v1167
        %1489 = vmatpush1.msra.mxu0 %v1166
        %1490 = vmatprep.subr.mxu0 %v1171
        %1491 = vmatpush1.msra.mxu0 %v1170
        %1492 = vmatprep.subr.mxu0 %v1175
        %1493 = vmatpush1.msra.mxu0 %v1174
        %1494 = vmatprep.subr.mxu0 %v1179
        %1495 = vmatpush1.msra.mxu0 %v1178
        %1496 = vmatprep.subr.mxu0 %v1183
        %1497 = vmatpush1.msra.mxu0 %v1182
        %1498 = vmatprep.subr.mxu0 %v1187
        %1499 = vmatpush1.msra.mxu0 %v1186
        %1500 = vmatprep.subr.mxu0 %v1191
        %1501 = vmatpush1.msra.mxu0 %v1190
        %1502 = vmatprep.subr.mxu0 %v1195
        %1503 = vmatpush1.msra.mxu0 %v1194
        %1504 = vmatprep.subr.mxu0 %v1199
        %1505 = vmatpush1.msra.mxu0 %v1198
        %1506 = vmatprep.subr.mxu0 %v1203
        %1507 = vmatpush1.msra.mxu0 %v1202
        %1508 = vmatprep.subr.mxu0 %v1207
        %1509 = vmatpush1.msra.mxu0 %v1206
        %1510 = vmatprep.subr.mxu0 %v1211
        %1511 = vmatpush1.msra.mxu0 %v1210
        %1512 = vmatprep.subr.mxu0 %v1215
        %1513 = vmatpush1.msra.mxu0 %v1214
        %1514 = vmatprep.subr.mxu0 %v1219
        %1515 = vmatpush1.msra.mxu0 %v1218
        %1516 = vmatprep.subr.mxu0 %v1223
        %1517 = vmatpush1.msra.mxu0 %v1222
        %1518 = vmatprep.subr.mxu0 %v1227
        %1519 = vmatpush1.msra.mxu0 %v1226
        %1520 = vmatprep.subr.mxu0 %v1231
        %1521 = vmatpush1.msra.mxu0 %v1230
        %1522 = vmatprep.subr.mxu0 %v1235
        %1523 = vmatpush1.msra.mxu0 %v1234
        %1524 = vmatprep.subr.mxu0 %v1239
        %1525 = vmatpush1.msra.mxu0 %v1238
        %1526 = vmatprep.subr.mxu0 %v1243
        %1527 = vmatpush1.msra.mxu0 %v1242
        %1528 = vmatprep.subr.mxu0 %v1247
        %1529 = vmatpush1.msra.mxu0 %v1246
        %1530 = vmatprep.subr.mxu0 %v1251
        %1531 = vmatpush1.msra.mxu0 %v1250
        %1532 = vmatprep.mubr.f32.mxu0 %v1122
        %1533 = vmatmul.mubr.f32.gmra.mrb[0].mxu0 %v1121
        %v1534 = vpop.f32.mrb[0].mxu0
        %v1535 = vadd.f32 %v1451, %v1534
        %v1536 = vpop.f32.mrb[0].mxu0
        %v1537 = vadd.f32 %v1455, %v1536
        %1538 = vdwg.mxu0
        %1539 = vmatprep.subr.mxu0 %v1255
        %1540 = vmatpush1.msra.mxu0 %v1254
        %1541 = vmatprep.subr.mxu0 %v1259
        %1542 = vmatpush1.msra.mxu0 %v1258
        %1543 = vmatprep.subr.mxu0 %v1263
        %1544 = vmatpush1.msra.mxu0 %v1262
        %1545 = vmatprep.subr.mxu0 %v1267
        %1546 = vmatpush1.msra.mxu0 %v1266
        %1547 = vmatprep.subr.mxu0 %v1271
        %1548 = vmatpush1.msra.mxu0 %v1270
        %1549 = vmatprep.subr.mxu0 %v1275
        %1550 = vmatpush1.msra.mxu0 %v1274
        %1551 = vmatprep.subr.mxu0 %v1279
        %1552 = vmatpush1.msra.mxu0 %v1278
        %1553 = vmatprep.subr.mxu0 %v1283
        %1554 = vmatpush1.msra.mxu0 %v1282
        %1555 = vmatprep.subr.mxu0 %v1287
        %1556 = vmatpush1.msra.mxu0 %v1286
        %1557 = vmatprep.subr.mxu0 %v1291
        %1558 = vmatpush1.msra.mxu0 %v1290
        %1559 = vmatprep.subr.mxu0 %v1295
        %1560 = vmatpush1.msra.mxu0 %v1294
        %1561 = vmatprep.subr.mxu0 %v1299
        %1562 = vmatpush1.msra.mxu0 %v1298
        %1563 = vmatprep.subr.mxu0 %v1303
        %1564 = vmatpush1.msra.mxu0 %v1302
        %1565 = vmatprep.subr.mxu0 %v1307
        %1566 = vmatpush1.msra.mxu0 %v1306
        %1567 = vmatprep.subr.mxu0 %v1311
        %1568 = vmatpush1.msra.mxu0 %v1310
        %1569 = vmatprep.subr.mxu0 %v1315
        %1570 = vmatpush1.msra.mxu0 %v1314
        %1571 = vmatprep.subr.mxu0 %v1319
        %1572 = vmatpush1.msra.mxu0 %v1318
        %1573 = vmatprep.subr.mxu0 %v1323
        %1574 = vmatpush1.msra.mxu0 %v1322
        %1575 = vmatprep.subr.mxu0 %v1327
        %1576 = vmatpush1.msra.mxu0 %v1326
        %1577 = vmatprep.subr.mxu0 %v1331
        %1578 = vmatpush1.msra.mxu0 %v1330
        %1579 = vmatprep.subr.mxu0 %v1335
        %1580 = vmatpush1.msra.mxu0 %v1334
        %1581 = vmatprep.subr.mxu0 %v1339
        %1582 = vmatpush1.msra.mxu0 %v1338
        %1583 = vmatprep.subr.mxu0 %v1343
        %1584 = vmatpush1.msra.mxu0 %v1342
        %1585 = vmatprep.subr.mxu0 %v1347
        %1586 = vmatpush1.msra.mxu0 %v1346
        %1587 = vmatprep.subr.mxu0 %v1351
        %1588 = vmatpush1.msra.mxu0 %v1350
        %1589 = vmatprep.subr.mxu0 %v1355
        %1590 = vmatpush1.msra.mxu0 %v1354
        %1591 = vmatprep.subr.mxu0 %v1359
        %1592 = vmatpush1.msra.mxu0 %v1358
        %1593 = vmatprep.subr.mxu0 %v1363
        %1594 = vmatpush1.msra.mxu0 %v1362
        %1595 = vmatprep.subr.mxu0 %v1367
        %1596 = vmatpush1.msra.mxu0 %v1366
        %1597 = vmatprep.subr.mxu0 %v1371
        %1598 = vmatpush1.msra.mxu0 %v1370
        %1599 = vmatprep.subr.mxu0 %v1375
        %1600 = vmatpush1.msra.mxu0 %v1374
        %1601 = vmatprep.subr.mxu0 %v1379
        %1602 = vmatpush1.msra.mxu0 %v1378
        %1603 = vmatprep.mubr.f32.mxu0 %v1124
        %1604 = vmatmul.mubr.f32.gmra.mrb[0].mxu0 %v1123
        %v1605 = vpop.f32.mrb[0].mxu0
        %v1606 = vadd.f32 %v1535, %v1605
        %v1607 = vpop.f32.mrb[0].mxu0
        %v1608 = vadd.f32 %v1537, %v1607
        %1609 = vdwg.mxu0
        %1610 = vmatprep.subr.mxu0 %v1383
        %1611 = vmatpush1.msra.mxu0 %v1382
        %1612 = vmatprep.subr.mxu0 %v1387
        %1613 = vmatpush1.msra.mxu0 %v1386
        %1614 = vmatprep.subr.mxu0 %v1391
        %1615 = vmatpush1.msra.mxu0 %v1390
        %1616 = vmatprep.subr.mxu0 %v1395
        %1617 = vmatpush1.msra.mxu0 %v1394
        %1618 = vmatprep.subr.mxu0 %v1399
        %1619 = vmatpush1.msra.mxu0 %v1398
        %1620 = vmatprep.subr.mxu0 %v1403
        %1621 = vmatpush1.msra.mxu0 %v1402
        %1622 = vmatprep.subr.mxu0 %v1407
        %1623 = vmatpush1.msra.mxu0 %v1406
        %1624 = vmatprep.subr.mxu0 %v1411
        %1625 = vmatpush1.msra.mxu0 %v1410
        %1626 = vmatprep.subr.mxu0 %v1415
        %1627 = vmatpush1.msra.mxu0 %v1414
        %1628 = vmatprep.subr.mxu0 %v1419
        %1629 = vmatpush1.msra.mxu0 %v1418
        %1630 = vmatprep.subr.mxu0 %v1423
        %1631 = vmatpush1.msra.mxu0 %v1422
        %1632 = vmatprep.subr.mxu0 %v1427
        %1633 = vmatpush1.msra.mxu0 %v1426
        %1634 = vmatprep.subr.mxu0 %v1431
        %1635 = vmatpush1.msra.mxu0 %v1430
        %1636 = vmatprep.subr.mxu0 %v1435
        %1637 = vmatpush1.msra.mxu0 %v1434
        %1638 = vmatprep.subr.mxu0 %v1439
        %1639 = vmatpush1.msra.mxu0 %v1438
        %1640 = vmatprep.subr.mxu0 %v1443
        %1641 = vmatpush1.msra.mxu0 %v1442
        %1642 = vmatprep.subr.mxu0 0.0
        %1643 = vmatpush1.msra.mxu0 0.0
        %1644 = vmatprep.subr.mxu0 0.0
        %1645 = vmatpush1.msra.mxu0 0.0
        %1646 = vmatprep.subr.mxu0 0.0
        %1647 = vmatpush1.msra.mxu0 0.0
        %1648 = vmatprep.subr.mxu0 0.0
        %1649 = vmatpush1.msra.mxu0 0.0
        %1650 = vmatprep.subr.mxu0 0.0
        %1651 = vmatpush1.msra.mxu0 0.0
        %1652 = vmatprep.subr.mxu0 0.0
        %1653 = vmatpush1.msra.mxu0 0.0
        %1654 = vmatprep.subr.mxu0 0.0
        %1655 = vmatpush1.msra.mxu0 0.0
        %1656 = vmatprep.subr.mxu0 0.0
        %1657 = vmatpush1.msra.mxu0 0.0
        %1658 = vmatprep.subr.mxu0 0.0
        %1659 = vmatpush1.msra.mxu0 0.0
        %1660 = vmatprep.subr.mxu0 0.0
        %1661 = vmatpush1.msra.mxu0 0.0
        %1662 = vmatprep.subr.mxu0 0.0
        %1663 = vmatpush1.msra.mxu0 0.0
        %1664 = vmatprep.subr.mxu0 0.0
        %1665 = vmatpush1.msra.mxu0 0.0
        %1666 = vmatprep.subr.mxu0 0.0
        %1667 = vmatpush1.msra.mxu0 0.0
        %1668 = vmatprep.subr.mxu0 0.0
        %1669 = vmatpush1.msra.mxu0 0.0
        %1670 = vmatprep.subr.mxu0 0.0
        %1671 = vmatpush1.msra.mxu0 0.0
        %1672 = vmatprep.subr.mxu0 0.0
        %1673 = vmatpush1.msra.mxu0 0.0
        %1674 = vmatprep.mubr.f32.mxu0 0.0
        %1675 = vmatmul.mubr.f32.gmra.mrb[0].mxu0 %v1125
        %v1676 = vpop.f32.mrb[0].mxu0
        %v1677 = vadd.f32 %v1606, %v1676
        %v1678 = vpop.f32.mrb[0].mxu0
        %v1679 = vadd.f32 %v1608, %v1678
        %1680 = vdwg.mxu0
        %1681 = vmatprep.subr.mxu0 %v1129
        %1682 = vmatpush1.msra.mxu0 %v1128
        %1683 = vmatprep.subr.mxu0 %v1133
        %1684 = vmatpush1.msra.mxu0 %v1132
        %1685 = vmatprep.subr.mxu0 %v1137
        %1686 = vmatpush1.msra.mxu0 %v1136
        %1687 = vmatprep.subr.mxu0 %v1141
        %1688 = vmatpush1.msra.mxu0 %v1140
        %1689 = vmatprep.subr.mxu0 %v1145
        %1690 = vmatpush1.msra.mxu0 %v1144
        %1691 = vmatprep.subr.mxu0 %v1149
        %1692 = vmatpush1.msra.mxu0 %v1148
        %1693 = vmatprep.subr.mxu0 %v1153
        %1694 = vmatpush1.msra.mxu0 %v1152
        %1695 = vmatprep.subr.mxu0 %v1157
        %1696 = vmatpush1.msra.mxu0 %v1156
        %1697 = vmatprep.subr.mxu0 %v1161
        %1698 = vmatpush1.msra.mxu0 %v1160
        %1699 = vmatprep.subr.mxu0 %v1165
        %1700 = vmatpush1.msra.mxu0 %v1164
        %1701 = vmatprep.subr.mxu0 %v1169
        %1702 = vmatpush1.msra.mxu0 %v1168
        %1703 = vmatprep.subr.mxu0 %v1173
        %1704 = vmatpush1.msra.mxu0 %v1172
        %1705 = vmatprep.subr.mxu0 %v1177
        %1706 = vmatpush1.msra.mxu0 %v1176
        %1707 = vmatprep.subr.mxu0 %v1181
        %1708 = vmatpush1.msra.mxu0 %v1180
        %1709 = vmatprep.subr.mxu0 %v1185
        %1710 = vmatpush1.msra.mxu0 %v1184
        %1711 = vmatprep.subr.mxu0 %v1189
        %1712 = vmatpush1.msra.mxu0 %v1188
        %1713 = vmatprep.subr.mxu0 %v1193
        %1714 = vmatpush1.msra.mxu0 %v1192
        %1715 = vmatprep.subr.mxu0 %v1197
        %1716 = vmatpush1.msra.mxu0 %v1196
        %1717 = vmatprep.subr.mxu0 %v1201
        %1718 = vmatpush1.msra.mxu0 %v1200
        %1719 = vmatprep.subr.mxu0 %v1205
        %1720 = vmatpush1.msra.mxu0 %v1204
        %1721 = vmatprep.subr.mxu0 %v1209
        %1722 = vmatpush1.msra.mxu0 %v1208
        %1723 = vmatprep.subr.mxu0 %v1213
        %1724 = vmatpush1.msra.mxu0 %v1212
        %1725 = vmatprep.subr.mxu0 %v1217
        %1726 = vmatpush1.msra.mxu0 %v1216
        %1727 = vmatprep.subr.mxu0 %v1221
        %1728 = vmatpush1.msra.mxu0 %v1220
        %1729 = vmatprep.subr.mxu0 %v1225
        %1730 = vmatpush1.msra.mxu0 %v1224
        %1731 = vmatprep.subr.mxu0 %v1229
        %1732 = vmatpush1.msra.mxu0 %v1228
        %1733 = vmatprep.subr.mxu0 %v1233
        %1734 = vmatpush1.msra.mxu0 %v1232
        %1735 = vmatprep.subr.mxu0 %v1237
        %1736 = vmatpush1.msra.mxu0 %v1236
        %1737 = vmatprep.subr.mxu0 %v1241
        %1738 = vmatpush1.msra.mxu0 %v1240
        %1739 = vmatprep.subr.mxu0 %v1245
        %1740 = vmatpush1.msra.mxu0 %v1244
        %1741 = vmatprep.subr.mxu0 %v1249
        %1742 = vmatpush1.msra.mxu0 %v1248
        %1743 = vmatprep.subr.mxu0 %v1253
        %1744 = vmatpush1.msra.mxu0 %v1252
        %1745 = vmatprep.mubr.f32.mxu0 %v1122
        %1746 = vmatmul.mubr.f32.gmra.mrb[0].mxu0 %v1121
        %v1747 = vpop.f32.mrb[0].mxu0
        %v1748 = vadd.f32 %v1459, %v1747
        %v1749 = vpop.f32.mrb[0].mxu0
        %v1750 = vadd.f32 %v1463, %v1749
        %1751 = vdwg.mxu0
        %1752 = vmatprep.subr.mxu0 %v1257
        %1753 = vmatpush1.msra.mxu0 %v1256
        %1754 = vmatprep.subr.mxu0 %v1261
        %1755 = vmatpush1.msra.mxu0 %v1260
        %1756 = vmatprep.subr.mxu0 %v1265
        %1757 = vmatpush1.msra.mxu0 %v1264
        %1758 = vmatprep.subr.mxu0 %v1269
        %1759 = vmatpush1.msra.mxu0 %v1268
        %1760 = vmatprep.subr.mxu0 %v1273
        %1761 = vmatpush1.msra.mxu0 %v1272
        %1762 = vmatprep.subr.mxu0 %v1277
        %1763 = vmatpush1.msra.mxu0 %v1276
        %1764 = vmatprep.subr.mxu0 %v1281
        %1765 = vmatpush1.msra.mxu0 %v1280
        %1766 = vmatprep.subr.mxu0 %v1285
        %1767 = vmatpush1.msra.mxu0 %v1284
        %1768 = vmatprep.subr.mxu0 %v1289
        %1769 = vmatpush1.msra.mxu0 %v1288
        %1770 = vmatprep.subr.mxu0 %v1293
        %1771 = vmatpush1.msra.mxu0 %v1292
        %1772 = vmatprep.subr.mxu0 %v1297
        %1773 = vmatpush1.msra.mxu0 %v1296
        %1774 = vmatprep.subr.mxu0 %v1301
        %1775 = vmatpush1.msra.mxu0 %v1300
        %1776 = vmatprep.subr.mxu0 %v1305
        %1777 = vmatpush1.msra.mxu0 %v1304
        %1778 = vmatprep.subr.mxu0 %v1309
        %1779 = vmatpush1.msra.mxu0 %v1308
        %1780 = vmatprep.subr.mxu0 %v1313
        %1781 = vmatpush1.msra.mxu0 %v1312
        %1782 = vmatprep.subr.mxu0 %v1317
        %1783 = vmatpush1.msra.mxu0 %v1316
        %1784 = vmatprep.subr.mxu0 %v1321
        %1785 = vmatpush1.msra.mxu0 %v1320
        %1786 = vmatprep.subr.mxu0 %v1325
        %1787 = vmatpush1.msra.mxu0 %v1324
        %1788 = vmatprep.subr.mxu0 %v1329
        %1789 = vmatpush1.msra.mxu0 %v1328
        %1790 = vmatprep.subr.mxu0 %v1333
        %1791 = vmatpush1.msra.mxu0 %v1332
        %1792 = vmatprep.subr.mxu0 %v1337
        %1793 = vmatpush1.msra.mxu0 %v1336
        %1794 = vmatprep.subr.mxu0 %v1341
        %1795 = vmatpush1.msra.mxu0 %v1340
        %1796 = vmatprep.subr.mxu0 %v1345
        %1797 = vmatpush1.msra.mxu0 %v1344
        %1798 = vmatprep.subr.mxu0 %v1349
        %1799 = vmatpush1.msra.mxu0 %v1348
        %1800 = vmatprep.subr.mxu0 %v1353
        %1801 = vmatpush1.msra.mxu0 %v1352
        %1802 = vmatprep.subr.mxu0 %v1357
        %1803 = vmatpush1.msra.mxu0 %v1356
        %1804 = vmatprep.subr.mxu0 %v1361
        %1805 = vmatpush1.msra.mxu0 %v1360
        %1806 = vmatprep.subr.mxu0 %v1365
        %1807 = vmatpush1.msra.mxu0 %v1364
        %1808 = vmatprep.subr.mxu0 %v1369
        %1809 = vmatpush1.msra.mxu0 %v1368
        %1810 = vmatprep.subr.mxu0 %v1373
        %1811 = vmatpush1.msra.mxu0 %v1372
        %1812 = vmatprep.subr.mxu0 %v1377
        %1813 = vmatpush1.msra.mxu0 %v1376
        %1814 = vmatprep.subr.mxu0 %v1381
        %1815 = vmatpush1.msra.mxu0 %v1380
        %1816 = vmatprep.mubr.f32.mxu0 %v1124
        %1817 = vmatmul.mubr.f32.gmra.mrb[0].mxu0 %v1123
        %v1818 = vpop.f32.mrb[0].mxu0
        %v1819 = vadd.f32 %v1748, %v1818
        %v1820 = vpop.f32.mrb[0].mxu0
        %v1821 = vadd.f32 %v1750, %v1820
        %1822 = vdwg.mxu0
        %1823 = vmatprep.subr.mxu0 %v1385
        %1824 = vmatpush1.msra.mxu0 %v1384
        %1825 = vmatprep.subr.mxu0 %v1389
        %1826 = vmatpush1.msra.mxu0 %v1388
        %1827 = vmatprep.subr.mxu0 %v1393
        %1828 = vmatpush1.msra.mxu0 %v1392
        %1829 = vmatprep.subr.mxu0 %v1397
        %1830 = vmatpush1.msra.mxu0 %v1396
        %1831 = vmatprep.subr.mxu0 %v1401
        %1832 = vmatpush1.msra.mxu0 %v1400
        %1833 = vmatprep.subr.mxu0 %v1405
        %1834 = vmatpush1.msra.mxu0 %v1404
        %1835 = vmatprep.subr.mxu0 %v1409
        %1836 = vmatpush1.msra.mxu0 %v1408
        %1837 = vmatprep.subr.mxu0 %v1413
        %1838 = vmatpush1.msra.mxu0 %v1412
        %1839 = vmatprep.subr.mxu0 %v1417
        %1840 = vmatpush1.msra.mxu0 %v1416
        %1841 = vmatprep.subr.mxu0 %v1421
        %1842 = vmatpush1.msra.mxu0 %v1420
        %1843 = vmatprep.subr.mxu0 %v1425
        %1844 = vmatpush1.msra.mxu0 %v1424
        %1845 = vmatprep.subr.mxu0 %v1429
        %1846 = vmatpush1.msra.mxu0 %v1428
        %1847 = vmatprep.subr.mxu0 %v1433
        %1848 = vmatpush1.msra.mxu0 %v1432
        %1849 = vmatprep.subr.mxu0 %v1437
        %1850 = vmatpush1.msra.mxu0 %v1436
        %1851 = vmatprep.subr.mxu0 %v1441
        %1852 = vmatpush1.msra.mxu0 %v1440
        %1853 = vmatprep.subr.mxu0 %v1445
        %1854 = vmatpush1.msra.mxu0 %v1444
        %1855 = vmatprep.subr.mxu0 0.0
        %1856 = vmatpush1.msra.mxu0 0.0
        %1857 = vmatprep.subr.mxu0 0.0
        %1858 = vmatpush1.msra.mxu0 0.0
        %1859 = vmatprep.subr.mxu0 0.0
        %1860 = vmatpush1.msra.mxu0 0.0
        %1861 = vmatprep.subr.mxu0 0.0
        %1862 = vmatpush1.msra.mxu0 0.0
        %1863 = vmatprep.subr.mxu0 0.0
        %1864 = vmatpush1.msra.mxu0 0.0
        %1865 = vmatprep.subr.mxu0 0.0
        %1866 = vmatpush1.msra.mxu0 0.0
        %1867 = vmatprep.subr.mxu0 0.0
        %1868 = vmatpush1.msra.mxu0 0.0
        %1869 = vmatprep.subr.mxu0 0.0
        %1870 = vmatpush1.msra.mxu0 0.0
        %1871 = vmatprep.subr.mxu0 0.0
        %1872 = vmatpush1.msra.mxu0 0.0
        %1873 = vmatprep.subr.mxu0 0.0
        %1874 = vmatpush1.msra.mxu0 0.0
        %1875 = vmatprep.subr.mxu0 0.0
        %1876 = vmatpush1.msra.mxu0 0.0
        %1877 = vmatprep.subr.mxu0 0.0
        %1878 = vmatpush1.msra.mxu0 0.0
        %1879 = vmatprep.subr.mxu0 0.0
        %1880 = vmatpush1.msra.mxu0 0.0
        %1881 = vmatprep.subr.mxu0 0.0
        %1882 = vmatpush1.msra.mxu0 0.0
        %1883 = vmatprep.subr.mxu0 0.0
        %1884 = vmatpush1.msra.mxu0 0.0
        %1885 = vmatprep.subr.mxu0 0.0
        %1886 = vmatpush1.msra.mxu0 0.0
        %1887 = vmatprep.mubr.f32.mxu0 0.0
        %1888 = vmatmul.mubr.f32.gmra.mrb[0].mxu0 %v1125
        %v1889 = vpop.f32.mrb[0].mxu0
        %v1890 = vadd.f32 %v1819, %v1889
        %v1891 = vpop.f32.mrb[0].mxu0
        %v1892 = vadd.f32 %v1821, %v1891
        %1893 = vdwg.mxu0
        %v1894 = vmax.f32 %v1677, 0.0
        %v1895 = vmax.f32 %v1679, 0.0
        %v1896 = vmax.f32 %v1890, 0.0
        %v1897 = vmax.f32 %v1892, 0.0
        %v1898 = vld [vmem:[#allocation11] sm:$0xff]
        %v1899 = vld [vmem:[#allocation11 + $0x8] sm:$0xff]
        %v1900 = vld [vmem:[#allocation11 + $0x10] sm:$0xff]
        %v1901 = vld [vmem:[#allocation11 + $0x18] sm:$0xff]
        %v1902 = vld [vmem:[#allocation11 + $0x20] sm:$0xff]
        %v1903 = vld [vmem:[#allocation11 + $0x28] sm:$0xff]
        %v1904 = vld [vmem:[#allocation11 + $0x30] sm:$0xff]
        %v1905 = vld [vmem:[#allocation11 + $0x38] sm:$0xff]
        %v1906 = vld [vmem:[#allocation11 + $0x40] sm:$0xff]
        %v1907 = vld [vmem:[#allocation11 + $0x48] sm:$0xff]
        %v1908 = vld [vmem:[#allocation11 + $0x50] sm:$0xff]
        %v1909 = vld [vmem:[#allocation11 + $0x58] sm:$0xff]
        %v1910 = vld [vmem:[#allocation11 + $0x60] sm:$0xff]
        %v1911 = vld [vmem:[#allocation11 + $0x68] sm:$0xff]
        %v1912 = vld [vmem:[#allocation11 + $0x70] sm:$0xff]
        %v1913 = vld [vmem:[#allocation11 + $0x78] sm:$0xff]
        %v1914 = vld [vmem:[#allocation11 + $0x80] sm:$0xff]
        %v1915 = vld [vmem:[#allocation11 + $0x88] sm:$0xff]
        %v1916 = vld [vmem:[#allocation11 + $0x90] sm:$0xff]
        %v1917 = vld [vmem:[#allocation11 + $0x98] sm:$0xff]
        %v1918 = vld [vmem:[#allocation11 + $0xa0] sm:$0xff]
        %v1919 = vld [vmem:[#allocation11 + $0xa8] sm:$0xff]
        %v1920 = vld [vmem:[#allocation11 + $0xb0] sm:$0xff]
        %v1921 = vld [vmem:[#allocation11 + $0xb8] sm:$0xff]
        %v1922 = vld [vmem:[#allocation11 + $0xc0] sm:$0xff]
        %v1923 = vld [vmem:[#allocation11 + $0xc8] sm:$0xff]
        %v1924 = vld [vmem:[#allocation11 + $0xd0] sm:$0xff]
        %v1925 = vld [vmem:[#allocation11 + $0xd8] sm:$0xff]
        %v1926 = vld [vmem:[#allocation11 + $0xe0] sm:$0xff]
        %v1927 = vld [vmem:[#allocation11 + $0xe8] sm:$0xff]
        %v1928 = vld [vmem:[#allocation11 + $0xf0] sm:$0xff]
        %v1929 = vld [vmem:[#allocation11 + $0xf8] sm:$0xff]
        %v1930 = vld [vmem:[#allocation11 + $0x100] sm:$0xff]
        %v1931 = vld [vmem:[#allocation11 + $0x108] sm:$0xff]
        %v1932 = vld [vmem:[#allocation11 + $0x110] sm:$0xff]
        %v1933 = vld [vmem:[#allocation11 + $0x118] sm:$0xff]
        %v1934 = vld [vmem:[#allocation11 + $0x120] sm:$0xff]
        %v1935 = vld [vmem:[#allocation11 + $0x128] sm:$0xff]
        %v1936 = vld [vmem:[#allocation11 + $0x130] sm:$0xff]
        %v1937 = vld [vmem:[#allocation11 + $0x138] sm:$0xff]
        %v1938 = vld [vmem:[#allocation11 + $0x140] sm:$0xff]
        %v1939 = vld [vmem:[#allocation11 + $0x148] sm:$0xff]
        %v1940 = vld [vmem:[#allocation11 + $0x150] sm:$0xff]
        %v1941 = vld [vmem:[#allocation11 + $0x158] sm:$0xff]
        %v1942 = vld [vmem:[#allocation11 + $0x160] sm:$0xff]
        %v1943 = vld [vmem:[#allocation11 + $0x168] sm:$0xff]
        %v1944 = vld [vmem:[#allocation11 + $0x170] sm:$0xff]
        %v1945 = vld [vmem:[#allocation11 + $0x178] sm:$0xff]
        %v1946 = vld [vmem:[#allocation11 + $0x180] sm:$0xff]
        %v1947 = vld [vmem:[#allocation11 + $0x188] sm:$0xff]
        %v1948 = vld [vmem:[#allocation11 + $0x190] sm:$0xff]
        %v1949 = vld [vmem:[#allocation11 + $0x198] sm:$0xff]
        %v1950 = vld [vmem:[#allocation11 + $0x1a0] sm:$0xff]
        %v1951 = vld [vmem:[#allocation11 + $0x1a8] sm:$0xff]
        %v1952 = vld [vmem:[#allocation11 + $0x1b0] sm:$0xff]
        %v1953 = vld [vmem:[#allocation11 + $0x1b8] sm:$0xff]
        %v1954 = vld [vmem:[#allocation11 + $0x1c0] sm:$0xff]
        %v1955 = vld [vmem:[#allocation11 + $0x1c8] sm:$0xff]
        %v1956 = vld [vmem:[#allocation11 + $0x1d0] sm:$0xff]
        %v1957 = vld [vmem:[#allocation11 + $0x1d8] sm:$0xff]
        %v1958 = vld [vmem:[#allocation11 + $0x1e0] sm:$0xff]
        %v1959 = vld [vmem:[#allocation11 + $0x1e8] sm:$0xff]
        %v1960 = vld [vmem:[#allocation11 + $0x1f0] sm:$0xff]
        %v1961 = vld [vmem:[#allocation11 + $0x1f8] sm:$0xff]
        %v1962 = vld [vmem:[#allocation13] sm:$0x1]
        %v1964 = vlaneseq
        %v1965 = vshrl.u32 %v1964, 7
        %v1966 = vsub.s32 0, %v1965
        %v1967 = vrot.slane %v1962, %v1966
        %1969 = vmatprep.subr.mxu0 0.0
        %1970 = vmatpush1.msra.mxu0 %v1898
        %1971 = vmatprep.subr.mxu0 0.0
        %1972 = vmatpush1.msra.mxu0 %v1899
        %1973 = vmatprep.subr.mxu0 0.0
        %1974 = vmatpush1.msra.mxu0 %v1900
        %1975 = vmatprep.subr.mxu0 0.0
        %1976 = vmatpush1.msra.mxu0 %v1901
        %1977 = vmatprep.subr.mxu0 0.0
        %1978 = vmatpush1.msra.mxu0 %v1902
        %1979 = vmatprep.subr.mxu0 0.0
        %1980 = vmatpush1.msra.mxu0 %v1903
        %1981 = vmatprep.subr.mxu0 0.0
        %1982 = vmatpush1.msra.mxu0 %v1904
        %1983 = vmatprep.subr.mxu0 0.0
        %1984 = vmatpush1.msra.mxu0 %v1905
        %1985 = vmatprep.subr.mxu0 0.0
        %1986 = vmatpush1.msra.mxu0 %v1906
        %1987 = vmatprep.subr.mxu0 0.0
        %1988 = vmatpush1.msra.mxu0 %v1907
        %1989 = vmatprep.subr.mxu0 0.0
        %1990 = vmatpush1.msra.mxu0 %v1908
        %1991 = vmatprep.subr.mxu0 0.0
        %1992 = vmatpush1.msra.mxu0 %v1909
        %1993 = vmatprep.subr.mxu0 0.0
        %1994 = vmatpush1.msra.mxu0 %v1910
        %1995 = vmatprep.subr.mxu0 0.0
        %1996 = vmatpush1.msra.mxu0 %v1911
        %1997 = vmatprep.subr.mxu0 0.0
        %1998 = vmatpush1.msra.mxu0 %v1912
        %1999 = vmatprep.subr.mxu0 0.0
        %2000 = vmatpush1.msra.mxu0 %v1913
        %2001 = vmatprep.subr.mxu0 0.0
        %2002 = vmatpush1.msra.mxu0 %v1914
        %2003 = vmatprep.subr.mxu0 0.0
        %2004 = vmatpush1.msra.mxu0 %v1915
        %2005 = vmatprep.subr.mxu0 0.0
        %2006 = vmatpush1.msra.mxu0 %v1916
        %2007 = vmatprep.subr.mxu0 0.0
        %2008 = vmatpush1.msra.mxu0 %v1917
        %2009 = vmatprep.subr.mxu0 0.0
        %2010 = vmatpush1.msra.mxu0 %v1918
        %2011 = vmatprep.subr.mxu0 0.0
        %2012 = vmatpush1.msra.mxu0 %v1919
        %2013 = vmatprep.subr.mxu0 0.0
        %2014 = vmatpush1.msra.mxu0 %v1920
        %2015 = vmatprep.subr.mxu0 0.0
        %2016 = vmatpush1.msra.mxu0 %v1921
        %2017 = vmatprep.subr.mxu0 0.0
        %2018 = vmatpush1.msra.mxu0 %v1922
        %2019 = vmatprep.subr.mxu0 0.0
        %2020 = vmatpush1.msra.mxu0 %v1923
        %2021 = vmatprep.subr.mxu0 0.0
        %2022 = vmatpush1.msra.mxu0 %v1924
        %2023 = vmatprep.subr.mxu0 0.0
        %2024 = vmatpush1.msra.mxu0 %v1925
        %2025 = vmatprep.subr.mxu0 0.0
        %2026 = vmatpush1.msra.mxu0 %v1926
        %2027 = vmatprep.subr.mxu0 0.0
        %2028 = vmatpush1.msra.mxu0 %v1927
        %2029 = vmatprep.subr.mxu0 0.0
        %2030 = vmatpush1.msra.mxu0 %v1928
        %2031 = vmatprep.subr.mxu0 0.0
        %2032 = vmatpush1.msra.mxu0 %v1929
        %2033 = vmatprep.mubr.f32.mxu0 %v1895
        %2034 = vmatmul.mubr.f32.gmra.mrb[0].mxu0 %v1894
        %v2035 = vpop.f32.mrb[0].mxu0
        %v2036 = vadd.f32 %v1967, %v2035
        %v2037 = vpop.f32.mrb[0].mxu0
        %2038 = vdwg.mxu0
        %2039 = vmatprep.subr.mxu0 0.0
        %2040 = vmatpush1.msra.mxu0 %v1930
        %2041 = vmatprep.subr.mxu0 0.0
        %2042 = vmatpush1.msra.mxu0 %v1931
        %2043 = vmatprep.subr.mxu0 0.0
        %2044 = vmatpush1.msra.mxu0 %v1932
        %2045 = vmatprep.subr.mxu0 0.0
        %2046 = vmatpush1.msra.mxu0 %v1933
        %2047 = vmatprep.subr.mxu0 0.0
        %2048 = vmatpush1.msra.mxu0 %v1934
        %2049 = vmatprep.subr.mxu0 0.0
        %2050 = vmatpush1.msra.mxu0 %v1935
        %2051 = vmatprep.subr.mxu0 0.0
        %2052 = vmatpush1.msra.mxu0 %v1936
        %2053 = vmatprep.subr.mxu0 0.0
        %2054 = vmatpush1.msra.mxu0 %v1937
        %2055 = vmatprep.subr.mxu0 0.0
        %2056 = vmatpush1.msra.mxu0 %v1938
        %2057 = vmatprep.subr.mxu0 0.0
        %2058 = vmatpush1.msra.mxu0 %v1939
        %2059 = vmatprep.subr.mxu0 0.0
        %2060 = vmatpush1.msra.mxu0 %v1940
        %2061 = vmatprep.subr.mxu0 0.0
        %2062 = vmatpush1.msra.mxu0 %v1941
        %2063 = vmatprep.subr.mxu0 0.0
        %2064 = vmatpush1.msra.mxu0 %v1942
        %2065 = vmatprep.subr.mxu0 0.0
        %2066 = vmatpush1.msra.mxu0 %v1943
        %2067 = vmatprep.subr.mxu0 0.0
        %2068 = vmatpush1.msra.mxu0 %v1944
        %2069 = vmatprep.subr.mxu0 0.0
        %2070 = vmatpush1.msra.mxu0 %v1945
        %2071 = vmatprep.subr.mxu0 0.0
        %2072 = vmatpush1.msra.mxu0 %v1946
        %2073 = vmatprep.subr.mxu0 0.0
        %2074 = vmatpush1.msra.mxu0 %v1947
        %2075 = vmatprep.subr.mxu0 0.0
        %2076 = vmatpush1.msra.mxu0 %v1948
        %2077 = vmatprep.subr.mxu0 0.0
        %2078 = vmatpush1.msra.mxu0 %v1949
        %2079 = vmatprep.subr.mxu0 0.0
        %2080 = vmatpush1.msra.mxu0 %v1950
        %2081 = vmatprep.subr.mxu0 0.0
        %2082 = vmatpush1.msra.mxu0 %v1951
        %2083 = vmatprep.subr.mxu0 0.0
        %2084 = vmatpush1.msra.mxu0 %v1952
        %2085 = vmatprep.subr.mxu0 0.0
        %2086 = vmatpush1.msra.mxu0 %v1953
        %2087 = vmatprep.subr.mxu0 0.0
        %2088 = vmatpush1.msra.mxu0 %v1954
        %2089 = vmatprep.subr.mxu0 0.0
        %2090 = vmatpush1.msra.mxu0 %v1955
        %2091 = vmatprep.subr.mxu0 0.0
        %2092 = vmatpush1.msra.mxu0 %v1956
        %2093 = vmatprep.subr.mxu0 0.0
        %2094 = vmatpush1.msra.mxu0 %v1957
        %2095 = vmatprep.subr.mxu0 0.0
        %2096 = vmatpush1.msra.mxu0 %v1958
        %2097 = vmatprep.subr.mxu0 0.0
        %2098 = vmatpush1.msra.mxu0 %v1959
        %2099 = vmatprep.subr.mxu0 0.0
        %2100 = vmatpush1.msra.mxu0 %v1960
        %2101 = vmatprep.subr.mxu0 0.0
        %2102 = vmatpush1.msra.mxu0 %v1961
        %2103 = vmatprep.mubr.f32.mxu0 %v1897
        %2104 = vmatmul.mubr.f32.gmra.mrb[0].mxu0 %v1896
        %v2105 = vpop.f32.mrb[0].mxu0
        %v2106 = vadd.f32 %v2036, %v2105
        %v2107 = vpop.f32.mrb[0].mxu0
        %2108 = vdwg.mxu0
        %v2109 = vmax.f32 %v2106, 0.0
        %v2110 = vld [vmem:[#allocation14] sm:$0xff]
        %v2111 = vld [vmem:[#allocation14 + $0x8] sm:$0xff]
        %v2112 = vld [vmem:[#allocation14 + $0x10] sm:$0xff]
        %v2113 = vld [vmem:[#allocation14 + $0x18] sm:$0xff]
        %v2114 = vld [vmem:[#allocation14 + $0x20] sm:$0xff]
        %v2115 = vld [vmem:[#allocation14 + $0x28] sm:$0xff]
        %v2116 = vld [vmem:[#allocation14 + $0x30] sm:$0xff]
        %v2117 = vld [vmem:[#allocation14 + $0x38] sm:$0xff]
        %v2118 = vld [vmem:[#allocation14 + $0x40] sm:$0xff]
        %v2119 = vld [vmem:[#allocation14 + $0x48] sm:$0xff]
        %v2120 = vld [vmem:[#allocation14 + $0x50] sm:$0xff]
        %v2121 = vld [vmem:[#allocation14 + $0x58] sm:$0xff]
        %v2122 = vld [vmem:[#allocation14 + $0x60] sm:$0xff]
        %v2123 = vld [vmem:[#allocation14 + $0x68] sm:$0xff]
        %v2124 = vld [vmem:[#allocation14 + $0x70] sm:$0xff]
        %v2125 = vld [vmem:[#allocation14 + $0x78] sm:$0xff]
        %v2126 = vld [vmem:[#allocation16] sm:$0x1]
        %v2128 = vlaneseq
        %v2129 = vshrl.u32 %v2128, 7
        %v2130 = vsub.s32 0, %v2129
        %v2131 = vrot.slane %v2126, %v2130
        %2133 = vmatprep.subr.mxu0 0.0
        %2134 = vmatpush1.msra.mxu0 %v2110
        %2135 = vmatprep.subr.mxu0 0.0
        %2136 = vmatpush1.msra.mxu0 %v2111
        %2137 = vmatprep.subr.mxu0 0.0
        %2138 = vmatpush1.msra.mxu0 %v2112
        %2139 = vmatprep.subr.mxu0 0.0
        %2140 = vmatpush1.msra.mxu0 %v2113
        %2141 = vmatprep.subr.mxu0 0.0
        %2142 = vmatpush1.msra.mxu0 %v2114
        %2143 = vmatprep.subr.mxu0 0.0
        %2144 = vmatpush1.msra.mxu0 %v2115
        %2145 = vmatprep.subr.mxu0 0.0
        %2146 = vmatpush1.msra.mxu0 %v2116
        %2147 = vmatprep.subr.mxu0 0.0
        %2148 = vmatpush1.msra.mxu0 %v2117
        %2149 = vmatprep.subr.mxu0 0.0
        %2150 = vmatpush1.msra.mxu0 %v2118
        %2151 = vmatprep.subr.mxu0 0.0
        %2152 = vmatpush1.msra.mxu0 %v2119
        %2153 = vmatprep.subr.mxu0 0.0
        %2154 = vmatpush1.msra.mxu0 %v2120
        %2155 = vmatprep.subr.mxu0 0.0
        %2156 = vmatpush1.msra.mxu0 %v2121
        %2157 = vmatprep.subr.mxu0 0.0
        %2158 = vmatpush1.msra.mxu0 %v2122
        %2159 = vmatprep.subr.mxu0 0.0
        %2160 = vmatpush1.msra.mxu0 %v2123
        %2161 = vmatprep.subr.mxu0 0.0
        %2162 = vmatpush1.msra.mxu0 %v2124
        %2163 = vmatprep.subr.mxu0 0.0
        %2164 = vmatpush1.msra.mxu0 %v2125
        %2165 = vmatprep.subr.mxu0 0.0
        %2166 = vmatpush1.msra.mxu0 0.0
        %2167 = vmatprep.subr.mxu0 0.0
        %2168 = vmatpush1.msra.mxu0 0.0
        %2169 = vmatprep.subr.mxu0 0.0
        %2170 = vmatpush1.msra.mxu0 0.0
        %2171 = vmatprep.subr.mxu0 0.0
        %2172 = vmatpush1.msra.mxu0 0.0
        %2173 = vmatprep.subr.mxu0 0.0
        %2174 = vmatpush1.msra.mxu0 0.0
        %2175 = vmatprep.subr.mxu0 0.0
        %2176 = vmatpush1.msra.mxu0 0.0
        %2177 = vmatprep.subr.mxu0 0.0
        %2178 = vmatpush1.msra.mxu0 0.0
        %2179 = vmatprep.subr.mxu0 0.0
        %2180 = vmatpush1.msra.mxu0 0.0
        %2181 = vmatprep.subr.mxu0 0.0
        %2182 = vmatpush1.msra.mxu0 0.0
        %2183 = vmatprep.subr.mxu0 0.0
        %2184 = vmatpush1.msra.mxu0 0.0
        %2185 = vmatprep.subr.mxu0 0.0
        %2186 = vmatpush1.msra.mxu0 0.0
        %2187 = vmatprep.subr.mxu0 0.0
        %2188 = vmatpush1.msra.mxu0 0.0
        %2189 = vmatprep.subr.mxu0 0.0
        %2190 = vmatpush1.msra.mxu0 0.0
        %2191 = vmatprep.subr.mxu0 0.0
        %2192 = vmatpush1.msra.mxu0 0.0
        %2193 = vmatprep.subr.mxu0 0.0
        %2194 = vmatpush1.msra.mxu0 0.0
        %2195 = vmatprep.subr.mxu0 0.0
        %2196 = vmatpush1.msra.mxu0 0.0
        %2197 = vmatprep.mubr.f32.mxu0 0.0
        %2198 = vmatmul.mubr.f32.gmra.mrb[0].mxu0 %v2109
        %v2199 = vpop.f32.mrb[0].mxu0
        %v2200 = vadd.f32 %v2131, %v2199
        %v2201 = vpop.f32.mrb[0].mxu0
        %2202 = vdwg.mxu0
        %v2203 = vmax.f32 %v2200, 0.0
        %2204 = vst [vmem:[%s456] sm:$0xff] %v2203
        %s2205 = sand.u32 %s232, 1
        %s2206 = scalar_lea.sflag [#allocation4], %s2205
        %s2207 = sand.u32 %s232, 1
        %s2208 = smul.addr %s2207, 8
        %s2209 = scalar_lea.vmem [#allocation17], %s2208
        // Predicated region
        $region93: #{tpu_custom_call.1} parent=55 // pred_check
          %p2210 = pneg %p242
        $region94: #{tpu_custom_call.1} parent=55 // pred_check_branch
          %2212 = sbr.rel (%p2210) target = $region96
        $region95: #{tpu_custom_call.1} parent=55 // pred_region
          %s2214 = ssub.s32 128, 128
          %2215 = vsyncadd %s2206, %s2214
          %s2216 = smul.addr %s30, 128
          %s2217 = scalar_lea.hbm %s9, %s2216
          %s2219 = sshll.u32 %s2209, 4
          %s2220 = int_to_ptr.vmem [resolvable:$true] %s2219
          %2222 = dma.vmem_to_hbm [thread:$0]  %s2220, 128, %s2217, %s2206
        $region96: #{tpu_custom_call.1} parent=55 // pred_fallthru
          _
      $region56: #{tpu_custom_call.1} parent=5 // pred_fallthru
        _
      %p2223 = scmp.le.s32.totalorder 2, %s25
      // Predicated region
      $region97: #{tpu_custom_call.1} parent=5 // pred_check
        %p2224 = pneg %p2223
      $region98: #{tpu_custom_call.1} parent=5 // pred_check_branch
        %2226 = sbr.rel (%p2224) target = $region100
      $region99: #{tpu_custom_call.1} parent=5 // pred_region
        %s2227 = ssub.s32 %s25, 2
        // Predicated region
        $region101: #{tpu_custom_call.1} parent=99 // pred_check
          %p2228 = pneg %p248
        $region102: #{tpu_custom_call.1} parent=99 // pred_check_branch
          %2230 = sbr.rel (%p2228) target = $region104
        $region103: #{tpu_custom_call.1} parent=99 // pred_region
          %s2231 = sand.u32 %s233, 1
          %s2232 = scalar_lea.sflag [#allocation4], %s2231
          %s2233 = sand.u32 %s233, 1
          %s2234 = smul.addr %s2233, 8
          %s2235 = scalar_lea.vmem [#allocation17], %s2234
          %2236 = dma.done %s2232, 128
        $region104: #{tpu_custom_call.1} parent=99 // pred_fallthru
          _
      $region100: #{tpu_custom_call.1} parent=5 // pred_fallthru
        _
    $region6: #{tpu_custom_call.1} parent=1 // loop_footer
      %s29 = sadd.s32 1, %s25
    $region7: #{tpu_custom_call.1} parent=1 // loop_footer_branch
      %24 = sbr.rel target = $region3
    $region8: #{tpu_custom_call.1} parent=1 // loop_exit
      _
    %2237 = vsyncpa [#allocation3], 1
    %s2238 = scalar_lea.sflag [#allocation3], 1
    %2239 = vsyncpa %s2238, 1
    %2240 = vsyncpa [#allocation6], 1
    %2241 = vsyncpa [#allocation9], 1
    %2242 = vsyncpa [#allocation12], 1
    %2243 = vsyncpa [#allocation15], 1
    %2244 = vsyncpa [#allocation4], 1
    %s2245 = scalar_lea.sflag [#allocation4], 1
    %2246 = vsyncpa %s2245, 1

// kernel: tpu_custom_call.1
$region0: #{tpu_custom_call.1}
  #allocation0 [shape = 'u32[]', space=smem, size = 0x4, offset = 0x4, fixed_abs, tag = 'smem constant byte address 0x4 - core index']
  #allocation1 [shape = 'u32[144,128]{1,0:T(1,128)}', space=vmem, size = 0x12000, scoped, tag = 'internal scratch']
  %s0 = inlined_call_operand.hbm [shape: f32[16,300], index: 0, kind: input, shape index: {}]
  %s1 = inlined_call_operand.hbm [shape: f32[300,640], index: 1, kind: input, shape index: {}]
  %s2 = inlined_call_operand.hbm [shape: f32[1,640], index: 2, kind: input, shape index: {}]
  %s3 = inlined_call_operand.hbm [shape: f32[640,512], index: 3, kind: input, shape index: {}]
  %s4 = inlined_call_operand.hbm [shape: f32[1,512], index: 4, kind: input, shape index: {}]
  %s5 = inlined_call_operand.hbm [shape: f32[512,128], index: 5, kind: input, shape index: {}]
  %s6 = inlined_call_operand.hbm [shape: f32[1,128], index: 6, kind: input, shape index: {}]
  %s7 = inlined_call_operand.hbm [shape: f32[128,128], index: 7, kind: input, shape index: {}]
  %s8 = inlined_call_operand.hbm [shape: f32[1,128], index: 8, kind: input, shape index: {}]
  %s9 = inlined_call_operand.hbm [shape: f32[16,128], index: 9, kind: output, shape index: {}]
  %s10 = sld [smem:[#allocation0]]
  $region105: #{tpu_custom_call.1} parent=0
    _
  %s12 = ssub.s32 1, %s10
  %s13 = scalar_select 0, %s12, %s10
  $region1: #{tpu_custom_call.1} parent=0
    #allocation2 [shape = 'u8[24576]{0}', space=vmem, size = 0x6000, scoped, tag = 'input window, operand 0']
    #allocation3 [shape = 's32[2]{0}', space=sflag, size = 0x8, scoped, tag = 'scoped memory for tpu_custom_call.1']
    #allocation4 [shape = 's32[2]{0}', space=sflag, size = 0x8, scoped, tag = 'scoped memory for tpu_custom_call.1']
    #allocation5 [shape = 'u8[778240]{0}', space=vmem, size = 0xbe000, scoped, tag = 'input window, operand 1, single buffered']
    #allocation6 [shape = 's32[1]{0}', space=sflag, size = 0x4, scoped, tag = 'scoped memory for tpu_custom_call.1']
    #allocation7 [shape = 'u8[2560]{0}', space=vmem, size = 0xc00, scoped, tag = 'input window, operand 2, single buffered']
    #allocation8 [shape = 'u8[1310720]{0}', space=vmem, size = 0x140000, scoped, tag = 'input window, operand 3, single buffered']
    #allocation9 [shape = 's32[1]{0}', space=sflag, size = 0x4, scoped, tag = 'scoped memory for tpu_custom_call.1']
    #allocation10 [shape = 'u8[2048]{0}', space=vmem, size = 0x800, scoped, tag = 'input window, operand 4, single buffered']
    #allocation11 [shape = 'u8[262144]{0}', space=vmem, size = 0x40000, scoped, tag = 'input window, operand 5, single buffered']
    #allocation12 [shape = 's32[1]{0}', space=sflag, size = 0x4, scoped, tag = 'scoped memory for tpu_custom_call.1']
    #allocation13 [shape = 'u8[512]{0}', space=vmem, size = 0x400, scoped, tag = 'input window, operand 6, single buffered']
    #allocation14 [shape = 'u8[65536]{0}', space=vmem, size = 0x10000, scoped, tag = 'input window, operand 7, single buffered']
    #allocation15 [shape = 's32[1]{0}', space=sflag, size = 0x4, scoped, tag = 'scoped memory for tpu_custom_call.1']
    #allocation16 [shape = 'u8[512]{0}', space=vmem, size = 0x400, scoped, tag = 'input window, operand 8, single buffered']
    #allocation17 [shape = 'u8[8192]{0}', space=vmem, size = 0x2000, scoped, tag = 'output window, operand 0']
    %14 = vsyncpa [#allocation3], 0
    %s15 = scalar_lea.sflag [#allocation3], 1
    %16 = vsyncpa %s15, 0
    %17 = vsyncpa [#allocation6], 0
    %18 = vsyncpa [#allocation9], 0
    %19 = vsyncpa [#allocation12], 0
    %20 = vsyncpa [#allocation15], 0
    %21 = vsyncpa [#allocation4], 0
    %s22 = scalar_lea.sflag [#allocation4], 1
    %23 = vsyncpa %s22, 0
    loop: start=0, step=1, limit=4
    $region2: #{tpu_custom_call.1} parent=1 // loop_pre_header
      _
    $region3: #{tpu_custom_call.1} parent=1 // loop_header
      %s25 = sphi 0, %s29
      %p26 = scmp.ge.s32.totalorder %s25, 4
      %s35 = sphi 0, %s37
      %s38 = sphi 0, %s35
      %s39 = sphi 0, %s38
      %s55 = sphi 0, %s39
      %s59 = sphi 0, %s59
      %s61 = sphi 0, %s59
      %s62 = sphi 0, %s61
      %s76 = sphi 0, %s62
      %s80 = sphi 0, %s80
      %s82 = sphi 0, %s80
      %s83 = sphi 0, %s82
      %s97 = sphi 0, %s83
      %s101 = sphi 0, %s101
      %s103 = sphi 0, %s101
      %s104 = sphi 0, %s103
      %s118 = sphi 0, %s104
      %s122 = sphi 0, %s122
      %s124 = sphi 0, %s122
      %s125 = sphi 0, %s124
      %s139 = sphi 0, %s125
      %s143 = sphi 0, %s143
      %s145 = sphi 0, %s143
      %s146 = sphi 0, %s145
      %s160 = sphi 0, %s146
      %s164 = sphi 0, %s164
      %s166 = sphi 0, %s164
      %s167 = sphi 0, %s166
      %s181 = sphi 0, %s167
      %s185 = sphi 0, %s185
      %s187 = sphi 0, %s185
      %s188 = sphi 0, %s187
      %s202 = sphi 0, %s188
      %s206 = sphi 0, %s206
      %s208 = sphi 0, %s206
      %s209 = sphi 0, %s208
      %s223 = sphi 0, %s209
      %s229 = sphi 0, %s231
      %s232 = sphi 0, %s229
      %s233 = sphi 0, %s232
      %s249 = sphi 0, %s233
    $region4: #{tpu_custom_call.1} parent=1 // loop_header_branch
      %28 = sbr.rel (%p26) target = $region8
    $region5: #{tpu_custom_call.1} parent=1 // loop_body
      %s30 = ssub.s32 %s25, 1
      %s31 = ssub.s32 %s25, 2
      %s32 = sadd.s32 %s25, 1
      %s33 = ssub.s32 %s25, %s32
      %p34 = scmp.eq.s32.totalorder %s33, 0
      %s36 = sadd.s32 %s35, 1
      %s37 = scalar_select %p34, %s35, %s36
      %p40 = pneg %p34
      %p41 = scmp.eq.s32.totalorder %s25, 1
      %p42 = por %p40, %p41
      %p43 = scmp.ne.s32.totalorder %s35, %s38
      %p44 = scmp.eq.s32.totalorder %s25, 0
      %p45 = por %p43, %p44
      %p46 = scmp.ne.s32.totalorder %s35, %s38
      %p47 = scmp.eq.s32.totalorder %s30, 1
      %p48 = por %p46, %p47
      %p49 = scmp.ne.s32.totalorder %s38, %s39
      %p50 = scmp.eq.s32.totalorder %s30, 0
      %p51 = por %p49, %p50
      %p52 = scmp.ne.s32.totalorder %s38, %s39
      %p53 = scmp.eq.s32.totalorder %s31, 1
      %p54 = por %p52, %p53
      %p56 = scmp.ne.s32.totalorder %s39, %s55
      %p57 = scmp.eq.s32.totalorder %s31, 0
      %p58 = por %p56, %p57
      %s60 = sadd.s32 %s59, 1
      %p63 = scmp.eq.s32.totalorder %s25, 1
      %p64 = scmp.ne.s32.totalorder %s59, %s61
      %p65 = scmp.eq.s32.totalorder %s25, 0
      %p66 = por %p64, %p65
      %p67 = scmp.ne.s32.totalorder %s59, %s61
      %p68 = scmp.eq.s32.totalorder %s30, 1
      %p69 = por %p67, %p68
      %p70 = scmp.ne.s32.totalorder %s61, %s62
      %p71 = scmp.eq.s32.totalorder %s30, 0
      %p72 = por %p70, %p71
      %p73 = scmp.ne.s32.totalorder %s61, %s62
      %p74 = scmp.eq.s32.totalorder %s31, 1
      %p75 = por %p73, %p74
      %p77 = scmp.ne.s32.totalorder %s62, %s76
      %p78 = scmp.eq.s32.totalorder %s31, 0
      %p79 = por %p77, %p78
      %s81 = sadd.s32 %s80, 1
      %p84 = scmp.eq.s32.totalorder %s25, 1
      %p85 = scmp.ne.s32.totalorder %s80, %s82
      %p86 = scmp.eq.s32.totalorder %s25, 0
      %p87 = por %p85, %p86
      %p88 = scmp.ne.s32.totalorder %s80, %s82
      %p89 = scmp.eq.s32.totalorder %s30, 1
      %p90 = por %p88, %p89
      %p91 = scmp.ne.s32.totalorder %s82, %s83
      %p92 = scmp.eq.s32.totalorder %s30, 0
      %p93 = por %p91, %p92
      %p94 = scmp.ne.s32.totalorder %s82, %s83
      %p95 = scmp.eq.s32.totalorder %s31, 1
      %p96 = por %p94, %p95
      %p98 = scmp.ne.s32.totalorder %s83, %s97
      %p99 = scmp.eq.s32.totalorder %s31, 0
      %p100 = por %p98, %p99
      %s102 = sadd.s32 %s101, 1
      %p105 = scmp.eq.s32.totalorder %s25, 1
      %p106 = scmp.ne.s32.totalorder %s101, %s103
      %p107 = scmp.eq.s32.totalorder %s25, 0
      %p108 = por %p106, %p107
      %p109 = scmp.ne.s32.totalorder %s101, %s103
      %p110 = scmp.eq.s32.totalorder %s30, 1
      %p111 = por %p109, %p110
      %p112 = scmp.ne.s32.totalorder %s103, %s104
      %p113 = scmp.eq.s32.totalorder %s30, 0
      %p114 = por %p112, %p113
      %p115 = scmp.ne.s32.totalorder %s103, %s104
      %p116 = scmp.eq.s32.totalorder %s31, 1
      %p117 = por %p115, %p116
      %p119 = scmp.ne.s32.totalorder %s104, %s118
      %p120 = scmp.eq.s32.totalorder %s31, 0
      %p121 = por %p119, %p120
      %s123 = sadd.s32 %s122, 1
      %p126 = scmp.eq.s32.totalorder %s25, 1
      %p127 = scmp.ne.s32.totalorder %s122, %s124
      %p128 = scmp.eq.s32.totalorder %s25, 0
      %p129 = por %p127, %p128
      %p130 = scmp.ne.s32.totalorder %s122, %s124
      %p131 = scmp.eq.s32.totalorder %s30, 1
      %p132 = por %p130, %p131
      %p133 = scmp.ne.s32.totalorder %s124, %s125
      %p134 = scmp.eq.s32.totalorder %s30, 0
      %p135 = por %p133, %p134
      %p136 = scmp.ne.s32.totalorder %s124, %s125
      %p137 = scmp.eq.s32.totalorder %s31, 1
      %p138 = por %p136, %p137
      %p140 = scmp.ne.s32.totalorder %s125, %s139
      %p141 = scmp.eq.s32.totalorder %s31, 0
      %p142 = por %p140, %p141
      %s144 = sadd.s32 %s143, 1
      %p147 = scmp.eq.s32.totalorder %s25, 1
      %p148 = scmp.ne.s32.totalorder %s143, %s145
      %p149 = scmp.eq.s32.totalorder %s25, 0
      %p150 = por %p148, %p149
      %p151 = scmp.ne.s32.totalorder %s143, %s145
      %p152 = scmp.eq.s32.totalorder %s30, 1
      %p153 = por %p151, %p152
      %p154 = scmp.ne.s32.totalorder %s145, %s146
      %p155 = scmp.eq.s32.totalorder %s30, 0
      %p156 = por %p154, %p155
      %p157 = scmp.ne.s32.totalorder %s145, %s146
      %p158 = scmp.eq.s32.totalorder %s31, 1
      %p159 = por %p157, %p158
      %p161 = scmp.ne.s32.totalorder %s146, %s160
      %p162 = scmp.eq.s32.totalorder %s31, 0
      %p163 = por %p161, %p162
      %s165 = sadd.s32 %s164, 1
      %p168 = scmp.eq.s32.totalorder %s25, 1
      %p169 = scmp.ne.s32.totalorder %s164, %s166
      %p170 = scmp.eq.s32.totalorder %s25, 0
      %p171 = por %p169, %p170
      %p172 = scmp.ne.s32.totalorder %s164, %s166
      %p173 = scmp.eq.s32.totalorder %s30, 1
      %p174 = por %p172, %p173
      %p175 = scmp.ne.s32.totalorder %s166, %s167
      %p176 = scmp.eq.s32.totalorder %s30, 0
      %p177 = por %p175, %p176
      %p178 = scmp.ne.s32.totalorder %s166, %s167
      %p179 = scmp.eq.s32.totalorder %s31, 1
      %p180 = por %p178, %p179
      %p182 = scmp.ne.s32.totalorder %s167, %s181
      %p183 = scmp.eq.s32.totalorder %s31, 0
      %p184 = por %p182, %p183
      %s186 = sadd.s32 %s185, 1
      %p189 = scmp.eq.s32.totalorder %s25, 1
      %p190 = scmp.ne.s32.totalorder %s185, %s187
      %p191 = scmp.eq.s32.totalorder %s25, 0
      %p192 = por %p190, %p191
      %p193 = scmp.ne.s32.totalorder %s185, %s187
      %p194 = scmp.eq.s32.totalorder %s30, 1
      %p195 = por %p193, %p194
      %p196 = scmp.ne.s32.totalorder %s187, %s188
      %p197 = scmp.eq.s32.totalorder %s30, 0
      %p198 = por %p196, %p197
      %p199 = scmp.ne.s32.totalorder %s187, %s188
      %p200 = scmp.eq.s32.totalorder %s31, 1
      %p201 = por %p199, %p200
      %p203 = scmp.ne.s32.totalorder %s188, %s202
      %p204 = scmp.eq.s32.totalorder %s31, 0
      %p205 = por %p203, %p204
      %s207 = sadd.s32 %s206, 1
      %p210 = scmp.eq.s32.totalorder %s25, 1
      %p211 = scmp.ne.s32.totalorder %s206, %s208
      %p212 = scmp.eq.s32.totalorder %s25, 0
      %p213 = por %p211, %p212
      %p214 = scmp.ne.s32.totalorder %s206, %s208
      %p215 = scmp.eq.s32.totalorder %s30, 1
      %p216 = por %p214, %p215
      %p217 = scmp.ne.s32.totalorder %s208, %s209
      %p218 = scmp.eq.s32.totalorder %s30, 0
      %p219 = por %p217, %p218
      %p220 = scmp.ne.s32.totalorder %s208, %s209
      %p221 = scmp.eq.s32.totalorder %s31, 1
      %p222 = por %p220, %p221
      %p224 = scmp.ne.s32.totalorder %s209, %s223
      %p225 = scmp.eq.s32.totalorder %s31, 0
      %p226 = por %p224, %p225
      %s227 = ssub.s32 %s25, %s32
      %p228 = scmp.eq.s32.totalorder %s227, 0
      %s230 = sadd.s32 %s229, 1
      %s231 = scalar_select %p228, %s229, %s230
      %p234 = pneg %p228
      %p235 = scmp.eq.s32.totalorder %s25, 1
      %p236 = por %p234, %p235
      %p237 = scmp.ne.s32.totalorder %s229, %s232
      %p238 = scmp.eq.s32.totalorder %s25, 0
      %p239 = por %p237, %p238
      %p240 = scmp.ne.s32.totalorder %s229, %s232
      %p241 = scmp.eq.s32.totalorder %s30, 1
      %p242 = por %p240, %p241
      %p243 = scmp.ne.s32.totalorder %s232, %s233
      %p244 = scmp.eq.s32.totalorder %s30, 0
      %p245 = por %p243, %p244
      %p246 = scmp.ne.s32.totalorder %s232, %s233
      %p247 = scmp.eq.s32.totalorder %s31, 1
      %p248 = por %p246, %p247
      %p250 = scmp.ne.s32.totalorder %s233, %s249
      %p251 = scmp.eq.s32.totalorder %s31, 0
      %p252 = por %p250, %p251
      %p253 = scmp.le.s32.totalorder 1, %s25
      %p254 = scmp.lt.s32.totalorder %s25, 3
      %p255 = pnand %p253, %p254
      %p256 = pneg %p255
      // Predicated region
      $region9: #{tpu_custom_call.1} parent=5 // pred_check
        _
      $region10: #{tpu_custom_call.1} parent=5 // pred_check_branch
        %258 = sbr.rel (%p255) target = $region12
      $region11: #{tpu_custom_call.1} parent=5 // pred_region
        %s259 = ssub.s32 %s25, 1
        // Predicated region
        $region13: #{tpu_custom_call.1} parent=11 // pred_check
          %p260 = pneg %p72
        $region14: #{tpu_custom_call.1} parent=11 // pred_check_branch
          %262 = sbr.rel (%p260) target = $region16
        $region15: #{tpu_custom_call.1} parent=11 // pred_region
          %s264 = ssub.s32 24320, 24320
          %265 = vsyncadd [#allocation6], %s264
          %s266 = sshll.u32 [#allocation5], 4
          %s267 = int_to_ptr.vmem [resolvable:$true] %s266
          %272 = dma.hbm_to_vmem [thread:$0]  %s1, 24320, %s267, [#allocation6], 640, 640, 40
        $region16: #{tpu_custom_call.1} parent=11 // pred_fallthru
          _
        // Predicated region
        $region17: #{tpu_custom_call.1} parent=11 // pred_check
          %p273 = pneg %p93
        $region18: #{tpu_custom_call.1} parent=11 // pred_check_branch
          %275 = sbr.rel (%p273) target = $region20
        $region19: #{tpu_custom_call.1} parent=11 // pred_region
          %s277 = ssub.s32 80, 80
          %278 = vsyncadd [#allocation6], %s277
          %s280 = sshll.u32 [#allocation7], 4
          %s281 = int_to_ptr.vmem [resolvable:$true] %s280
          %283 = dma.hbm_to_vmem [thread:$0]  %s2, 80, %s281, [#allocation6]
        $region20: #{tpu_custom_call.1} parent=11 // pred_fallthru
          _
        // Predicated region
        $region21: #{tpu_custom_call.1} parent=11 // pred_check
          %p284 = pneg %p114
        $region22: #{tpu_custom_call.1} parent=11 // pred_check_branch
          %286 = sbr.rel (%p284) target = $region24
        $region23: #{tpu_custom_call.1} parent=11 // pred_region
          %s288 = ssub.s32 40960, 40960
          %289 = vsyncadd [#allocation9], %s288
          %s290 = sshll.u32 [#allocation8], 4
          %s291 = int_to_ptr.vmem [resolvable:$true] %s290
          %296 = dma.hbm_to_vmem [thread:$0]  %s3, 40960, %s291, [#allocation9], 512, 512, 32
        $region24: #{tpu_custom_call.1} parent=11 // pred_fallthru
          _
        // Predicated region
        $region25: #{tpu_custom_call.1} parent=11 // pred_check
          %p297 = pneg %p135
        $region26: #{tpu_custom_call.1} parent=11 // pred_check_branch
          %299 = sbr.rel (%p297) target = $region28
        $region27: #{tpu_custom_call.1} parent=11 // pred_region
          %s301 = ssub.s32 64, 64
          %302 = vsyncadd [#allocation9], %s301
          %s304 = sshll.u32 [#allocation10], 4
          %s305 = int_to_ptr.vmem [resolvable:$true] %s304
          %307 = dma.hbm_to_vmem [thread:$0]  %s4, 64, %s305, [#allocation9]
        $region28: #{tpu_custom_call.1} parent=11 // pred_fallthru
          _
        // Predicated region
        $region29: #{tpu_custom_call.1} parent=11 // pred_check
          %p308 = pneg %p156
        $region30: #{tpu_custom_call.1} parent=11 // pred_check_branch
          %310 = sbr.rel (%p308) target = $region32
        $region31: #{tpu_custom_call.1} parent=11 // pred_region
          %s312 = ssub.s32 8192, 8192
          %313 = vsyncadd [#allocation12], %s312
          %s314 = sshll.u32 [#allocation11], 4
          %s315 = int_to_ptr.vmem [resolvable:$true] %s314
          %320 = dma.hbm_to_vmem [thread:$0]  %s5, 8192, %s315, [#allocation12], 128, 128, 8
        $region32: #{tpu_custom_call.1} parent=11 // pred_fallthru
          _
        // Predicated region
        $region33: #{tpu_custom_call.1} parent=11 // pred_check
          %p321 = pneg %p177
        $region34: #{tpu_custom_call.1} parent=11 // pred_check_branch
          %323 = sbr.rel (%p321) target = $region36
        $region35: #{tpu_custom_call.1} parent=11 // pred_region
          %s325 = ssub.s32 16, 16
          %326 = vsyncadd [#allocation12], %s325
          %s328 = sshll.u32 [#allocation13], 4
          %s329 = int_to_ptr.vmem [resolvable:$true] %s328
          %331 = dma.hbm_to_vmem [thread:$0]  %s6, 16, %s329, [#allocation12]
        $region36: #{tpu_custom_call.1} parent=11 // pred_fallthru
          _
        // Predicated region
        $region37: #{tpu_custom_call.1} parent=11 // pred_check
          %p332 = pneg %p198
        $region38: #{tpu_custom_call.1} parent=11 // pred_check_branch
          %334 = sbr.rel (%p332) target = $region40
        $region39: #{tpu_custom_call.1} parent=11 // pred_region
          %s336 = ssub.s32 2048, 2048
          %337 = vsyncadd [#allocation15], %s336
          %s338 = sshll.u32 [#allocation14], 4
          %s339 = int_to_ptr.vmem [resolvable:$true] %s338
          %344 = dma.hbm_to_vmem [thread:$0]  %s7, 2048, %s339, [#allocation15], 128, 128, 8
        $region40: #{tpu_custom_call.1} parent=11 // pred_fallthru
          _
        // Predicated region
        $region41: #{tpu_custom_call.1} parent=11 // pred_check
          %p345 = pneg %p219
        $region42: #{tpu_custom_call.1} parent=11 // pred_check_branch
          %347 = sbr.rel (%p345) target = $region44
        $region43: #{tpu_custom_call.1} parent=11 // pred_region
          %s349 = ssub.s32 16, 16
          %350 = vsyncadd [#allocation15], %s349
          %s352 = sshll.u32 [#allocation16], 4
          %s353 = int_to_ptr.vmem [resolvable:$true] %s352
          %355 = dma.hbm_to_vmem [thread:$0]  %s8, 16, %s353, [#allocation15]
        $region44: #{tpu_custom_call.1} parent=11 // pred_fallthru
          _
      $region12: #{tpu_custom_call.1} parent=5 // pred_fallthru
        _
      %p356 = scmp.lt.s32.totalorder %s25, 2
      // Predicated region
      $region45: #{tpu_custom_call.1} parent=5 // pred_check
        %p357 = pneg %p356
      $region46: #{tpu_custom_call.1} parent=5 // pred_check_branch
        %359 = sbr.rel (%p357) target = $region48
      $region47: #{tpu_custom_call.1} parent=5 // pred_region
        // Predicated region
        $region49: #{tpu_custom_call.1} parent=47 // pred_check
          %p360 = pneg %p45
        $region50: #{tpu_custom_call.1} parent=47 // pred_check_branch
          %362 = sbr.rel (%p360) target = $region52
        $region51: #{tpu_custom_call.1} parent=47 // pred_region
          %s363 = sand.u32 %s35, 1
          %s364 = scalar_lea.sflag [#allocation3], %s363
          %s365 = sand.u32 %s35, 1
          %s366 = smul.addr %s365, 24
          %s367 = scalar_lea.vmem [#allocation2], %s366
          %s369 = ssub.s32 384, 384
          %370 = vsyncadd %s364, %s369
          %s371 = smul.addr %s25, 3
          %s372 = smul.addr %s371, 128
          %s373 = scalar_lea.hbm %s0, %s372
          %s375 = sshll.u32 %s367, 4
          %s376 = int_to_ptr.vmem [resolvable:$true] %s375
          %378 = dma.hbm_to_vmem [thread:$0]  %s373, 384, %s376, %s364
        $region52: #{tpu_custom_call.1} parent=47 // pred_fallthru
          _
      $region48: #{tpu_custom_call.1} parent=5 // pred_fallthru
        _
      %p379 = scmp.le.s32.totalorder 1, %s25
      %p380 = scmp.lt.s32.totalorder %s25, 3
      %p381 = pnand %p379, %p380
      %p382 = pneg %p381
      // Predicated region
      $region53: #{tpu_custom_call.1} parent=5 // pred_check
        _
      $region54: #{tpu_custom_call.1} parent=5 // pred_check_branch
        %384 = sbr.rel (%p381) target = $region56
      $region55: #{tpu_custom_call.1} parent=5 // pred_region
        %s385 = ssub.s32 %s25, 1
        %s386 = sand.u32 %s38, 1
        %s387 = scalar_lea.sflag [#allocation3], %s386
        %s388 = sand.u32 %s38, 1
        %s389 = smul.addr %s388, 24
        %s390 = scalar_lea.vmem [#allocation2], %s389
        // Predicated region
        $region57: #{tpu_custom_call.1} parent=55 // pred_check
          %p391 = pneg %p51
        $region58: #{tpu_custom_call.1} parent=55 // pred_check_branch
          %393 = sbr.rel (%p391) target = $region60
        $region59: #{tpu_custom_call.1} parent=55 // pred_region
          %394 = dma.done %s387, 384
        $region60: #{tpu_custom_call.1} parent=55 // pred_fallthru
          _
        // Predicated region
        $region61: #{tpu_custom_call.1} parent=55 // pred_check
          %p395 = pneg %p72
        $region62: #{tpu_custom_call.1} parent=55 // pred_check_branch
          %397 = sbr.rel (%p395) target = $region64
        $region63: #{tpu_custom_call.1} parent=55 // pred_region
          %398 = dma.done [#allocation6], 24320
        $region64: #{tpu_custom_call.1} parent=55 // pred_fallthru
          _
        // Predicated region
        $region65: #{tpu_custom_call.1} parent=55 // pred_check
          %p399 = pneg %p93
        $region66: #{tpu_custom_call.1} parent=55 // pred_check_branch
          %401 = sbr.rel (%p399) target = $region68
        $region67: #{tpu_custom_call.1} parent=55 // pred_region
          %402 = dma.done [#allocation6], 80
        $region68: #{tpu_custom_call.1} parent=55 // pred_fallthru
          _
        // Predicated region
        $region69: #{tpu_custom_call.1} parent=55 // pred_check
          %p403 = pneg %p114
        $region70: #{tpu_custom_call.1} parent=55 // pred_check_branch
          %405 = sbr.rel (%p403) target = $region72
        $region71: #{tpu_custom_call.1} parent=55 // pred_region
          %406 = dma.done [#allocation9], 40960
        $region72: #{tpu_custom_call.1} parent=55 // pred_fallthru
          _
        // Predicated region
        $region73: #{tpu_custom_call.1} parent=55 // pred_check
          %p407 = pneg %p135
        $region74: #{tpu_custom_call.1} parent=55 // pred_check_branch
          %409 = sbr.rel (%p407) target = $region76
        $region75: #{tpu_custom_call.1} parent=55 // pred_region
          %410 = dma.done [#allocation9], 64
        $region76: #{tpu_custom_call.1} parent=55 // pred_fallthru
          _
        // Predicated region
        $region77: #{tpu_custom_call.1} parent=55 // pred_check
          %p411 = pneg %p156
        $region78: #{tpu_custom_call.1} parent=55 // pred_check_branch
          %413 = sbr.rel (%p411) target = $region80
        $region79: #{tpu_custom_call.1} parent=55 // pred_region
          %414 = dma.done [#allocation12], 8192
        $region80: #{tpu_custom_call.1} parent=55 // pred_fallthru
          _
        // Predicated region
        $region81: #{tpu_custom_call.1} parent=55 // pred_check
          %p415 = pneg %p177
        $region82: #{tpu_custom_call.1} parent=55 // pred_check_branch
          %417 = sbr.rel (%p415) target = $region84
        $region83: #{tpu_custom_call.1} parent=55 // pred_region
          %418 = dma.done [#allocation12], 16
        $region84: #{tpu_custom_call.1} parent=55 // pred_fallthru
          _
        // Predicated region
        $region85: #{tpu_custom_call.1} parent=55 // pred_check
          %p419 = pneg %p198
        $region86: #{tpu_custom_call.1} parent=55 // pred_check_branch
          %421 = sbr.rel (%p419) target = $region88
        $region87: #{tpu_custom_call.1} parent=55 // pred_region
          %422 = dma.done [#allocation15], 2048
        $region88: #{tpu_custom_call.1} parent=55 // pred_fallthru
          _
        // Predicated region
        $region89: #{tpu_custom_call.1} parent=55 // pred_check
          %p423 = pneg %p219
        $region90: #{tpu_custom_call.1} parent=55 // pred_check_branch
          %425 = sbr.rel (%p423) target = $region92
        $region91: #{tpu_custom_call.1} parent=55 // pred_region
          %426 = dma.done [#allocation15], 16
        $region92: #{tpu_custom_call.1} parent=55 // pred_fallthru
          _
        %s427 = sand.u32 %s38, 1
        %s428 = scalar_lea.sflag [#allocation3], %s427
        %s429 = sand.u32 %s38, 1
        %s430 = smul.addr %s429, 24
        %s431 = scalar_lea.vmem [#allocation2], %s430
        %p432 = pneg %p51
        %p433 = pneg %p48
        %p434 = pneg %p72
        %p435 = pneg %p69
        %p436 = pneg %p93
        %p437 = pneg %p90
        %p438 = pneg %p114
        %p439 = pneg %p111
        %p440 = pneg %p135
        %p441 = pneg %p132
        %p442 = pneg %p156
        %p443 = pneg %p153
        %p444 = pneg %p177
        %p445 = pneg %p174
        %p446 = pneg %p198
        %p447 = pneg %p195
        %p448 = pneg %p219
        %p449 = pneg %p216
        %p450 = pneg %p245
        %p451 = pneg %p242
        %s452 = sand.u32 %s232, 1
        %s453 = scalar_lea.sflag [#allocation4], %s452
        %s454 = sand.u32 %s232, 1
        %s455 = smul.addr %s454, 8
        %s456 = scalar_lea.vmem [#allocation17], %s455
        %v457 = vld [vmem:[%s390] sm:$0xff]
        %v458 = vld [vmem:[%s390 + $0x8] sm:$0xff]
        %v459 = vld [vmem:[%s390 + $0x10] sm:$0xff]
        %v460 = vld [vmem:[#allocation5] sm:$0xff]
        %v461 = vld [vmem:[#allocation5 + $0x8] sm:$0xff]
        %v462 = vld [vmem:[#allocation5 + $0x10] sm:$0xff]
        %v463 = vld [vmem:[#allocation5 + $0x18] sm:$0xff]
        %v464 = vld [vmem:[#allocation5 + $0x20] sm:$0xff]
        %v465 = vld [vmem:[#allocation5 + $0x28] sm:$0xff]
        %v466 = vld [vmem:[#allocation5 + $0x30] sm:$0xff]
        %v467 = vld [vmem:[#allocation5 + $0x38] sm:$0xff]
        %v468 = vld [vmem:[#allocation5 + $0x40] sm:$0xff]
        %v469 = vld [vmem:[#allocation5 + $0x48] sm:$0xff]
        %v470 = vld [vmem:[#allocation5 + $0x50] sm:$0xff]
        %v471 = vld [vmem:[#allocation5 + $0x58] sm:$0xff]
        %v472 = vld [vmem:[#allocation5 + $0x60] sm:$0xff]
        %v473 = vld [vmem:[#allocation5 + $0x68] sm:$0xff]
        %v474 = vld [vmem:[#allocation5 + $0x70] sm:$0xff]
        %v475 = vld [vmem:[#allocation5 + $0x78] sm:$0xff]
        %v476 = vld [vmem:[#allocation5 + $0x80] sm:$0xff]
        %v477 = vld [vmem:[#allocation5 + $0x88] sm:$0xff]
        %v478 = vld [vmem:[#allocation5 + $0x90] sm:$0xff]
        %v479 = vld [vmem:[#allocation5 + $0x98] sm:$0xff]
        %v480 = vld [vmem:[#allocation5 + $0xa0] sm:$0xff]
        %v481 = vld [vmem:[#allocation5 + $0xa8] sm:$0xff]
        %v482 = vld [vmem:[#allocation5 + $0xb0] sm:$0xff]
        %v483 = vld [vmem:[#allocation5 + $0xb8] sm:$0xff]
        %v484 = vld [vmem:[#allocation5 + $0xc0] sm:$0xff]
        %v485 = vld [vmem:[#allocation5 + $0xc8] sm:$0xff]
        %v486 = vld [vmem:[#allocation5 + $0xd0] sm:$0xff]
        %v487 = vld [vmem:[#allocation5 + $0xd8] sm:$0xff]
        %v488 = vld [vmem:[#allocation5 + $0xe0] sm:$0xff]
        %v489 = vld [vmem:[#allocation5 + $0xe8] sm:$0xff]
        %v490 = vld [vmem:[#allocation5 + $0xf0] sm:$0xff]
        %v491 = vld [vmem:[#allocation5 + $0xf8] sm:$0xff]
        %v492 = vld [vmem:[#allocation5 + $0x100] sm:$0xff]
        %v493 = vld [vmem:[#allocation5 + $0x108] sm:$0xff]
        %v494 = vld [vmem:[#allocation5 + $0x110] sm:$0xff]
        %v495 = vld [vmem:[#allocation5 + $0x118] sm:$0xff]
        %v496 = vld [vmem:[#allocation5 + $0x120] sm:$0xff]
        %v497 = vld [vmem:[#allocation5 + $0x128] sm:$0xff]
        %v498 = vld [vmem:[#allocation5 + $0x130] sm:$0xff]
        %v499 = vld [vmem:[#allocation5 + $0x138] sm:$0xff]
        %v500 = vld [vmem:[#allocation5 + $0x140] sm:$0xff]
        %v501 = vld [vmem:[#allocation5 + $0x148] sm:$0xff]
        %v502 = vld [vmem:[#allocation5 + $0x150] sm:$0xff]
        %v503 = vld [vmem:[#allocation5 + $0x158] sm:$0xff]
        %v504 = vld [vmem:[#allocation5 + $0x160] sm:$0xff]
        %v505 = vld [vmem:[#allocation5 + $0x168] sm:$0xff]
        %v506 = vld [vmem:[#allocation5 + $0x170] sm:$0xff]
        %v507 = vld [vmem:[#allocation5 + $0x178] sm:$0xff]
        %v508 = vld [vmem:[#allocation5 + $0x180] sm:$0xff]
        %v509 = vld [vmem:[#allocation5 + $0x188] sm:$0xff]
        %v510 = vld [vmem:[#allocation5 + $0x190] sm:$0xff]
        %v511 = vld [vmem:[#allocation5 + $0x198] sm:$0xff]
        %v512 = vld [vmem:[#allocation5 + $0x1a0] sm:$0xff]
        %v513 = vld [vmem:[#allocation5 + $0x1a8] sm:$0xff]
        %v514 = vld [vmem:[#allocation5 + $0x1b0] sm:$0xff]
        %v515 = vld [vmem:[#allocation5 + $0x1b8] sm:$0xff]
        %v516 = vld [vmem:[#allocation5 + $0x1c0] sm:$0xff]
        %v517 = vld [vmem:[#allocation5 + $0x1c8] sm:$0xff]
        %v518 = vld [vmem:[#allocation5 + $0x1d0] sm:$0xff]
        %v519 = vld [vmem:[#allocation5 + $0x1d8] sm:$0xff]
        %v520 = vld [vmem:[#allocation5 + $0x1e0] sm:$0xff]
        %v521 = vld [vmem:[#allocation5 + $0x1e8] sm:$0xff]
        %v522 = vld [vmem:[#allocation5 + $0x1f0] sm:$0xff]
        %v523 = vld [vmem:[#allocation5 + $0x1f8] sm:$0xff]
        %v524 = vld [vmem:[#allocation5 + $0x200] sm:$0xff]
        %v525 = vld [vmem:[#allocation5 + $0x208] sm:$0xff]
        %v526 = vld [vmem:[#allocation5 + $0x210] sm:$0xff]
        %v527 = vld [vmem:[#allocation5 + $0x218] sm:$0xff]
        %v528 = vld [vmem:[#allocation5 + $0x220] sm:$0xff]
        %v529 = vld [vmem:[#allocation5 + $0x228] sm:$0xff]
        %v530 = vld [vmem:[#allocation5 + $0x230] sm:$0xff]
        %v531 = vld [vmem:[#allocation5 + $0x238] sm:$0xff]
        %v532 = vld [vmem:[#allocation5 + $0x240] sm:$0xff]
        %v533 = vld [vmem:[#allocation5 + $0x248] sm:$0xff]
        %v534 = vld [vmem:[#allocation5 + $0x250] sm:$0xff]
        %v535 = vld [vmem:[#allocation5 + $0x258] sm:$0xff]
        %v536 = vld [vmem:[#allocation5 + $0x260] sm:$0xff]
        %v537 = vld [vmem:[#allocation5 + $0x268] sm:$0xff]
        %v538 = vld [vmem:[#allocation5 + $0x270] sm:$0xff]
        %v539 = vld [vmem:[#allocation5 + $0x278] sm:$0xff]
        %v540 = vld [vmem:[#allocation5 + $0x280] sm:$0xff]
        %v541 = vld [vmem:[#allocation5 + $0x288] sm:$0xff]
        %v542 = vld [vmem:[#allocation5 + $0x290] sm:$0xff]
        %v543 = vld [vmem:[#allocation5 + $0x298] sm:$0xff]
        %v544 = vld [vmem:[#allocation5 + $0x2a0] sm:$0xff]
        %v545 = vld [vmem:[#allocation5 + $0x2a8] sm:$0xff]
        %v546 = vld [vmem:[#allocation5 + $0x2b0] sm:$0xff]
        %v547 = vld [vmem:[#allocation5 + $0x2b8] sm:$0xff]
        %v548 = vld [vmem:[#allocation5 + $0x2c0] sm:$0xff]
        %v549 = vld [vmem:[#allocation5 + $0x2c8] sm:$0xff]
        %v550 = vld [vmem:[#allocation5 + $0x2d0] sm:$0xff]
        %v551 = vld [vmem:[#allocation5 + $0x2d8] sm:$0xff]
        %v552 = vld [vmem:[#allocation5 + $0x2e0] sm:$0xff]
        %v553 = vld [vmem:[#allocation5 + $0x2e8] sm:$0xff]
        %v554 = vld [vmem:[#allocation5 + $0x2f0] sm:$0xff]
        %v555 = vld [vmem:[#allocation5 + $0x2f8] sm:$0xff]
        %v556 = vld [vmem:[#allocation5 + $0x300] sm:$0xff]
        %v557 = vld [vmem:[#allocation5 + $0x308] sm:$0xff]
        %v558 = vld [vmem:[#allocation5 + $0x310] sm:$0xff]
        %v559 = vld [vmem:[#allocation5 + $0x318] sm:$0xff]
        %v560 = vld [vmem:[#allocation5 + $0x320] sm:$0xff]
        %v561 = vld [vmem:[#allocation5 + $0x328] sm:$0xff]
        %v562 = vld [vmem:[#allocation5 + $0x330] sm:$0xff]
        %v563 = vld [vmem:[#allocation5 + $0x338] sm:$0xff]
        %v564 = vld [vmem:[#allocation5 + $0x340] sm:$0xff]
        %v565 = vld [vmem:[#allocation5 + $0x348] sm:$0xff]
        %v566 = vld [vmem:[#allocation5 + $0x350] sm:$0xff]
        %v567 = vld [vmem:[#allocation5 + $0x358] sm:$0xff]
        %v568 = vld [vmem:[#allocation5 + $0x360] sm:$0xff]
        %v569 = vld [vmem:[#allocation5 + $0x368] sm:$0xff]
        %v570 = vld [vmem:[#allocation5 + $0x370] sm:$0xff]
        %v571 = vld [vmem:[#allocation5 + $0x378] sm:$0xff]
        %v572 = vld [vmem:[#allocation5 + $0x380] sm:$0xff]
        %v573 = vld [vmem:[#allocation5 + $0x388] sm:$0xff]
        %v574 = vld [vmem:[#allocation5 + $0x390] sm:$0xff]
        %v575 = vld [vmem:[#allocation5 + $0x398] sm:$0xff]
        %v576 = vld [vmem:[#allocation5 + $0x3a0] sm:$0xff]
        %v577 = vld [vmem:[#allocation5 + $0x3a8] sm:$0xff]
        %v578 = vld [vmem:[#allocation5 + $0x3b0] sm:$0xff]
        %v579 = vld [vmem:[#allocation5 + $0x3b8] sm:$0xff]
        %v580 = vld [vmem:[#allocation5 + $0x3c0] sm:$0xff]
        %v581 = vld [vmem:[#allocation5 + $0x3c8] sm:$0xff]
        %v582 = vld [vmem:[#allocation5 + $0x3d0] sm:$0xff]
        %v583 = vld [vmem:[#allocation5 + $0x3d8] sm:$0xff]
        %v584 = vld [vmem:[#allocation5 + $0x3e0] sm:$0xff]
        %v585 = vld [vmem:[#allocation5 + $0x3e8] sm:$0xff]
        %v586 = vld [vmem:[#allocation5 + $0x3f0] sm:$0xff]
        %v587 = vld [vmem:[#allocation5 + $0x3f8] sm:$0xff]
        %v588 = vld [vmem:[#allocation5 + $0x400] sm:$0xff]
        %v589 = vld [vmem:[#allocation5 + $0x408] sm:$0xff]
        %v590 = vld [vmem:[#allocation5 + $0x410] sm:$0xff]
        %v591 = vld [vmem:[#allocation5 + $0x418] sm:$0xff]
        %v592 = vld [vmem:[#allocation5 + $0x420] sm:$0xff]
        %v593 = vld [vmem:[#allocation5 + $0x428] sm:$0xff]
        %v594 = vld [vmem:[#allocation5 + $0x430] sm:$0xff]
        %v595 = vld [vmem:[#allocation5 + $0x438] sm:$0xff]
        %v596 = vld [vmem:[#allocation5 + $0x440] sm:$0xff]
        %v597 = vld [vmem:[#allocation5 + $0x448] sm:$0xff]
        %v598 = vld [vmem:[#allocation5 + $0x450] sm:$0xff]
        %v599 = vld [vmem:[#allocation5 + $0x458] sm:$0xff]
        %v600 = vld [vmem:[#allocation5 + $0x460] sm:$0xff]
        %v601 = vld [vmem:[#allocation5 + $0x468] sm:$0xff]
        %v602 = vld [vmem:[#allocation5 + $0x470] sm:$0xff]
        %v603 = vld [vmem:[#allocation5 + $0x478] sm:$0xff]
        %v604 = vld [vmem:[#allocation5 + $0x480] sm:$0xff]
        %v605 = vld [vmem:[#allocation5 + $0x488] sm:$0xff]
        %v606 = vld [vmem:[#allocation5 + $0x490] sm:$0xff]
        %v607 = vld [vmem:[#allocation5 + $0x498] sm:$0xff]
        %v608 = vld [vmem:[#allocation5 + $0x4a0] sm:$0xff]
        %v609 = vld [vmem:[#allocation5 + $0x4a8] sm:$0xff]
        %v610 = vld [vmem:[#allocation5 + $0x4b0] sm:$0xff]
        %v611 = vld [vmem:[#allocation5 + $0x4b8] sm:$0xff]
        %v612 = vld [vmem:[#allocation5 + $0x4c0] sm:$0xff]
        %v613 = vld [vmem:[#allocation5 + $0x4c8] sm:$0xff]
        %v614 = vld [vmem:[#allocation5 + $0x4d0] sm:$0xff]
        %v615 = vld [vmem:[#allocation5 + $0x4d8] sm:$0xff]
        %v616 = vld [vmem:[#allocation5 + $0x4e0] sm:$0xff]
        %v617 = vld [vmem:[#allocation5 + $0x4e8] sm:$0xff]
        %v618 = vld [vmem:[#allocation5 + $0x4f0] sm:$0xff]
        %v619 = vld [vmem:[#allocation5 + $0x4f8] sm:$0xff]
        %v620 = vld [vmem:[#allocation5 + $0x500] sm:$0xff]
        %v621 = vld [vmem:[#allocation5 + $0x508] sm:$0xff]
        %v622 = vld [vmem:[#allocation5 + $0x510] sm:$0xff]
        %v623 = vld [vmem:[#allocation5 + $0x518] sm:$0xff]
        %v624 = vld [vmem:[#allocation5 + $0x520] sm:$0xff]
        %v625 = vld [vmem:[#allocation5 + $0x528] sm:$0xff]
        %v626 = vld [vmem:[#allocation5 + $0x530] sm:$0xff]
        %v627 = vld [vmem:[#allocation5 + $0x538] sm:$0xff]
        %v628 = vld [vmem:[#allocation5 + $0x540] sm:$0xff]
        %v629 = vld [vmem:[#allocation5 + $0x548] sm:$0xff]
        %v630 = vld [vmem:[#allocation5 + $0x550] sm:$0xff]
        %v631 = vld [vmem:[#allocation5 + $0x558] sm:$0xff]
        %v632 = vld [vmem:[#allocation5 + $0x560] sm:$0xff]
        %v633 = vld [vmem:[#allocation5 + $0x568] sm:$0xff]
        %v634 = vld [vmem:[#allocation5 + $0x570] sm:$0xff]
        %v635 = vld [vmem:[#allocation5 + $0x578] sm:$0xff]
        %v636 = vld [vmem:[#allocation5 + $0x580] sm:$0xff]
        %v637 = vld [vmem:[#allocation5 + $0x588] sm:$0xff]
        %v638 = vld [vmem:[#allocation5 + $0x590] sm:$0xff]
        %v639 = vld [vmem:[#allocation5 + $0x598] sm:$0xff]
        %v640 = vld [vmem:[#allocation5 + $0x5a0] sm:$0xff]
        %v641 = vld [vmem:[#allocation5 + $0x5a8] sm:$0xff]
        %v642 = vld [vmem:[#allocation5 + $0x5b0] sm:$0xff]
        %v643 = vld [vmem:[#allocation5 + $0x5b8] sm:$0xff]
        %v644 = vld [vmem:[#allocation5 + $0x5c0] sm:$0xff]
        %v645 = vld [vmem:[#allocation5 + $0x5c8] sm:$0xf]
        %v646 = vld [vmem:[#allocation5 + $0x5d0] sm:$0xf]
        %v647 = vld [vmem:[#allocation5 + $0x5d8] sm:$0xf]
        %v648 = vld [vmem:[#allocation5 + $0x5e0] sm:$0xf]
        %v649 = vld [vmem:[#allocation5 + $0x5e8] sm:$0xf]
        %v650 = vld [vmem:[#allocation7] sm:$0x1f]
        %v652 = vlaneseq
        %v653 = vshrl.u32 %v652, 7
        %v654 = vsub.s32 0, %v653
        %v655 = vrot.slane %v650, %v654
        %v656 = vlaneseq
        %v657 = vshrl.u32 %v656, 7
        %v658 = vsub.s32 1, %v657
        %v659 = vrot.slane %v650, %v658
        %v660 = vlaneseq
        %v661 = vshrl.u32 %v660, 7
        %v662 = vsub.s32 2, %v661
        %v663 = vrot.slane %v650, %v662
        %v664 = vlaneseq
        %v665 = vshrl.u32 %v664, 7
        %v666 = vsub.s32 3, %v665
        %v667 = vrot.slane %v650, %v666
        %v668 = vlaneseq
        %v669 = vshrl.u32 %v668, 7
        %v670 = vsub.s32 4, %v669
        %v671 = vrot.slane %v650, %v670
        %vm677 = vcmask 359424
        %v679 = vsel %vm677, %v459, 0
        %vm681 = vcmask 1043456
        %v683 = vsel %vm681, %v645, 0
        %v686 = vsel %vm681, %v646, 0
        %v689 = vsel %vm681, %v647, 0
        %v692 = vsel %vm681, %v648, 0
        %v695 = vsel %vm681, %v649, 0
        %697 = vmatprep.subr.mxu0 %v461
        %698 = vmatpush1.msra.mxu0 %v460
        %699 = vmatprep.subr.mxu0 %v466
        %700 = vmatpush1.msra.mxu0 %v465
        %701 = vmatprep.subr.mxu0 %v471
        %702 = vmatpush1.msra.mxu0 %v470
        %703 = vmatprep.subr.mxu0 %v476
        %704 = vmatpush1.msra.mxu0 %v475
        %705 = vmatprep.subr.mxu0 %v481
        %706 = vmatpush1.msra.mxu0 %v480
        %707 = vmatprep.subr.mxu0 %v486
        %708 = vmatpush1.msra.mxu0 %v485
        %709 = vmatprep.subr.mxu0 %v491
        %710 = vmatpush1.msra.mxu0 %v490
        %711 = vmatprep.subr.mxu0 %v496
        %712 = vmatpush1.msra.mxu0 %v495
        %713 = vmatprep.subr.mxu0 %v501
        %714 = vmatpush1.msra.mxu0 %v500
        %715 = vmatprep.subr.mxu0 %v506
        %716 = vmatpush1.msra.mxu0 %v505
        %717 = vmatprep.subr.mxu0 %v511
        %718 = vmatpush1.msra.mxu0 %v510
        %719 = vmatprep.subr.mxu0 %v516
        %720 = vmatpush1.msra.mxu0 %v515
        %721 = vmatprep.subr.mxu0 %v521
        %722 = vmatpush1.msra.mxu0 %v520
        %723 = vmatprep.subr.mxu0 %v526
        %724 = vmatpush1.msra.mxu0 %v525
        %725 = vmatprep.subr.mxu0 %v531
        %726 = vmatpush1.msra.mxu0 %v530
        %727 = vmatprep.subr.mxu0 %v536
        %728 = vmatpush1.msra.mxu0 %v535
        %729 = vmatprep.subr.mxu0 %v541
        %730 = vmatpush1.msra.mxu0 %v540
        %731 = vmatprep.subr.mxu0 %v546
        %732 = vmatpush1.msra.mxu0 %v545
        %733 = vmatprep.subr.mxu0 %v551
        %734 = vmatpush1.msra.mxu0 %v550
        %735 = vmatprep.subr.mxu0 %v556
        %736 = vmatpush1.msra.mxu0 %v555
        %737 = vmatprep.subr.mxu0 %v561
        %738 = vmatpush1.msra.mxu0 %v560
        %739 = vmatprep.subr.mxu0 %v566
        %740 = vmatpush1.msra.mxu0 %v565
        %741 = vmatprep.subr.mxu0 %v571
        %742 = vmatpush1.msra.mxu0 %v570
        %743 = vmatprep.subr.mxu0 %v576
        %744 = vmatpush1.msra.mxu0 %v575
        %745 = vmatprep.subr.mxu0 %v581
        %746 = vmatpush1.msra.mxu0 %v580
        %747 = vmatprep.subr.mxu0 %v586
        %748 = vmatpush1.msra.mxu0 %v585
        %749 = vmatprep.subr.mxu0 %v591
        %750 = vmatpush1.msra.mxu0 %v590
        %751 = vmatprep.subr.mxu0 %v596
        %752 = vmatpush1.msra.mxu0 %v595
        %753 = vmatprep.subr.mxu0 %v601
        %754 = vmatpush1.msra.mxu0 %v600
        %755 = vmatprep.subr.mxu0 %v606
        %756 = vmatpush1.msra.mxu0 %v605
        %757 = vmatprep.subr.mxu0 %v611
        %758 = vmatpush1.msra.mxu0 %v610
        %759 = vmatprep.subr.mxu0 %v616
        %760 = vmatpush1.msra.mxu0 %v615
        %761 = vmatprep.mubr.f32.mxu0 %v458
        %762 = vmatmul.mubr.f32.gmra.mrb[0].mxu0 %v457
        %v763 = vpop.f32.mrb[0].mxu0
        %v764 = vadd.f32 %v655, %v763
        %v765 = vpop.f32.mrb[0].mxu0
        %v766 = vadd.f32 %v659, %v765
        %767 = vdwg.mxu0
        %768 = vmatprep.subr.mxu0 %v621
        %769 = vmatpush1.msra.mxu0 %v620
        %770 = vmatprep.subr.mxu0 %v626
        %771 = vmatpush1.msra.mxu0 %v625
        %772 = vmatprep.subr.mxu0 %v631
        %773 = vmatpush1.msra.mxu0 %v630
        %774 = vmatprep.subr.mxu0 %v636
        %775 = vmatpush1.msra.mxu0 %v635
        %776 = vmatprep.subr.mxu0 %v641
        %777 = vmatpush1.msra.mxu0 %v640
        %778 = vmatprep.subr.mxu0 %v686
        %779 = vmatpush1.msra.mxu0 %v683
        %780 = vmatprep.subr.mxu0 0.0
        %781 = vmatpush1.msra.mxu0 0.0
        %782 = vmatprep.subr.mxu0 0.0
        %783 = vmatpush1.msra.mxu0 0.0
        %784 = vmatprep.subr.mxu0 0.0
        %785 = vmatpush1.msra.mxu0 0.0
        %786 = vmatprep.subr.mxu0 0.0
        %787 = vmatpush1.msra.mxu0 0.0
        %788 = vmatprep.subr.mxu0 0.0
        %789 = vmatpush1.msra.mxu0 0.0
        %790 = vmatprep.subr.mxu0 0.0
        %791 = vmatpush1.msra.mxu0 0.0
        %792 = vmatprep.subr.mxu0 0.0
        %793 = vmatpush1.msra.mxu0 0.0
        %794 = vmatprep.subr.mxu0 0.0
        %795 = vmatpush1.msra.mxu0 0.0
        %796 = vmatprep.subr.mxu0 0.0
        %797 = vmatpush1.msra.mxu0 0.0
        %798 = vmatprep.subr.mxu0 0.0
        %799 = vmatpush1.msra.mxu0 0.0
        %800 = vmatprep.subr.mxu0 0.0
        %801 = vmatpush1.msra.mxu0 0.0
        %802 = vmatprep.subr.mxu0 0.0
        %803 = vmatpush1.msra.mxu0 0.0
        %804 = vmatprep.subr.mxu0 0.0
        %805 = vmatpush1.msra.mxu0 0.0
        %806 = vmatprep.subr.mxu0 0.0
        %807 = vmatpush1.msra.mxu0 0.0
        %808 = vmatprep.subr.mxu0 0.0
        %809 = vmatpush1.msra.mxu0 0.0
        %810 = vmatprep.subr.mxu0 0.0
        %811 = vmatpush1.msra.mxu0 0.0
        %812 = vmatprep.subr.mxu0 0.0
        %813 = vmatpush1.msra.mxu0 0.0
        %814 = vmatprep.subr.mxu0 0.0
        %815 = vmatpush1.msra.mxu0 0.0
        %816 = vmatprep.subr.mxu0 0.0
        %817 = vmatpush1.msra.mxu0 0.0
        %818 = vmatprep.subr.mxu0 0.0
        %819 = vmatpush1.msra.mxu0 0.0
        %820 = vmatprep.subr.mxu0 0.0
        %821 = vmatpush1.msra.mxu0 0.0
        %822 = vmatprep.subr.mxu0 0.0
        %823 = vmatpush1.msra.mxu0 0.0
        %824 = vmatprep.subr.mxu0 0.0
        %825 = vmatpush1.msra.mxu0 0.0
        %826 = vmatprep.subr.mxu0 0.0
        %827 = vmatpush1.msra.mxu0 0.0
        %828 = vmatprep.subr.mxu0 0.0
        %829 = vmatpush1.msra.mxu0 0.0
        %830 = vmatprep.subr.mxu0 0.0
        %831 = vmatpush1.msra.mxu0 0.0
        %832 = vmatprep.mubr.f32.mxu0 0.0
        %833 = vmatmul.mubr.f32.gmra.mrb[0].mxu0 %v679
        %v834 = vpop.f32.mrb[0].mxu0
        %v835 = vadd.f32 %v764, %v834
        %v836 = vpop.f32.mrb[0].mxu0
        %v837 = vadd.f32 %v766, %v836
        %838 = vdwg.mxu0
        %839 = vmatprep.subr.mxu0 %v463
        %840 = vmatpush1.msra.mxu0 %v462
        %841 = vmatprep.subr.mxu0 %v468
        %842 = vmatpush1.msra.mxu0 %v467
        %843 = vmatprep.subr.mxu0 %v473
        %844 = vmatpush1.msra.mxu0 %v472
        %845 = vmatprep.subr.mxu0 %v478
        %846 = vmatpush1.msra.mxu0 %v477
        %847 = vmatprep.subr.mxu0 %v483
        %848 = vmatpush1.msra.mxu0 %v482
        %849 = vmatprep.subr.mxu0 %v488
        %850 = vmatpush1.msra.mxu0 %v487
        %851 = vmatprep.subr.mxu0 %v493
        %852 = vmatpush1.msra.mxu0 %v492
        %853 = vmatprep.subr.mxu0 %v498
        %854 = vmatpush1.msra.mxu0 %v497
        %855 = vmatprep.subr.mxu0 %v503
        %856 = vmatpush1.msra.mxu0 %v502
        %857 = vmatprep.subr.mxu0 %v508
        %858 = vmatpush1.msra.mxu0 %v507
        %859 = vmatprep.subr.mxu0 %v513
        %860 = vmatpush1.msra.mxu0 %v512
        %861 = vmatprep.subr.mxu0 %v518
        %862 = vmatpush1.msra.mxu0 %v517
        %863 = vmatprep.subr.mxu0 %v523
        %864 = vmatpush1.msra.mxu0 %v522
        %865 = vmatprep.subr.mxu0 %v528
        %866 = vmatpush1.msra.mxu0 %v527
        %867 = vmatprep.subr.mxu0 %v533
        %868 = vmatpush1.msra.mxu0 %v532
        %869 = vmatprep.subr.mxu0 %v538
        %870 = vmatpush1.msra.mxu0 %v537
        %871 = vmatprep.subr.mxu0 %v543
        %872 = vmatpush1.msra.mxu0 %v542
        %873 = vmatprep.subr.mxu0 %v548
        %874 = vmatpush1.msra.mxu0 %v547
        %875 = vmatprep.subr.mxu0 %v553
        %876 = vmatpush1.msra.mxu0 %v552
        %877 = vmatprep.subr.mxu0 %v558
        %878 = vmatpush1.msra.mxu0 %v557
        %879 = vmatprep.subr.mxu0 %v563
        %880 = vmatpush1.msra.mxu0 %v562
        %881 = vmatprep.subr.mxu0 %v568
        %882 = vmatpush1.msra.mxu0 %v567
        %883 = vmatprep.subr.mxu0 %v573
        %884 = vmatpush1.msra.mxu0 %v572
        %885 = vmatprep.subr.mxu0 %v578
        %886 = vmatpush1.msra.mxu0 %v577
        %887 = vmatprep.subr.mxu0 %v583
        %888 = vmatpush1.msra.mxu0 %v582
        %889 = vmatprep.subr.mxu0 %v588
        %890 = vmatpush1.msra.mxu0 %v587
        %891 = vmatprep.subr.mxu0 %v593
        %892 = vmatpush1.msra.mxu0 %v592
        %893 = vmatprep.subr.mxu0 %v598
        %894 = vmatpush1.msra.mxu0 %v597
        %895 = vmatprep.subr.mxu0 %v603
        %896 = vmatpush1.msra.mxu0 %v602
        %897 = vmatprep.subr.mxu0 %v608
        %898 = vmatpush1.msra.mxu0 %v607
        %899 = vmatprep.subr.mxu0 %v613
        %900 = vmatpush1.msra.mxu0 %v612
        %901 = vmatprep.subr.mxu0 %v618
        %902 = vmatpush1.msra.mxu0 %v617
        %903 = vmatprep.mubr.f32.mxu0 %v458
        %904 = vmatmul.mubr.f32.gmra.mrb[0].mxu0 %v457
        %v905 = vpop.f32.mrb[0].mxu0
        %v906 = vadd.f32 %v663, %v905
        %v907 = vpop.f32.mrb[0].mxu0
        %v908 = vadd.f32 %v667, %v907
        %909 = vdwg.mxu0
        %910 = vmatprep.subr.mxu0 %v623
        %911 = vmatpush1.msra.mxu0 %v622
        %912 = vmatprep.subr.mxu0 %v628
        %913 = vmatpush1.msra.mxu0 %v627
        %914 = vmatprep.subr.mxu0 %v633
        %915 = vmatpush1.msra.mxu0 %v632
        %916 = vmatprep.subr.mxu0 %v638
        %917 = vmatpush1.msra.mxu0 %v637
        %918 = vmatprep.subr.mxu0 %v643
        %919 = vmatpush1.msra.mxu0 %v642
        %920 = vmatprep.subr.mxu0 %v692
        %921 = vmatpush1.msra.mxu0 %v689
        %922 = vmatprep.subr.mxu0 0.0
        %923 = vmatpush1.msra.mxu0 0.0
        %924 = vmatprep.subr.mxu0 0.0
        %925 = vmatpush1.msra.mxu0 0.0
        %926 = vmatprep.subr.mxu0 0.0
        %927 = vmatpush1.msra.mxu0 0.0
        %928 = vmatprep.subr.mxu0 0.0
        %929 = vmatpush1.msra.mxu0 0.0
        %930 = vmatprep.subr.mxu0 0.0
        %931 = vmatpush1.msra.mxu0 0.0
        %932 = vmatprep.subr.mxu0 0.0
        %933 = vmatpush1.msra.mxu0 0.0
        %934 = vmatprep.subr.mxu0 0.0
        %935 = vmatpush1.msra.mxu0 0.0
        %936 = vmatprep.subr.mxu0 0.0
        %937 = vmatpush1.msra.mxu0 0.0
        %938 = vmatprep.subr.mxu0 0.0
        %939 = vmatpush1.msra.mxu0 0.0
        %940 = vmatprep.subr.mxu0 0.0
        %941 = vmatpush1.msra.mxu0 0.0
        %942 = vmatprep.subr.mxu0 0.0
        %943 = vmatpush1.msra.mxu0 0.0
        %944 = vmatprep.subr.mxu0 0.0
        %945 = vmatpush1.msra.mxu0 0.0
        %946 = vmatprep.subr.mxu0 0.0
        %947 = vmatpush1.msra.mxu0 0.0
        %948 = vmatprep.subr.mxu0 0.0
        %949 = vmatpush1.msra.mxu0 0.0
        %950 = vmatprep.subr.mxu0 0.0
        %951 = vmatpush1.msra.mxu0 0.0
        %952 = vmatprep.subr.mxu0 0.0
        %953 = vmatpush1.msra.mxu0 0.0
        %954 = vmatprep.subr.mxu0 0.0
        %955 = vmatpush1.msra.mxu0 0.0
        %956 = vmatprep.subr.mxu0 0.0
        %957 = vmatpush1.msra.mxu0 0.0
        %958 = vmatprep.subr.mxu0 0.0
        %959 = vmatpush1.msra.mxu0 0.0
        %960 = vmatprep.subr.mxu0 0.0
        %961 = vmatpush1.msra.mxu0 0.0
        %962 = vmatprep.subr.mxu0 0.0
        %963 = vmatpush1.msra.mxu0 0.0
        %964 = vmatprep.subr.mxu0 0.0
        %965 = vmatpush1.msra.mxu0 0.0
        %966 = vmatprep.subr.mxu0 0.0
        %967 = vmatpush1.msra.mxu0 0.0
        %968 = vmatprep.subr.mxu0 0.0
        %969 = vmatpush1.msra.mxu0 0.0
        %970 = vmatprep.subr.mxu0 0.0
        %971 = vmatpush1.msra.mxu0 0.0
        %972 = vmatprep.subr.mxu0 0.0
        %973 = vmatpush1.msra.mxu0 0.0
        %974 = vmatprep.mubr.f32.mxu0 0.0
        %975 = vmatmul.mubr.f32.gmra.mrb[0].mxu0 %v679
        %v976 = vpop.f32.mrb[0].mxu0
        %v977 = vadd.f32 %v906, %v976
        %v978 = vpop.f32.mrb[0].mxu0
        %v979 = vadd.f32 %v908, %v978
        %980 = vdwg.mxu0
        %981 = vmatprep.subr.mxu0 0.0
        %982 = vmatpush1.msra.mxu0 %v464
        %983 = vmatprep.subr.mxu0 0.0
        %984 = vmatpush1.msra.mxu0 %v469
        %985 = vmatprep.subr.mxu0 0.0
        %986 = vmatpush1.msra.mxu0 %v474
        %987 = vmatprep.subr.mxu0 0.0
        %988 = vmatpush1.msra.mxu0 %v479
        %989 = vmatprep.subr.mxu0 0.0
        %990 = vmatpush1.msra.mxu0 %v484
        %991 = vmatprep.subr.mxu0 0.0
        %992 = vmatpush1.msra.mxu0 %v489
        %993 = vmatprep.subr.mxu0 0.0
        %994 = vmatpush1.msra.mxu0 %v494
        %995 = vmatprep.subr.mxu0 0.0
        %996 = vmatpush1.msra.mxu0 %v499
        %997 = vmatprep.subr.mxu0 0.0
        %998 = vmatpush1.msra.mxu0 %v504
        %999 = vmatprep.subr.mxu0 0.0
        %1000 = vmatpush1.msra.mxu0 %v509
        %1001 = vmatprep.subr.mxu0 0.0
        %1002 = vmatpush1.msra.mxu0 %v514
        %1003 = vmatprep.subr.mxu0 0.0
        %1004 = vmatpush1.msra.mxu0 %v519
        %1005 = vmatprep.subr.mxu0 0.0
        %1006 = vmatpush1.msra.mxu0 %v524
        %1007 = vmatprep.subr.mxu0 0.0
        %1008 = vmatpush1.msra.mxu0 %v529
        %1009 = vmatprep.subr.mxu0 0.0
        %1010 = vmatpush1.msra.mxu0 %v534
        %1011 = vmatprep.subr.mxu0 0.0
        %1012 = vmatpush1.msra.mxu0 %v539
        %1013 = vmatprep.subr.mxu0 0.0
        %1014 = vmatpush1.msra.mxu0 %v544
        %1015 = vmatprep.subr.mxu0 0.0
        %1016 = vmatpush1.msra.mxu0 %v549
        %1017 = vmatprep.subr.mxu0 0.0
        %1018 = vmatpush1.msra.mxu0 %v554
        %1019 = vmatprep.subr.mxu0 0.0
        %1020 = vmatpush1.msra.mxu0 %v559
        %1021 = vmatprep.subr.mxu0 0.0
        %1022 = vmatpush1.msra.mxu0 %v564
        %1023 = vmatprep.subr.mxu0 0.0
        %1024 = vmatpush1.msra.mxu0 %v569
        %1025 = vmatprep.subr.mxu0 0.0
        %1026 = vmatpush1.msra.mxu0 %v574
        %1027 = vmatprep.subr.mxu0 0.0
        %1028 = vmatpush1.msra.mxu0 %v579
        %1029 = vmatprep.subr.mxu0 0.0
        %1030 = vmatpush1.msra.mxu0 %v584
        %1031 = vmatprep.subr.mxu0 0.0
        %1032 = vmatpush1.msra.mxu0 %v589
        %1033 = vmatprep.subr.mxu0 0.0
        %1034 = vmatpush1.msra.mxu0 %v594
        %1035 = vmatprep.subr.mxu0 0.0
        %1036 = vmatpush1.msra.mxu0 %v599
        %1037 = vmatprep.subr.mxu0 0.0
        %1038 = vmatpush1.msra.mxu0 %v604
        %1039 = vmatprep.subr.mxu0 0.0
        %1040 = vmatpush1.msra.mxu0 %v609
        %1041 = vmatprep.subr.mxu0 0.0
        %1042 = vmatpush1.msra.mxu0 %v614
        %1043 = vmatprep.subr.mxu0 0.0
        %1044 = vmatpush1.msra.mxu0 %v619
        %1045 = vmatprep.mubr.f32.mxu0 %v458
        %1046 = vmatmul.mubr.f32.gmra.mrb[0].mxu0 %v457
        %v1047 = vpop.f32.mrb[0].mxu0
        %v1048 = vadd.f32 %v671, %v1047
        %v1049 = vpop.f32.mrb[0].mxu0
        %1050 = vdwg.mxu0
        %1051 = vmatprep.subr.mxu0 0.0
        %1052 = vmatpush1.msra.mxu0 %v624
        %1053 = vmatprep.subr.mxu0 0.0
        %1054 = vmatpush1.msra.mxu0 %v629
        %1055 = vmatprep.subr.mxu0 0.0
        %1056 = vmatpush1.msra.mxu0 %v634
        %1057 = vmatprep.subr.mxu0 0.0
        %1058 = vmatpush1.msra.mxu0 %v639
        %1059 = vmatprep.subr.mxu0 0.0
        %1060 = vmatpush1.msra.mxu0 %v644
        %1061 = vmatprep.subr.mxu0 0.0
        %1062 = vmatpush1.msra.mxu0 %v695
        %1063 = vmatprep.subr.mxu0 0.0
        %1064 = vmatpush1.msra.mxu0 0.0
        %1065 = vmatprep.subr.mxu0 0.0
        %1066 = vmatpush1.msra.mxu0 0.0
        %1067 = vmatprep.subr.mxu0 0.0
        %1068 = vmatpush1.msra.mxu0 0.0
        %1069 = vmatprep.subr.mxu0 0.0
        %1070 = vmatpush1.msra.mxu0 0.0
        %1071 = vmatprep.subr.mxu0 0.0
        %1072 = vmatpush1.msra.mxu0 0.0
        %1073 = vmatprep.subr.mxu0 0.0
        %1074 = vmatpush1.msra.mxu0 0.0
        %1075 = vmatprep.subr.mxu0 0.0
        %1076 = vmatpush1.msra.mxu0 0.0
        %1077 = vmatprep.subr.mxu0 0.0
        %1078 = vmatpush1.msra.mxu0 0.0
        %1079 = vmatprep.subr.mxu0 0.0
        %1080 = vmatpush1.msra.mxu0 0.0
        %1081 = vmatprep.subr.mxu0 0.0
        %1082 = vmatpush1.msra.mxu0 0.0
        %1083 = vmatprep.subr.mxu0 0.0
        %1084 = vmatpush1.msra.mxu0 0.0
        %1085 = vmatprep.subr.mxu0 0.0
        %1086 = vmatpush1.msra.mxu0 0.0
        %1087 = vmatprep.subr.mxu0 0.0
        %1088 = vmatpush1.msra.mxu0 0.0
        %1089 = vmatprep.subr.mxu0 0.0
        %1090 = vmatpush1.msra.mxu0 0.0
        %1091 = vmatprep.subr.mxu0 0.0
        %1092 = vmatpush1.msra.mxu0 0.0
        %1093 = vmatprep.subr.mxu0 0.0
        %1094 = vmatpush1.msra.mxu0 0.0
        %1095 = vmatprep.subr.mxu0 0.0
        %1096 = vmatpush1.msra.mxu0 0.0
        %1097 = vmatprep.subr.mxu0 0.0
        %1098 = vmatpush1.msra.mxu0 0.0
        %1099 = vmatprep.subr.mxu0 0.0
        %1100 = vmatpush1.msra.mxu0 0.0
        %1101 = vmatprep.subr.mxu0 0.0
        %1102 = vmatpush1.msra.mxu0 0.0
        %1103 = vmatprep.subr.mxu0 0.0
        %1104 = vmatpush1.msra.mxu0 0.0
        %1105 = vmatprep.subr.mxu0 0.0
        %1106 = vmatpush1.msra.mxu0 0.0
        %1107 = vmatprep.subr.mxu0 0.0
        %1108 = vmatpush1.msra.mxu0 0.0
        %1109 = vmatprep.subr.mxu0 0.0
        %1110 = vmatpush1.msra.mxu0 0.0
        %1111 = vmatprep.subr.mxu0 0.0
        %1112 = vmatpush1.msra.mxu0 0.0
        %1113 = vmatprep.subr.mxu0 0.0
        %1114 = vmatpush1.msra.mxu0 0.0
        %1115 = vmatprep.mubr.f32.mxu0 0.0
        %1116 = vmatmul.mubr.f32.gmra.mrb[0].mxu0 %v679
        %v1117 = vpop.f32.mrb[0].mxu0
        %v1118 = vadd.f32 %v1048, %v1117
        %v1119 = vpop.f32.mrb[0].mxu0
        %1120 = vdwg.mxu0
        %v1121 = vmax.f32 %v835, 0.0
        %v1122 = vmax.f32 %v837, 0.0
        %v1123 = vmax.f32 %v977, 0.0
        %v1124 = vmax.f32 %v979, 0.0
        %v1125 = vmax.f32 %v1118, 0.0
        %v1126 = vld [vmem:[#allocation8] sm:$0xff]
        %v1127 = vld [vmem:[#allocation8 + $0x8] sm:$0xff]
        %v1128 = vld [vmem:[#allocation8 + $0x10] sm:$0xff]
        %v1129 = vld [vmem:[#allocation8 + $0x18] sm:$0xff]
        %v1130 = vld [vmem:[#allocation8 + $0x20] sm:$0xff]
        %v1131 = vld [vmem:[#allocation8 + $0x28] sm:$0xff]
        %v1132 = vld [vmem:[#allocation8 + $0x30] sm:$0xff]
        %v1133 = vld [vmem:[#allocation8 + $0x38] sm:$0xff]
        %v1134 = vld [vmem:[#allocation8 + $0x40] sm:$0xff]
        %v1135 = vld [vmem:[#allocation8 + $0x48] sm:$0xff]
        %v1136 = vld [vmem:[#allocation8 + $0x50] sm:$0xff]
        %v1137 = vld [vmem:[#allocation8 + $0x58] sm:$0xff]
        %v1138 = vld [vmem:[#allocation8 + $0x60] sm:$0xff]
        %v1139 = vld [vmem:[#allocation8 + $0x68] sm:$0xff]
        %v1140 = vld [vmem:[#allocation8 + $0x70] sm:$0xff]
        %v1141 = vld [vmem:[#allocation8 + $0x78] sm:$0xff]
        %v1142 = vld [vmem:[#allocation8 + $0x80] sm:$0xff]
        %v1143 = vld [vmem:[#allocation8 + $0x88] sm:$0xff]
        %v1144 = vld [vmem:[#allocation8 + $0x90] sm:$0xff]
        %v1145 = vld [vmem:[#allocation8 + $0x98] sm:$0xff]
        %v1146 = vld [vmem:[#allocation8 + $0xa0] sm:$0xff]
        %v1147 = vld [vmem:[#allocation8 + $0xa8] sm:$0xff]
        %v1148 = vld [vmem:[#allocation8 + $0xb0] sm:$0xff]
        %v1149 = vld [vmem:[#allocation8 + $0xb8] sm:$0xff]
        %v1150 = vld [vmem:[#allocation8 + $0xc0] sm:$0xff]
        %v1151 = vld [vmem:[#allocation8 + $0xc8] sm:$0xff]
        %v1152 = vld [vmem:[#allocation8 + $0xd0] sm:$0xff]
        %v1153 = vld [vmem:[#allocation8 + $0xd8] sm:$0xff]
        %v1154 = vld [vmem:[#allocation8 + $0xe0] sm:$0xff]
        %v1155 = vld [vmem:[#allocation8 + $0xe8] sm:$0xff]
        %v1156 = vld [vmem:[#allocation8 + $0xf0] sm:$0xff]
        %v1157 = vld [vmem:[#allocation8 + $0xf8] sm:$0xff]
        %v1158 = vld [vmem:[#allocation8 + $0x100] sm:$0xff]
        %v1159 = vld [vmem:[#allocation8 + $0x108] sm:$0xff]
        %v1160 = vld [vmem:[#allocation8 + $0x110] sm:$0xff]
        %v1161 = vld [vmem:[#allocation8 + $0x118] sm:$0xff]
        %v1162 = vld [vmem:[#allocation8 + $0x120] sm:$0xff]
        %v1163 = vld [vmem:[#allocation8 + $0x128] sm:$0xff]
        %v1164 = vld [vmem:[#allocation8 + $0x130] sm:$0xff]
        %v1165 = vld [vmem:[#allocation8 + $0x138] sm:$0xff]
        %v1166 = vld [vmem:[#allocation8 + $0x140] sm:$0xff]
        %v1167 = vld [vmem:[#allocation8 + $0x148] sm:$0xff]
        %v1168 = vld [vmem:[#allocation8 + $0x150] sm:$0xff]
        %v1169 = vld [vmem:[#allocation8 + $0x158] sm:$0xff]
        %v1170 = vld [vmem:[#allocation8 + $0x160] sm:$0xff]
        %v1171 = vld [vmem:[#allocation8 + $0x168] sm:$0xff]
        %v1172 = vld [vmem:[#allocation8 + $0x170] sm:$0xff]
        %v1173 = vld [vmem:[#allocation8 + $0x178] sm:$0xff]
        %v1174 = vld [vmem:[#allocation8 + $0x180] sm:$0xff]
        %v1175 = vld [vmem:[#allocation8 + $0x188] sm:$0xff]
        %v1176 = vld [vmem:[#allocation8 + $0x190] sm:$0xff]
        %v1177 = vld [vmem:[#allocation8 + $0x198] sm:$0xff]
        %v1178 = vld [vmem:[#allocation8 + $0x1a0] sm:$0xff]
        %v1179 = vld [vmem:[#allocation8 + $0x1a8] sm:$0xff]
        %v1180 = vld [vmem:[#allocation8 + $0x1b0] sm:$0xff]
        %v1181 = vld [vmem:[#allocation8 + $0x1b8] sm:$0xff]
        %v1182 = vld [vmem:[#allocation8 + $0x1c0] sm:$0xff]
        %v1183 = vld [vmem:[#allocation8 + $0x1c8] sm:$0xff]
        %v1184 = vld [vmem:[#allocation8 + $0x1d0] sm:$0xff]
        %v1185 = vld [vmem:[#allocation8 + $0x1d8] sm:$0xff]
        %v1186 = vld [vmem:[#allocation8 + $0x1e0] sm:$0xff]
        %v1187 = vld [vmem:[#allocation8 + $0x1e8] sm:$0xff]
        %v1188 = vld [vmem:[#allocation8 + $0x1f0] sm:$0xff]
        %v1189 = vld [vmem:[#allocation8 + $0x1f8] sm:$0xff]
        %v1190 = vld [vmem:[#allocation8 + $0x200] sm:$0xff]
        %v1191 = vld [vmem:[#allocation8 + $0x208] sm:$0xff]
        %v1192 = vld [vmem:[#allocation8 + $0x210] sm:$0xff]
        %v1193 = vld [vmem:[#allocation8 + $0x218] sm:$0xff]
        %v1194 = vld [vmem:[#allocation8 + $0x220] sm:$0xff]
        %v1195 = vld [vmem:[#allocation8 + $0x228] sm:$0xff]
        %v1196 = vld [vmem:[#allocation8 + $0x230] sm:$0xff]
        %v1197 = vld [vmem:[#allocation8 + $0x238] sm:$0xff]
        %v1198 = vld [vmem:[#allocation8 + $0x240] sm:$0xff]
        %v1199 = vld [vmem:[#allocation8 + $0x248] sm:$0xff]
        %v1200 = vld [vmem:[#allocation8 + $0x250] sm:$0xff]
        %v1201 = vld [vmem:[#allocation8 + $0x258] sm:$0xff]
        %v1202 = vld [vmem:[#allocation8 + $0x260] sm:$0xff]
        %v1203 = vld [vmem:[#allocation8 + $0x268] sm:$0xff]
        %v1204 = vld [vmem:[#allocation8 + $0x270] sm:$0xff]
        %v1205 = vld [vmem:[#allocation8 + $0x278] sm:$0xff]
        %v1206 = vld [vmem:[#allocation8 + $0x280] sm:$0xff]
        %v1207 = vld [vmem:[#allocation8 + $0x288] sm:$0xff]
        %v1208 = vld [vmem:[#allocation8 + $0x290] sm:$0xff]
        %v1209 = vld [vmem:[#allocation8 + $0x298] sm:$0xff]
        %v1210 = vld [vmem:[#allocation8 + $0x2a0] sm:$0xff]
        %v1211 = vld [vmem:[#allocation8 + $0x2a8] sm:$0xff]
        %v1212 = vld [vmem:[#allocation8 + $0x2b0] sm:$0xff]
        %v1213 = vld [vmem:[#allocation8 + $0x2b8] sm:$0xff]
        %v1214 = vld [vmem:[#allocation8 + $0x2c0] sm:$0xff]
        %v1215 = vld [vmem:[#allocation8 + $0x2c8] sm:$0xff]
        %v1216 = vld [vmem:[#allocation8 + $0x2d0] sm:$0xff]
        %v1217 = vld [vmem:[#allocation8 + $0x2d8] sm:$0xff]
        %v1218 = vld [vmem:[#allocation8 + $0x2e0] sm:$0xff]
        %v1219 = vld [vmem:[#allocation8 + $0x2e8] sm:$0xff]
        %v1220 = vld [vmem:[#allocation8 + $0x2f0] sm:$0xff]
        %v1221 = vld [vmem:[#allocation8 + $0x2f8] sm:$0xff]
        %v1222 = vld [vmem:[#allocation8 + $0x300] sm:$0xff]
        %v1223 = vld [vmem:[#allocation8 + $0x308] sm:$0xff]
        %v1224 = vld [vmem:[#allocation8 + $0x310] sm:$0xff]
        %v1225 = vld [vmem:[#allocation8 + $0x318] sm:$0xff]
        %v1226 = vld [vmem:[#allocation8 + $0x320] sm:$0xff]
        %v1227 = vld [vmem:[#allocation8 + $0x328] sm:$0xff]
        %v1228 = vld [vmem:[#allocation8 + $0x330] sm:$0xff]
        %v1229 = vld [vmem:[#allocation8 + $0x338] sm:$0xff]
        %v1230 = vld [vmem:[#allocation8 + $0x340] sm:$0xff]
        %v1231 = vld [vmem:[#allocation8 + $0x348] sm:$0xff]
        %v1232 = vld [vmem:[#allocation8 + $0x350] sm:$0xff]
        %v1233 = vld [vmem:[#allocation8 + $0x358] sm:$0xff]
        %v1234 = vld [vmem:[#allocation8 + $0x360] sm:$0xff]
        %v1235 = vld [vmem:[#allocation8 + $0x368] sm:$0xff]
        %v1236 = vld [vmem:[#allocation8 + $0x370] sm:$0xff]
        %v1237 = vld [vmem:[#allocation8 + $0x378] sm:$0xff]
        %v1238 = vld [vmem:[#allocation8 + $0x380] sm:$0xff]
        %v1239 = vld [vmem:[#allocation8 + $0x388] sm:$0xff]
        %v1240 = vld [vmem:[#allocation8 + $0x390] sm:$0xff]
        %v1241 = vld [vmem:[#allocation8 + $0x398] sm:$0xff]
        %v1242 = vld [vmem:[#allocation8 + $0x3a0] sm:$0xff]
        %v1243 = vld [vmem:[#allocation8 + $0x3a8] sm:$0xff]
        %v1244 = vld [vmem:[#allocation8 + $0x3b0] sm:$0xff]
        %v1245 = vld [vmem:[#allocation8 + $0x3b8] sm:$0xff]
        %v1246 = vld [vmem:[#allocation8 + $0x3c0] sm:$0xff]
        %v1247 = vld [vmem:[#allocation8 + $0x3c8] sm:$0xff]
        %v1248 = vld [vmem:[#allocation8 + $0x3d0] sm:$0xff]
        %v1249 = vld [vmem:[#allocation8 + $0x3d8] sm:$0xff]
        %v1250 = vld [vmem:[#allocation8 + $0x3e0] sm:$0xff]
        %v1251 = vld [vmem:[#allocation8 + $0x3e8] sm:$0xff]
        %v1252 = vld [vmem:[#allocation8 + $0x3f0] sm:$0xff]
        %v1253 = vld [vmem:[#allocation8 + $0x3f8] sm:$0xff]
        %v1254 = vld [vmem:[#allocation8 + $0x400] sm:$0xff]
        %v1255 = vld [vmem:[#allocation8 + $0x408] sm:$0xff]
        %v1256 = vld [vmem:[#allocation8 + $0x410] sm:$0xff]
        %v1257 = vld [vmem:[#allocation8 + $0x418] sm:$0xff]
        %v1258 = vld [vmem:[#allocation8 + $0x420] sm:$0xff]
        %v1259 = vld [vmem:[#allocation8 + $0x428] sm:$0xff]
        %v1260 = vld [vmem:[#allocation8 + $0x430] sm:$0xff]
        %v1261 = vld [vmem:[#allocation8 + $0x438] sm:$0xff]
        %v1262 = vld [vmem:[#allocation8 + $0x440] sm:$0xff]
        %v1263 = vld [vmem:[#allocation8 + $0x448] sm:$0xff]
        %v1264 = vld [vmem:[#allocation8 + $0x450] sm:$0xff]
        %v1265 = vld [vmem:[#allocation8 + $0x458] sm:$0xff]
        %v1266 = vld [vmem:[#allocation8 + $0x460] sm:$0xff]
        %v1267 = vld [vmem:[#allocation8 + $0x468] sm:$0xff]
        %v1268 = vld [vmem:[#allocation8 + $0x470] sm:$0xff]
        %v1269 = vld [vmem:[#allocation8 + $0x478] sm:$0xff]
        %v1270 = vld [vmem:[#allocation8 + $0x480] sm:$0xff]
        %v1271 = vld [vmem:[#allocation8 + $0x488] sm:$0xff]
        %v1272 = vld [vmem:[#allocation8 + $0x490] sm:$0xff]
        %v1273 = vld [vmem:[#allocation8 + $0x498] sm:$0xff]
        %v1274 = vld [vmem:[#allocation8 + $0x4a0] sm:$0xff]
        %v1275 = vld [vmem:[#allocation8 + $0x4a8] sm:$0xff]
        %v1276 = vld [vmem:[#allocation8 + $0x4b0] sm:$0xff]
        %v1277 = vld [vmem:[#allocation8 + $0x4b8] sm:$0xff]
        %v1278 = vld [vmem:[#allocation8 + $0x4c0] sm:$0xff]
        %v1279 = vld [vmem:[#allocation8 + $0x4c8] sm:$0xff]
        %v1280 = vld [vmem:[#allocation8 + $0x4d0] sm:$0xff]
        %v1281 = vld [vmem:[#allocation8 + $0x4d8] sm:$0xff]
        %v1282 = vld [vmem:[#allocation8 + $0x4e0] sm:$0xff]
        %v1283 = vld [vmem:[#allocation8 + $0x4e8] sm:$0xff]
        %v1284 = vld [vmem:[#allocation8 + $0x4f0] sm:$0xff]
        %v1285 = vld [vmem:[#allocation8 + $0x4f8] sm:$0xff]
        %v1286 = vld [vmem:[#allocation8 + $0x500] sm:$0xff]
        %v1287 = vld [vmem:[#allocation8 + $0x508] sm:$0xff]
        %v1288 = vld [vmem:[#allocation8 + $0x510] sm:$0xff]
        %v1289 = vld [vmem:[#allocation8 + $0x518] sm:$0xff]
        %v1290 = vld [vmem:[#allocation8 + $0x520] sm:$0xff]
        %v1291 = vld [vmem:[#allocation8 + $0x528] sm:$0xff]
        %v1292 = vld [vmem:[#allocation8 + $0x530] sm:$0xff]
        %v1293 = vld [vmem:[#allocation8 + $0x538] sm:$0xff]
        %v1294 = vld [vmem:[#allocation8 + $0x540] sm:$0xff]
        %v1295 = vld [vmem:[#allocation8 + $0x548] sm:$0xff]
        %v1296 = vld [vmem:[#allocation8 + $0x550] sm:$0xff]
        %v1297 = vld [vmem:[#allocation8 + $0x558] sm:$0xff]
        %v1298 = vld [vmem:[#allocation8 + $0x560] sm:$0xff]
        %v1299 = vld [vmem:[#allocation8 + $0x568] sm:$0xff]
        %v1300 = vld [vmem:[#allocation8 + $0x570] sm:$0xff]
        %v1301 = vld [vmem:[#allocation8 + $0x578] sm:$0xff]
        %v1302 = vld [vmem:[#allocation8 + $0x580] sm:$0xff]
        %v1303 = vld [vmem:[#allocation8 + $0x588] sm:$0xff]
        %v1304 = vld [vmem:[#allocation8 + $0x590] sm:$0xff]
        %v1305 = vld [vmem:[#allocation8 + $0x598] sm:$0xff]
        %v1306 = vld [vmem:[#allocation8 + $0x5a0] sm:$0xff]
        %v1307 = vld [vmem:[#allocation8 + $0x5a8] sm:$0xff]
        %v1308 = vld [vmem:[#allocation8 + $0x5b0] sm:$0xff]
        %v1309 = vld [vmem:[#allocation8 + $0x5b8] sm:$0xff]
        %v1310 = vld [vmem:[#allocation8 + $0x5c0] sm:$0xff]
        %v1311 = vld [vmem:[#allocation8 + $0x5c8] sm:$0xff]
        %v1312 = vld [vmem:[#allocation8 + $0x5d0] sm:$0xff]
        %v1313 = vld [vmem:[#allocation8 + $0x5d8] sm:$0xff]
        %v1314 = vld [vmem:[#allocation8 + $0x5e0] sm:$0xff]
        %v1315 = vld [vmem:[#allocation8 + $0x5e8] sm:$0xff]
        %v1316 = vld [vmem:[#allocation8 + $0x5f0] sm:$0xff]
        %v1317 = vld [vmem:[#allocation8 + $0x5f8] sm:$0xff]
        %v1318 = vld [vmem:[#allocation8 + $0x600] sm:$0xff]
        %v1319 = vld [vmem:[#allocation8 + $0x608] sm:$0xff]
        %v1320 = vld [vmem:[#allocation8 + $0x610] sm:$0xff]
        %v1321 = vld [vmem:[#allocation8 + $0x618] sm:$0xff]
        %v1322 = vld [vmem:[#allocation8 + $0x620] sm:$0xff]
        %v1323 = vld [vmem:[#allocation8 + $0x628] sm:$0xff]
        %v1324 = vld [vmem:[#allocation8 + $0x630] sm:$0xff]
        %v1325 = vld [vmem:[#allocation8 + $0x638] sm:$0xff]
        %v1326 = vld [vmem:[#allocation8 + $0x640] sm:$0xff]
        %v1327 = vld [vmem:[#allocation8 + $0x648] sm:$0xff]
        %v1328 = vld [vmem:[#allocation8 + $0x650] sm:$0xff]
        %v1329 = vld [vmem:[#allocation8 + $0x658] sm:$0xff]
        %v1330 = vld [vmem:[#allocation8 + $0x660] sm:$0xff]
        %v1331 = vld [vmem:[#allocation8 + $0x668] sm:$0xff]
        %v1332 = vld [vmem:[#allocation8 + $0x670] sm:$0xff]
        %v1333 = vld [vmem:[#allocation8 + $0x678] sm:$0xff]
        %v1334 = vld [vmem:[#allocation8 + $0x680] sm:$0xff]
        %v1335 = vld [vmem:[#allocation8 + $0x688] sm:$0xff]
        %v1336 = vld [vmem:[#allocation8 + $0x690] sm:$0xff]
        %v1337 = vld [vmem:[#allocation8 + $0x698] sm:$0xff]
        %v1338 = vld [vmem:[#allocation8 + $0x6a0] sm:$0xff]
        %v1339 = vld [vmem:[#allocation8 + $0x6a8] sm:$0xff]
        %v1340 = vld [vmem:[#allocation8 + $0x6b0] sm:$0xff]
        %v1341 = vld [vmem:[#allocation8 + $0x6b8] sm:$0xff]
        %v1342 = vld [vmem:[#allocation8 + $0x6c0] sm:$0xff]
        %v1343 = vld [vmem:[#allocation8 + $0x6c8] sm:$0xff]
        %v1344 = vld [vmem:[#allocation8 + $0x6d0] sm:$0xff]
        %v1345 = vld [vmem:[#allocation8 + $0x6d8] sm:$0xff]
        %v1346 = vld [vmem:[#allocation8 + $0x6e0] sm:$0xff]
        %v1347 = vld [vmem:[#allocation8 + $0x6e8] sm:$0xff]
        %v1348 = vld [vmem:[#allocation8 + $0x6f0] sm:$0xff]
        %v1349 = vld [vmem:[#allocation8 + $0x6f8] sm:$0xff]
        %v1350 = vld [vmem:[#allocation8 + $0x700] sm:$0xff]
        %v1351 = vld [vmem:[#allocation8 + $0x708] sm:$0xff]
        %v1352 = vld [vmem:[#allocation8 + $0x710] sm:$0xff]
        %v1353 = vld [vmem:[#allocation8 + $0x718] sm:$0xff]
        %v1354 = vld [vmem:[#allocation8 + $0x720] sm:$0xff]
        %v1355 = vld [vmem:[#allocation8 + $0x728] sm:$0xff]
        %v1356 = vld [vmem:[#allocation8 + $0x730] sm:$0xff]
        %v1357 = vld [vmem:[#allocation8 + $0x738] sm:$0xff]
        %v1358 = vld [vmem:[#allocation8 + $0x740] sm:$0xff]
        %v1359 = vld [vmem:[#allocation8 + $0x748] sm:$0xff]
        %v1360 = vld [vmem:[#allocation8 + $0x750] sm:$0xff]
        %v1361 = vld [vmem:[#allocation8 + $0x758] sm:$0xff]
        %v1362 = vld [vmem:[#allocation8 + $0x760] sm:$0xff]
        %v1363 = vld [vmem:[#allocation8 + $0x768] sm:$0xff]
        %v1364 = vld [vmem:[#allocation8 + $0x770] sm:$0xff]
        %v1365 = vld [vmem:[#allocation8 + $0x778] sm:$0xff]
        %v1366 = vld [vmem:[#allocation8 + $0x780] sm:$0xff]
        %v1367 = vld [vmem:[#allocation8 + $0x788] sm:$0xff]
        %v1368 = vld [vmem:[#allocation8 + $0x790] sm:$0xff]
        %v1369 = vld [vmem:[#allocation8 + $0x798] sm:$0xff]
        %v1370 = vld [vmem:[#allocation8 + $0x7a0] sm:$0xff]
        %v1371 = vld [vmem:[#allocation8 + $0x7a8] sm:$0xff]
        %v1372 = vld [vmem:[#allocation8 + $0x7b0] sm:$0xff]
        %v1373 = vld [vmem:[#allocation8 + $0x7b8] sm:$0xff]
        %v1374 = vld [vmem:[#allocation8 + $0x7c0] sm:$0xff]
        %v1375 = vld [vmem:[#allocation8 + $0x7c8] sm:$0xff]
        %v1376 = vld [vmem:[#allocation8 + $0x7d0] sm:$0xff]
        %v1377 = vld [vmem:[#allocation8 + $0x7d8] sm:$0xff]
        %v1378 = vld [vmem:[#allocation8 + $0x7e0] sm:$0xff]
        %v1379 = vld [vmem:[#allocation8 + $0x7e8] sm:$0xff]
        %v1380 = vld [vmem:[#allocation8 + $0x7f0] sm:$0xff]
        %v1381 = vld [vmem:[#allocation8 + $0x7f8] sm:$0xff]
        %v1382 = vld [vmem:[#allocation8 + $0x800] sm:$0xff]
        %v1383 = vld [vmem:[#allocation8 + $0x808] sm:$0xff]
        %v1384 = vld [vmem:[#allocation8 + $0x810] sm:$0xff]
        %v1385 = vld [vmem:[#allocation8 + $0x818] sm:$0xff]
        %v1386 = vld [vmem:[#allocation8 + $0x820] sm:$0xff]
        %v1387 = vld [vmem:[#allocation8 + $0x828] sm:$0xff]
        %v1388 = vld [vmem:[#allocation8 + $0x830] sm:$0xff]
        %v1389 = vld [vmem:[#allocation8 + $0x838] sm:$0xff]
        %v1390 = vld [vmem:[#allocation8 + $0x840] sm:$0xff]
        %v1391 = vld [vmem:[#allocation8 + $0x848] sm:$0xff]
        %v1392 = vld [vmem:[#allocation8 + $0x850] sm:$0xff]
        %v1393 = vld [vmem:[#allocation8 + $0x858] sm:$0xff]
        %v1394 = vld [vmem:[#allocation8 + $0x860] sm:$0xff]
        %v1395 = vld [vmem:[#allocation8 + $0x868] sm:$0xff]
        %v1396 = vld [vmem:[#allocation8 + $0x870] sm:$0xff]
        %v1397 = vld [vmem:[#allocation8 + $0x878] sm:$0xff]
        %v1398 = vld [vmem:[#allocation8 + $0x880] sm:$0xff]
        %v1399 = vld [vmem:[#allocation8 + $0x888] sm:$0xff]
        %v1400 = vld [vmem:[#allocation8 + $0x890] sm:$0xff]
        %v1401 = vld [vmem:[#allocation8 + $0x898] sm:$0xff]
        %v1402 = vld [vmem:[#allocation8 + $0x8a0] sm:$0xff]
        %v1403 = vld [vmem:[#allocation8 + $0x8a8] sm:$0xff]
        %v1404 = vld [vmem:[#allocation8 + $0x8b0] sm:$0xff]
        %v1405 = vld [vmem:[#allocation8 + $0x8b8] sm:$0xff]
        %v1406 = vld [vmem:[#allocation8 + $0x8c0] sm:$0xff]
        %v1407 = vld [vmem:[#allocation8 + $0x8c8] sm:$0xff]
        %v1408 = vld [vmem:[#allocation8 + $0x8d0] sm:$0xff]
        %v1409 = vld [vmem:[#allocation8 + $0x8d8] sm:$0xff]
        %v1410 = vld [vmem:[#allocation8 + $0x8e0] sm:$0xff]
        %v1411 = vld [vmem:[#allocation8 + $0x8e8] sm:$0xff]
        %v1412 = vld [vmem:[#allocation8 + $0x8f0] sm:$0xff]
        %v1413 = vld [vmem:[#allocation8 + $0x8f8] sm:$0xff]
        %v1414 = vld [vmem:[#allocation8 + $0x900] sm:$0xff]
        %v1415 = vld [vmem:[#allocation8 + $0x908] sm:$0xff]
        %v1416 = vld [vmem:[#allocation8 + $0x910] sm:$0xff]
        %v1417 = vld [vmem:[#allocation8 + $0x918] sm:$0xff]
        %v1418 = vld [vmem:[#allocation8 + $0x920] sm:$0xff]
        %v1419 = vld [vmem:[#allocation8 + $0x928] sm:$0xff]
        %v1420 = vld [vmem:[#allocation8 + $0x930] sm:$0xff]
        %v1421 = vld [vmem:[#allocation8 + $0x938] sm:$0xff]
        %v1422 = vld [vmem:[#allocation8 + $0x940] sm:$0xff]
        %v1423 = vld [vmem:[#allocation8 + $0x948] sm:$0xff]
        %v1424 = vld [vmem:[#allocation8 + $0x950] sm:$0xff]
        %v1425 = vld [vmem:[#allocation8 + $0x958] sm:$0xff]
        %v1426 = vld [vmem:[#allocation8 + $0x960] sm:$0xff]
        %v1427 = vld [vmem:[#allocation8 + $0x968] sm:$0xff]
        %v1428 = vld [vmem:[#allocation8 + $0x970] sm:$0xff]
        %v1429 = vld [vmem:[#allocation8 + $0x978] sm:$0xff]
        %v1430 = vld [vmem:[#allocation8 + $0x980] sm:$0xff]
        %v1431 = vld [vmem:[#allocation8 + $0x988] sm:$0xff]
        %v1432 = vld [vmem:[#allocation8 + $0x990] sm:$0xff]
        %v1433 = vld [vmem:[#allocation8 + $0x998] sm:$0xff]
        %v1434 = vld [vmem:[#allocation8 + $0x9a0] sm:$0xff]
        %v1435 = vld [vmem:[#allocation8 + $0x9a8] sm:$0xff]
        %v1436 = vld [vmem:[#allocation8 + $0x9b0] sm:$0xff]
        %v1437 = vld [vmem:[#allocation8 + $0x9b8] sm:$0xff]
        %v1438 = vld [vmem:[#allocation8 + $0x9c0] sm:$0xff]
        %v1439 = vld [vmem:[#allocation8 + $0x9c8] sm:$0xff]
        %v1440 = vld [vmem:[#allocation8 + $0x9d0] sm:$0xff]
        %v1441 = vld [vmem:[#allocation8 + $0x9d8] sm:$0xff]
        %v1442 = vld [vmem:[#allocation8 + $0x9e0] sm:$0xff]
        %v1443 = vld [vmem:[#allocation8 + $0x9e8] sm:$0xff]
        %v1444 = vld [vmem:[#allocation8 + $0x9f0] sm:$0xff]
        %v1445 = vld [vmem:[#allocation8 + $0x9f8] sm:$0xff]
        %v1446 = vld [vmem:[#allocation10] sm:$0xf]
        %v1448 = vlaneseq
        %v1449 = vshrl.u32 %v1448, 7
        %v1450 = vsub.s32 0, %v1449
        %v1451 = vrot.slane %v1446, %v1450
        %v1452 = vlaneseq
        %v1453 = vshrl.u32 %v1452, 7
        %v1454 = vsub.s32 1, %v1453
        %v1455 = vrot.slane %v1446, %v1454
        %v1456 = vlaneseq
        %v1457 = vshrl.u32 %v1456, 7
        %v1458 = vsub.s32 2, %v1457
        %v1459 = vrot.slane %v1446, %v1458
        %v1460 = vlaneseq
        %v1461 = vshrl.u32 %v1460, 7
        %v1462 = vsub.s32 3, %v1461
        %v1463 = vrot.slane %v1446, %v1462
        %1468 = vmatprep.subr.mxu0 %v1127
        %1469 = vmatpush1.msra.mxu0 %v1126
        %1470 = vmatprep.subr.mxu0 %v1131
        %1471 = vmatpush1.msra.mxu0 %v1130
        %1472 = vmatprep.subr.mxu0 %v1135
        %1473 = vmatpush1.msra.mxu0 %v1134
        %1474 = vmatprep.subr.mxu0 %v1139
        %1475 = vmatpush1.msra.mxu0 %v1138
        %1476 = vmatprep.subr.mxu0 %v1143
        %1477 = vmatpush1.msra.mxu0 %v1142
        %1478 = vmatprep.subr.mxu0 %v1147
        %1479 = vmatpush1.msra.mxu0 %v1146
        %1480 = vmatprep.subr.mxu0 %v1151
        %1481 = vmatpush1.msra.mxu0 %v1150
        %1482 = vmatprep.subr.mxu0 %v1155
        %1483 = vmatpush1.msra.mxu0 %v1154
        %1484 = vmatprep.subr.mxu0 %v1159
        %1485 = vmatpush1.msra.mxu0 %v1158
        %1486 = vmatprep.subr.mxu0 %v1163
        %1487 = vmatpush1.msra.mxu0 %v1162
        %1488 = vmatprep.subr.mxu0 %v1167
        %1489 = vmatpush1.msra.mxu0 %v1166
        %1490 = vmatprep.subr.mxu0 %v1171
        %1491 = vmatpush1.msra.mxu0 %v1170
        %1492 = vmatprep.subr.mxu0 %v1175
        %1493 = vmatpush1.msra.mxu0 %v1174
        %1494 = vmatprep.subr.mxu0 %v1179
        %1495 = vmatpush1.msra.mxu0 %v1178
        %1496 = vmatprep.subr.mxu0 %v1183
        %1497 = vmatpush1.msra.mxu0 %v1182
        %1498 = vmatprep.subr.mxu0 %v1187
        %1499 = vmatpush1.msra.mxu0 %v1186
        %1500 = vmatprep.subr.mxu0 %v1191
        %1501 = vmatpush1.msra.mxu0 %v1190
        %1502 = vmatprep.subr.mxu0 %v1195
        %1503 = vmatpush1.msra.mxu0 %v1194
        %1504 = vmatprep.subr.mxu0 %v1199
        %1505 = vmatpush1.msra.mxu0 %v1198
        %1506 = vmatprep.subr.mxu0 %v1203
        %1507 = vmatpush1.msra.mxu0 %v1202
        %1508 = vmatprep.subr.mxu0 %v1207
        %1509 = vmatpush1.msra.mxu0 %v1206
        %1510 = vmatprep.subr.mxu0 %v1211
        %1511 = vmatpush1.msra.mxu0 %v1210
        %1512 = vmatprep.subr.mxu0 %v1215
        %1513 = vmatpush1.msra.mxu0 %v1214
        %1514 = vmatprep.subr.mxu0 %v1219
        %1515 = vmatpush1.msra.mxu0 %v1218
        %1516 = vmatprep.subr.mxu0 %v1223
        %1517 = vmatpush1.msra.mxu0 %v1222
        %1518 = vmatprep.subr.mxu0 %v1227
        %1519 = vmatpush1.msra.mxu0 %v1226
        %1520 = vmatprep.subr.mxu0 %v1231
        %1521 = vmatpush1.msra.mxu0 %v1230
        %1522 = vmatprep.subr.mxu0 %v1235
        %1523 = vmatpush1.msra.mxu0 %v1234
        %1524 = vmatprep.subr.mxu0 %v1239
        %1525 = vmatpush1.msra.mxu0 %v1238
        %1526 = vmatprep.subr.mxu0 %v1243
        %1527 = vmatpush1.msra.mxu0 %v1242
        %1528 = vmatprep.subr.mxu0 %v1247
        %1529 = vmatpush1.msra.mxu0 %v1246
        %1530 = vmatprep.subr.mxu0 %v1251
        %1531 = vmatpush1.msra.mxu0 %v1250
        %1532 = vmatprep.mubr.f32.mxu0 %v1122
        %1533 = vmatmul.mubr.f32.gmra.mrb[0].mxu0 %v1121
        %v1534 = vpop.f32.mrb[0].mxu0
        %v1535 = vadd.f32 %v1451, %v1534
        %v1536 = vpop.f32.mrb[0].mxu0
        %v1537 = vadd.f32 %v1455, %v1536
        %1538 = vdwg.mxu0
        %1539 = vmatprep.subr.mxu0 %v1255
        %1540 = vmatpush1.msra.mxu0 %v1254
        %1541 = vmatprep.subr.mxu0 %v1259
        %1542 = vmatpush1.msra.mxu0 %v1258
        %1543 = vmatprep.subr.mxu0 %v1263
        %1544 = vmatpush1.msra.mxu0 %v1262
        %1545 = vmatprep.subr.mxu0 %v1267
        %1546 = vmatpush1.msra.mxu0 %v1266
        %1547 = vmatprep.subr.mxu0 %v1271
        %1548 = vmatpush1.msra.mxu0 %v1270
        %1549 = vmatprep.subr.mxu0 %v1275
        %1550 = vmatpush1.msra.mxu0 %v1274
        %1551 = vmatprep.subr.mxu0 %v1279
        %1552 = vmatpush1.msra.mxu0 %v1278
        %1553 = vmatprep.subr.mxu0 %v1283
        %1554 = vmatpush1.msra.mxu0 %v1282
        %1555 = vmatprep.subr.mxu0 %v1287
        %1556 = vmatpush1.msra.mxu0 %v1286
        %1557 = vmatprep.subr.mxu0 %v1291
        %1558 = vmatpush1.msra.mxu0 %v1290
        %1559 = vmatprep.subr.mxu0 %v1295
        %1560 = vmatpush1.msra.mxu0 %v1294
        %1561 = vmatprep.subr.mxu0 %v1299
        %1562 = vmatpush1.msra.mxu0 %v1298
        %1563 = vmatprep.subr.mxu0 %v1303
        %1564 = vmatpush1.msra.mxu0 %v1302
        %1565 = vmatprep.subr.mxu0 %v1307
        %1566 = vmatpush1.msra.mxu0 %v1306
        %1567 = vmatprep.subr.mxu0 %v1311
        %1568 = vmatpush1.msra.mxu0 %v1310
        %1569 = vmatprep.subr.mxu0 %v1315
        %1570 = vmatpush1.msra.mxu0 %v1314
        %1571 = vmatprep.subr.mxu0 %v1319
        %1572 = vmatpush1.msra.mxu0 %v1318
        %1573 = vmatprep.subr.mxu0 %v1323
        %1574 = vmatpush1.msra.mxu0 %v1322
        %1575 = vmatprep.subr.mxu0 %v1327
        %1576 = vmatpush1.msra.mxu0 %v1326
        %1577 = vmatprep.subr.mxu0 %v1331
        %1578 = vmatpush1.msra.mxu0 %v1330
        %1579 = vmatprep.subr.mxu0 %v1335
        %1580 = vmatpush1.msra.mxu0 %v1334
        %1581 = vmatprep.subr.mxu0 %v1339
        %1582 = vmatpush1.msra.mxu0 %v1338
        %1583 = vmatprep.subr.mxu0 %v1343
        %1584 = vmatpush1.msra.mxu0 %v1342
        %1585 = vmatprep.subr.mxu0 %v1347
        %1586 = vmatpush1.msra.mxu0 %v1346
        %1587 = vmatprep.subr.mxu0 %v1351
        %1588 = vmatpush1.msra.mxu0 %v1350
        %1589 = vmatprep.subr.mxu0 %v1355
        %1590 = vmatpush1.msra.mxu0 %v1354
        %1591 = vmatprep.subr.mxu0 %v1359
        %1592 = vmatpush1.msra.mxu0 %v1358
        %1593 = vmatprep.subr.mxu0 %v1363
        %1594 = vmatpush1.msra.mxu0 %v1362
        %1595 = vmatprep.subr.mxu0 %v1367
        %1596 = vmatpush1.msra.mxu0 %v1366
        %1597 = vmatprep.subr.mxu0 %v1371
        %1598 = vmatpush1.msra.mxu0 %v1370
        %1599 = vmatprep.subr.mxu0 %v1375
        %1600 = vmatpush1.msra.mxu0 %v1374
        %1601 = vmatprep.subr.mxu0 %v1379
        %1602 = vmatpush1.msra.mxu0 %v1378
        %1603 = vmatprep.mubr.f32.mxu0 %v1124
        %1604 = vmatmul.mubr.f32.gmra.mrb[0].mxu0 %v1123
        %v1605 = vpop.f32.mrb[0].mxu0
        %v1606 = vadd.f32 %v1535, %v1605
        %v1607 = vpop.f32.mrb[0].mxu0
        %v1608 = vadd.f32 %v1537, %v1607
        %1609 = vdwg.mxu0
        %1610 = vmatprep.subr.mxu0 %v1383
        %1611 = vmatpush1.msra.mxu0 %v1382
        %1612 = vmatprep.subr.mxu0 %v1387
        %1613 = vmatpush1.msra.mxu0 %v1386
        %1614 = vmatprep.subr.mxu0 %v1391
        %1615 = vmatpush1.msra.mxu0 %v1390
        %1616 = vmatprep.subr.mxu0 %v1395
        %1617 = vmatpush1.msra.mxu0 %v1394
        %1618 = vmatprep.subr.mxu0 %v1399
        %1619 = vmatpush1.msra.mxu0 %v1398
        %1620 = vmatprep.subr.mxu0 %v1403
        %1621 = vmatpush1.msra.mxu0 %v1402
        %1622 = vmatprep.subr.mxu0 %v1407
        %1623 = vmatpush1.msra.mxu0 %v1406
        %1624 = vmatprep.subr.mxu0 %v1411
        %1625 = vmatpush1.msra.mxu0 %v1410
        %1626 = vmatprep.subr.mxu0 %v1415
        %1627 = vmatpush1.msra.mxu0 %v1414
        %1628 = vmatprep.subr.mxu0 %v1419
        %1629 = vmatpush1.msra.mxu0 %v1418
        %1630 = vmatprep.subr.mxu0 %v1423
        %1631 = vmatpush1.msra.mxu0 %v1422
        %1632 = vmatprep.subr.mxu0 %v1427
        %1633 = vmatpush1.msra.mxu0 %v1426
        %1634 = vmatprep.subr.mxu0 %v1431
        %1635 = vmatpush1.msra.mxu0 %v1430
        %1636 = vmatprep.subr.mxu0 %v1435
        %1637 = vmatpush1.msra.mxu0 %v1434
        %1638 = vmatprep.subr.mxu0 %v1439
        %1639 = vmatpush1.msra.mxu0 %v1438
        %1640 = vmatprep.subr.mxu0 %v1443
        %1641 = vmatpush1.msra.mxu0 %v1442
        %1642 = vmatprep.subr.mxu0 0.0
        %1643 = vmatpush1.msra.mxu0 0.0
        %1644 = vmatprep.subr.mxu0 0.0
        %1645 = vmatpush1.msra.mxu0 0.0
        %1646 = vmatprep.subr.mxu0 0.0
        %1647 = vmatpush1.msra.mxu0 0.0
        %1648 = vmatprep.subr.mxu0 0.0
        %1649 = vmatpush1.msra.mxu0 0.0
        %1650 = vmatprep.subr.mxu0 0.0
        %1651 = vmatpush1.msra.mxu0 0.0
        %1652 = vmatprep.subr.mxu0 0.0
        %1653 = vmatpush1.msra.mxu0 0.0
        %1654 = vmatprep.subr.mxu0 0.0
        %1655 = vmatpush1.msra.mxu0 0.0
        %1656 = vmatprep.subr.mxu0 0.0
        %1657 = vmatpush1.msra.mxu0 0.0
        %1658 = vmatprep.subr.mxu0 0.0
        %1659 = vmatpush1.msra.mxu0 0.0
        %1660 = vmatprep.subr.mxu0 0.0
        %1661 = vmatpush1.msra.mxu0 0.0
        %1662 = vmatprep.subr.mxu0 0.0
        %1663 = vmatpush1.msra.mxu0 0.0
        %1664 = vmatprep.subr.mxu0 0.0
        %1665 = vmatpush1.msra.mxu0 0.0
        %1666 = vmatprep.subr.mxu0 0.0
        %1667 = vmatpush1.msra.mxu0 0.0
        %1668 = vmatprep.subr.mxu0 0.0
        %1669 = vmatpush1.msra.mxu0 0.0
        %1670 = vmatprep.subr.mxu0 0.0
        %1671 = vmatpush1.msra.mxu0 0.0
        %1672 = vmatprep.subr.mxu0 0.0
        %1673 = vmatpush1.msra.mxu0 0.0
        %1674 = vmatprep.mubr.f32.mxu0 0.0
        %1675 = vmatmul.mubr.f32.gmra.mrb[0].mxu0 %v1125
        %v1676 = vpop.f32.mrb[0].mxu0
        %v1677 = vadd.f32 %v1606, %v1676
        %v1678 = vpop.f32.mrb[0].mxu0
        %v1679 = vadd.f32 %v1608, %v1678
        %1680 = vdwg.mxu0
        %1681 = vmatprep.subr.mxu0 %v1129
        %1682 = vmatpush1.msra.mxu0 %v1128
        %1683 = vmatprep.subr.mxu0 %v1133
        %1684 = vmatpush1.msra.mxu0 %v1132
        %1685 = vmatprep.subr.mxu0 %v1137
        %1686 = vmatpush1.msra.mxu0 %v1136
        %1687 = vmatprep.subr.mxu0 %v1141
        %1688 = vmatpush1.msra.mxu0 %v1140
        %1689 = vmatprep.subr.mxu0 %v1145
        %1690 = vmatpush1.msra.mxu0 %v1144
        %1691 = vmatprep.subr.mxu0 %v1149
        %1692 = vmatpush1.msra.mxu0 %v1148
        %1693 = vmatprep.subr.mxu0 %v1153
        %1694 = vmatpush1.msra.mxu0 %v1152
        %1695 = vmatprep.subr.mxu0 %v1157
        %1696 = vmatpush1.msra.mxu0 %v1156
        %1697 = vmatprep.subr.mxu0 %v1161
        %1698 = vmatpush1.msra.mxu0 %v1160
        %1699 = vmatprep.subr.mxu0 %v1165
        %1700 = vmatpush1.msra.mxu0 %v1164
        %1701 = vmatprep.subr.mxu0 %v1169
        %1702 = vmatpush1.msra.mxu0 %v1168
        %1703 = vmatprep.subr.mxu0 %v1173
        %1704 = vmatpush1.msra.mxu0 %v1172
        %1705 = vmatprep.subr.mxu0 %v1177
        %1706 = vmatpush1.msra.mxu0 %v1176
        %1707 = vmatprep.subr.mxu0 %v1181
        %1708 = vmatpush1.msra.mxu0 %v1180
        %1709 = vmatprep.subr.mxu0 %v1185
        %1710 = vmatpush1.msra.mxu0 %v1184
        %1711 = vmatprep.subr.mxu0 %v1189
        %1712 = vmatpush1.msra.mxu0 %v1188
        %1713 = vmatprep.subr.mxu0 %v1193
        %1714 = vmatpush1.msra.mxu0 %v1192
        %1715 = vmatprep.subr.mxu0 %v1197
        %1716 = vmatpush1.msra.mxu0 %v1196
        %1717 = vmatprep.subr.mxu0 %v1201
        %1718 = vmatpush1.msra.mxu0 %v1200
        %1719 = vmatprep.subr.mxu0 %v1205
        %1720 = vmatpush1.msra.mxu0 %v1204
        %1721 = vmatprep.subr.mxu0 %v1209
        %1722 = vmatpush1.msra.mxu0 %v1208
        %1723 = vmatprep.subr.mxu0 %v1213
        %1724 = vmatpush1.msra.mxu0 %v1212
        %1725 = vmatprep.subr.mxu0 %v1217
        %1726 = vmatpush1.msra.mxu0 %v1216
        %1727 = vmatprep.subr.mxu0 %v1221
        %1728 = vmatpush1.msra.mxu0 %v1220
        %1729 = vmatprep.subr.mxu0 %v1225
        %1730 = vmatpush1.msra.mxu0 %v1224
        %1731 = vmatprep.subr.mxu0 %v1229
        %1732 = vmatpush1.msra.mxu0 %v1228
        %1733 = vmatprep.subr.mxu0 %v1233
        %1734 = vmatpush1.msra.mxu0 %v1232
        %1735 = vmatprep.subr.mxu0 %v1237
        %1736 = vmatpush1.msra.mxu0 %v1236
        %1737 = vmatprep.subr.mxu0 %v1241
        %1738 = vmatpush1.msra.mxu0 %v1240
        %1739 = vmatprep.subr.mxu0 %v1245
        %1740 = vmatpush1.msra.mxu0 %v1244
        %1741 = vmatprep.subr.mxu0 %v1249
        %1742 = vmatpush1.msra.mxu0 %v1248
        %1743 = vmatprep.subr.mxu0 %v1253
        %1744 = vmatpush1.msra.mxu0 %v1252
        %1745 = vmatprep.mubr.f32.mxu0 %v1122
        %1746 = vmatmul.mubr.f32.gmra.mrb[0].mxu0 %v1121
        %v1747 = vpop.f32.mrb[0].mxu0
        %v1748 = vadd.f32 %v1459, %v1747
        %v1749 = vpop.f32.mrb[0].mxu0
        %v1750 = vadd.f32 %v1463, %v1749
        %1751 = vdwg.mxu0
        %1752 = vmatprep.subr.mxu0 %v1257
        %1753 = vmatpush1.msra.mxu0 %v1256
        %1754 = vmatprep.subr.mxu0 %v1261
        %1755 = vmatpush1.msra.mxu0 %v1260
        %1756 = vmatprep.subr.mxu0 %v1265
        %1757 = vmatpush1.msra.mxu0 %v1264
        %1758 = vmatprep.subr.mxu0 %v1269
        %1759 = vmatpush1.msra.mxu0 %v1268
        %1760 = vmatprep.subr.mxu0 %v1273
        %1761 = vmatpush1.msra.mxu0 %v1272
        %1762 = vmatprep.subr.mxu0 %v1277
        %1763 = vmatpush1.msra.mxu0 %v1276
        %1764 = vmatprep.subr.mxu0 %v1281
        %1765 = vmatpush1.msra.mxu0 %v1280
        %1766 = vmatprep.subr.mxu0 %v1285
        %1767 = vmatpush1.msra.mxu0 %v1284
        %1768 = vmatprep.subr.mxu0 %v1289
        %1769 = vmatpush1.msra.mxu0 %v1288
        %1770 = vmatprep.subr.mxu0 %v1293
        %1771 = vmatpush1.msra.mxu0 %v1292
        %1772 = vmatprep.subr.mxu0 %v1297
        %1773 = vmatpush1.msra.mxu0 %v1296
        %1774 = vmatprep.subr.mxu0 %v1301
        %1775 = vmatpush1.msra.mxu0 %v1300
        %1776 = vmatprep.subr.mxu0 %v1305
        %1777 = vmatpush1.msra.mxu0 %v1304
        %1778 = vmatprep.subr.mxu0 %v1309
        %1779 = vmatpush1.msra.mxu0 %v1308
        %1780 = vmatprep.subr.mxu0 %v1313
        %1781 = vmatpush1.msra.mxu0 %v1312
        %1782 = vmatprep.subr.mxu0 %v1317
        %1783 = vmatpush1.msra.mxu0 %v1316
        %1784 = vmatprep.subr.mxu0 %v1321
        %1785 = vmatpush1.msra.mxu0 %v1320
        %1786 = vmatprep.subr.mxu0 %v1325
        %1787 = vmatpush1.msra.mxu0 %v1324
        %1788 = vmatprep.subr.mxu0 %v1329
        %1789 = vmatpush1.msra.mxu0 %v1328
        %1790 = vmatprep.subr.mxu0 %v1333
        %1791 = vmatpush1.msra.mxu0 %v1332
        %1792 = vmatprep.subr.mxu0 %v1337
        %1793 = vmatpush1.msra.mxu0 %v1336
        %1794 = vmatprep.subr.mxu0 %v1341
        %1795 = vmatpush1.msra.mxu0 %v1340
        %1796 = vmatprep.subr.mxu0 %v1345
        %1797 = vmatpush1.msra.mxu0 %v1344
        %1798 = vmatprep.subr.mxu0 %v1349
        %1799 = vmatpush1.msra.mxu0 %v1348
        %1800 = vmatprep.subr.mxu0 %v1353
        %1801 = vmatpush1.msra.mxu0 %v1352
        %1802 = vmatprep.subr.mxu0 %v1357
        %1803 = vmatpush1.msra.mxu0 %v1356
        %1804 = vmatprep.subr.mxu0 %v1361
        %1805 = vmatpush1.msra.mxu0 %v1360
        %1806 = vmatprep.subr.mxu0 %v1365
        %1807 = vmatpush1.msra.mxu0 %v1364
        %1808 = vmatprep.subr.mxu0 %v1369
        %1809 = vmatpush1.msra.mxu0 %v1368
        %1810 = vmatprep.subr.mxu0 %v1373
        %1811 = vmatpush1.msra.mxu0 %v1372
        %1812 = vmatprep.subr.mxu0 %v1377
        %1813 = vmatpush1.msra.mxu0 %v1376
        %1814 = vmatprep.subr.mxu0 %v1381
        %1815 = vmatpush1.msra.mxu0 %v1380
        %1816 = vmatprep.mubr.f32.mxu0 %v1124
        %1817 = vmatmul.mubr.f32.gmra.mrb[0].mxu0 %v1123
        %v1818 = vpop.f32.mrb[0].mxu0
        %v1819 = vadd.f32 %v1748, %v1818
        %v1820 = vpop.f32.mrb[0].mxu0
        %v1821 = vadd.f32 %v1750, %v1820
        %1822 = vdwg.mxu0
        %1823 = vmatprep.subr.mxu0 %v1385
        %1824 = vmatpush1.msra.mxu0 %v1384
        %1825 = vmatprep.subr.mxu0 %v1389
        %1826 = vmatpush1.msra.mxu0 %v1388
        %1827 = vmatprep.subr.mxu0 %v1393
        %1828 = vmatpush1.msra.mxu0 %v1392
        %1829 = vmatprep.subr.mxu0 %v1397
        %1830 = vmatpush1.msra.mxu0 %v1396
        %1831 = vmatprep.subr.mxu0 %v1401
        %1832 = vmatpush1.msra.mxu0 %v1400
        %1833 = vmatprep.subr.mxu0 %v1405
        %1834 = vmatpush1.msra.mxu0 %v1404
        %1835 = vmatprep.subr.mxu0 %v1409
        %1836 = vmatpush1.msra.mxu0 %v1408
        %1837 = vmatprep.subr.mxu0 %v1413
        %1838 = vmatpush1.msra.mxu0 %v1412
        %1839 = vmatprep.subr.mxu0 %v1417
        %1840 = vmatpush1.msra.mxu0 %v1416
        %1841 = vmatprep.subr.mxu0 %v1421
        %1842 = vmatpush1.msra.mxu0 %v1420
        %1843 = vmatprep.subr.mxu0 %v1425
        %1844 = vmatpush1.msra.mxu0 %v1424
        %1845 = vmatprep.subr.mxu0 %v1429
        %1846 = vmatpush1.msra.mxu0 %v1428
        %1847 = vmatprep.subr.mxu0 %v1433
        %1848 = vmatpush1.msra.mxu0 %v1432
        %1849 = vmatprep.subr.mxu0 %v1437
        %1850 = vmatpush1.msra.mxu0 %v1436
        %1851 = vmatprep.subr.mxu0 %v1441
        %1852 = vmatpush1.msra.mxu0 %v1440
        %1853 = vmatprep.subr.mxu0 %v1445
        %1854 = vmatpush1.msra.mxu0 %v1444
        %1855 = vmatprep.subr.mxu0 0.0
        %1856 = vmatpush1.msra.mxu0 0.0
        %1857 = vmatprep.subr.mxu0 0.0
        %1858 = vmatpush1.msra.mxu0 0.0
        %1859 = vmatprep.subr.mxu0 0.0
        %1860 = vmatpush1.msra.mxu0 0.0
        %1861 = vmatprep.subr.mxu0 0.0
        %1862 = vmatpush1.msra.mxu0 0.0
        %1863 = vmatprep.subr.mxu0 0.0
        %1864 = vmatpush1.msra.mxu0 0.0
        %1865 = vmatprep.subr.mxu0 0.0
        %1866 = vmatpush1.msra.mxu0 0.0
        %1867 = vmatprep.subr.mxu0 0.0
        %1868 = vmatpush1.msra.mxu0 0.0
        %1869 = vmatprep.subr.mxu0 0.0
        %1870 = vmatpush1.msra.mxu0 0.0
        %1871 = vmatprep.subr.mxu0 0.0
        %1872 = vmatpush1.msra.mxu0 0.0
        %1873 = vmatprep.subr.mxu0 0.0
        %1874 = vmatpush1.msra.mxu0 0.0
        %1875 = vmatprep.subr.mxu0 0.0
        %1876 = vmatpush1.msra.mxu0 0.0
        %1877 = vmatprep.subr.mxu0 0.0
        %1878 = vmatpush1.msra.mxu0 0.0
        %1879 = vmatprep.subr.mxu0 0.0
        %1880 = vmatpush1.msra.mxu0 0.0
        %1881 = vmatprep.subr.mxu0 0.0
        %1882 = vmatpush1.msra.mxu0 0.0
        %1883 = vmatprep.subr.mxu0 0.0
        %1884 = vmatpush1.msra.mxu0 0.0
        %1885 = vmatprep.subr.mxu0 0.0
        %1886 = vmatpush1.msra.mxu0 0.0
        %1887 = vmatprep.mubr.f32.mxu0 0.0
        %1888 = vmatmul.mubr.f32.gmra.mrb[0].mxu0 %v1125
        %v1889 = vpop.f32.mrb[0].mxu0
        %v1890 = vadd.f32 %v1819, %v1889
        %v1891 = vpop.f32.mrb[0].mxu0
        %v1892 = vadd.f32 %v1821, %v1891
        %1893 = vdwg.mxu0
        %v1894 = vmax.f32 %v1677, 0.0
        %v1895 = vmax.f32 %v1679, 0.0
        %v1896 = vmax.f32 %v1890, 0.0
        %v1897 = vmax.f32 %v1892, 0.0
        %v1898 = vld [vmem:[#allocation11] sm:$0xff]
        %v1899 = vld [vmem:[#allocation11 + $0x8] sm:$0xff]
        %v1900 = vld [vmem:[#allocation11 + $0x10] sm:$0xff]
        %v1901 = vld [vmem:[#allocation11 + $0x18] sm:$0xff]
        %v1902 = vld [vmem:[#allocation11 + $0x20] sm:$0xff]
        %v1903 = vld [vmem:[#allocation11 + $0x28] sm:$0xff]
        %v1904 = vld [vmem:[#allocation11 + $0x30] sm:$0xff]
        %v1905 = vld [vmem:[#allocation11 + $0x38] sm:$0xff]
        %v1906 = vld [vmem:[#allocation11 + $0x40] sm:$0xff]
        %v1907 = vld [vmem:[#allocation11 + $0x48] sm:$0xff]
        %v1908 = vld [vmem:[#allocation11 + $0x50] sm:$0xff]
        %v1909 = vld [vmem:[#allocation11 + $0x58] sm:$0xff]
        %v1910 = vld [vmem:[#allocation11 + $0x60] sm:$0xff]
        %v1911 = vld [vmem:[#allocation11 + $0x68] sm:$0xff]
        %v1912 = vld [vmem:[#allocation11 + $0x70] sm:$0xff]
        %v1913 = vld [vmem:[#allocation11 + $0x78] sm:$0xff]
        %v1914 = vld [vmem:[#allocation11 + $0x80] sm:$0xff]
        %v1915 = vld [vmem:[#allocation11 + $0x88] sm:$0xff]
        %v1916 = vld [vmem:[#allocation11 + $0x90] sm:$0xff]
        %v1917 = vld [vmem:[#allocation11 + $0x98] sm:$0xff]
        %v1918 = vld [vmem:[#allocation11 + $0xa0] sm:$0xff]
        %v1919 = vld [vmem:[#allocation11 + $0xa8] sm:$0xff]
        %v1920 = vld [vmem:[#allocation11 + $0xb0] sm:$0xff]
        %v1921 = vld [vmem:[#allocation11 + $0xb8] sm:$0xff]
        %v1922 = vld [vmem:[#allocation11 + $0xc0] sm:$0xff]
        %v1923 = vld [vmem:[#allocation11 + $0xc8] sm:$0xff]
        %v1924 = vld [vmem:[#allocation11 + $0xd0] sm:$0xff]
        %v1925 = vld [vmem:[#allocation11 + $0xd8] sm:$0xff]
        %v1926 = vld [vmem:[#allocation11 + $0xe0] sm:$0xff]
        %v1927 = vld [vmem:[#allocation11 + $0xe8] sm:$0xff]
        %v1928 = vld [vmem:[#allocation11 + $0xf0] sm:$0xff]
        %v1929 = vld [vmem:[#allocation11 + $0xf8] sm:$0xff]
        %v1930 = vld [vmem:[#allocation11 + $0x100] sm:$0xff]
        %v1931 = vld [vmem:[#allocation11 + $0x108] sm:$0xff]
        %v1932 = vld [vmem:[#allocation11 + $0x110] sm:$0xff]
        %v1933 = vld [vmem:[#allocation11 + $0x118] sm:$0xff]
        %v1934 = vld [vmem:[#allocation11 + $0x120] sm:$0xff]
        %v1935 = vld [vmem:[#allocation11 + $0x128] sm:$0xff]
        %v1936 = vld [vmem:[#allocation11 + $0x130] sm:$0xff]
        %v1937 = vld [vmem:[#allocation11 + $0x138] sm:$0xff]
        %v1938 = vld [vmem:[#allocation11 + $0x140] sm:$0xff]
        %v1939 = vld [vmem:[#allocation11 + $0x148] sm:$0xff]
        %v1940 = vld [vmem:[#allocation11 + $0x150] sm:$0xff]
        %v1941 = vld [vmem:[#allocation11 + $0x158] sm:$0xff]
        %v1942 = vld [vmem:[#allocation11 + $0x160] sm:$0xff]
        %v1943 = vld [vmem:[#allocation11 + $0x168] sm:$0xff]
        %v1944 = vld [vmem:[#allocation11 + $0x170] sm:$0xff]
        %v1945 = vld [vmem:[#allocation11 + $0x178] sm:$0xff]
        %v1946 = vld [vmem:[#allocation11 + $0x180] sm:$0xff]
        %v1947 = vld [vmem:[#allocation11 + $0x188] sm:$0xff]
        %v1948 = vld [vmem:[#allocation11 + $0x190] sm:$0xff]
        %v1949 = vld [vmem:[#allocation11 + $0x198] sm:$0xff]
        %v1950 = vld [vmem:[#allocation11 + $0x1a0] sm:$0xff]
        %v1951 = vld [vmem:[#allocation11 + $0x1a8] sm:$0xff]
        %v1952 = vld [vmem:[#allocation11 + $0x1b0] sm:$0xff]
        %v1953 = vld [vmem:[#allocation11 + $0x1b8] sm:$0xff]
        %v1954 = vld [vmem:[#allocation11 + $0x1c0] sm:$0xff]
        %v1955 = vld [vmem:[#allocation11 + $0x1c8] sm:$0xff]
        %v1956 = vld [vmem:[#allocation11 + $0x1d0] sm:$0xff]
        %v1957 = vld [vmem:[#allocation11 + $0x1d8] sm:$0xff]
        %v1958 = vld [vmem:[#allocation11 + $0x1e0] sm:$0xff]
        %v1959 = vld [vmem:[#allocation11 + $0x1e8] sm:$0xff]
        %v1960 = vld [vmem:[#allocation11 + $0x1f0] sm:$0xff]
        %v1961 = vld [vmem:[#allocation11 + $0x1f8] sm:$0xff]
        %v1962 = vld [vmem:[#allocation13] sm:$0x1]
        %v1964 = vlaneseq
        %v1965 = vshrl.u32 %v1964, 7
        %v1966 = vsub.s32 0, %v1965
        %v1967 = vrot.slane %v1962, %v1966
        %1969 = vmatprep.subr.mxu0 0.0
        %1970 = vmatpush1.msra.mxu0 %v1898
        %1971 = vmatprep.subr.mxu0 0.0
        %1972 = vmatpush1.msra.mxu0 %v1899
        %1973 = vmatprep.subr.mxu0 0.0
        %1974 = vmatpush1.msra.mxu0 %v1900
        %1975 = vmatprep.subr.mxu0 0.0
        %1976 = vmatpush1.msra.mxu0 %v1901
        %1977 = vmatprep.subr.mxu0 0.0
        %1978 = vmatpush1.msra.mxu0 %v1902
        %1979 = vmatprep.subr.mxu0 0.0
        %1980 = vmatpush1.msra.mxu0 %v1903
        %1981 = vmatprep.subr.mxu0 0.0
        %1982 = vmatpush1.msra.mxu0 %v1904
        %1983 = vmatprep.subr.mxu0 0.0
        %1984 = vmatpush1.msra.mxu0 %v1905
        %1985 = vmatprep.subr.mxu0 0.0
        %1986 = vmatpush1.msra.mxu0 %v1906
        %1987 = vmatprep.subr.mxu0 0.0
        %1988 = vmatpush1.msra.mxu0 %v1907
        %1989 = vmatprep.subr.mxu0 0.0
        %1990 = vmatpush1.msra.mxu0 %v1908
        %1991 = vmatprep.subr.mxu0 0.0
        %1992 = vmatpush1.msra.mxu0 %v1909
        %1993 = vmatprep.subr.mxu0 0.0
        %1994 = vmatpush1.msra.mxu0 %v1910
        %1995 = vmatprep.subr.mxu0 0.0
        %1996 = vmatpush1.msra.mxu0 %v1911
        %1997 = vmatprep.subr.mxu0 0.0
        %1998 = vmatpush1.msra.mxu0 %v1912
        %1999 = vmatprep.subr.mxu0 0.0
        %2000 = vmatpush1.msra.mxu0 %v1913
        %2001 = vmatprep.subr.mxu0 0.0
        %2002 = vmatpush1.msra.mxu0 %v1914
        %2003 = vmatprep.subr.mxu0 0.0
        %2004 = vmatpush1.msra.mxu0 %v1915
        %2005 = vmatprep.subr.mxu0 0.0
        %2006 = vmatpush1.msra.mxu0 %v1916
        %2007 = vmatprep.subr.mxu0 0.0
        %2008 = vmatpush1.msra.mxu0 %v1917
        %2009 = vmatprep.subr.mxu0 0.0
        %2010 = vmatpush1.msra.mxu0 %v1918
        %2011 = vmatprep.subr.mxu0 0.0
        %2012 = vmatpush1.msra.mxu0 %v1919
        %2013 = vmatprep.subr.mxu0 0.0
        %2014 = vmatpush1.msra.mxu0 %v1920
        %2015 = vmatprep.subr.mxu0 0.0
        %2016 = vmatpush1.msra.mxu0 %v1921
        %2017 = vmatprep.subr.mxu0 0.0
        %2018 = vmatpush1.msra.mxu0 %v1922
        %2019 = vmatprep.subr.mxu0 0.0
        %2020 = vmatpush1.msra.mxu0 %v1923
        %2021 = vmatprep.subr.mxu0 0.0
        %2022 = vmatpush1.msra.mxu0 %v1924
        %2023 = vmatprep.subr.mxu0 0.0
        %2024 = vmatpush1.msra.mxu0 %v1925
        %2025 = vmatprep.subr.mxu0 0.0
        %2026 = vmatpush1.msra.mxu0 %v1926
        %2027 = vmatprep.subr.mxu0 0.0
        %2028 = vmatpush1.msra.mxu0 %v1927
        %2029 = vmatprep.subr.mxu0 0.0
        %2030 = vmatpush1.msra.mxu0 %v1928
        %2031 = vmatprep.subr.mxu0 0.0
        %2032 = vmatpush1.msra.mxu0 %v1929
        %2033 = vmatprep.mubr.f32.mxu0 %v1895
        %2034 = vmatmul.mubr.f32.gmra.mrb[0].mxu0 %v1894
        %v2035 = vpop.f32.mrb[0].mxu0
        %v2036 = vadd.f32 %v1967, %v2035
        %v2037 = vpop.f32.mrb[0].mxu0
        %2038 = vdwg.mxu0
        %2039 = vmatprep.subr.mxu0 0.0
        %2040 = vmatpush1.msra.mxu0 %v1930
        %2041 = vmatprep.subr.mxu0 0.0
        %2042 = vmatpush1.msra.mxu0 %v1931
        %2043 = vmatprep.subr.mxu0 0.0
        %2044 = vmatpush1.msra.mxu0 %v1932
        %2045 = vmatprep.subr.mxu0 0.0
        %2046 = vmatpush1.msra.mxu0 %v1933
        %2047 = vmatprep.subr.mxu0 0.0
        %2048 = vmatpush1.msra.mxu0 %v1934
        %2049 = vmatprep.subr.mxu0 0.0
        %2050 = vmatpush1.msra.mxu0 %v1935
        %2051 = vmatprep.subr.mxu0 0.0
        %2052 = vmatpush1.msra.mxu0 %v1936
        %2053 = vmatprep.subr.mxu0 0.0
        %2054 = vmatpush1.msra.mxu0 %v1937
        %2055 = vmatprep.subr.mxu0 0.0
        %2056 = vmatpush1.msra.mxu0 %v1938
        %2057 = vmatprep.subr.mxu0 0.0
        %2058 = vmatpush1.msra.mxu0 %v1939
        %2059 = vmatprep.subr.mxu0 0.0
        %2060 = vmatpush1.msra.mxu0 %v1940
        %2061 = vmatprep.subr.mxu0 0.0
        %2062 = vmatpush1.msra.mxu0 %v1941
        %2063 = vmatprep.subr.mxu0 0.0
        %2064 = vmatpush1.msra.mxu0 %v1942
        %2065 = vmatprep.subr.mxu0 0.0
        %2066 = vmatpush1.msra.mxu0 %v1943
        %2067 = vmatprep.subr.mxu0 0.0
        %2068 = vmatpush1.msra.mxu0 %v1944
        %2069 = vmatprep.subr.mxu0 0.0
        %2070 = vmatpush1.msra.mxu0 %v1945
        %2071 = vmatprep.subr.mxu0 0.0
        %2072 = vmatpush1.msra.mxu0 %v1946
        %2073 = vmatprep.subr.mxu0 0.0
        %2074 = vmatpush1.msra.mxu0 %v1947
        %2075 = vmatprep.subr.mxu0 0.0
        %2076 = vmatpush1.msra.mxu0 %v1948
        %2077 = vmatprep.subr.mxu0 0.0
        %2078 = vmatpush1.msra.mxu0 %v1949
        %2079 = vmatprep.subr.mxu0 0.0
        %2080 = vmatpush1.msra.mxu0 %v1950
        %2081 = vmatprep.subr.mxu0 0.0
        %2082 = vmatpush1.msra.mxu0 %v1951
        %2083 = vmatprep.subr.mxu0 0.0
        %2084 = vmatpush1.msra.mxu0 %v1952
        %2085 = vmatprep.subr.mxu0 0.0
        %2086 = vmatpush1.msra.mxu0 %v1953
        %2087 = vmatprep.subr.mxu0 0.0
        %2088 = vmatpush1.msra.mxu0 %v1954
        %2089 = vmatprep.subr.mxu0 0.0
        %2090 = vmatpush1.msra.mxu0 %v1955
        %2091 = vmatprep.subr.mxu0 0.0
        %2092 = vmatpush1.msra.mxu0 %v1956
        %2093 = vmatprep.subr.mxu0 0.0
        %2094 = vmatpush1.msra.mxu0 %v1957
        %2095 = vmatprep.subr.mxu0 0.0
        %2096 = vmatpush1.msra.mxu0 %v1958
        %2097 = vmatprep.subr.mxu0 0.0
        %2098 = vmatpush1.msra.mxu0 %v1959
        %2099 = vmatprep.subr.mxu0 0.0
        %2100 = vmatpush1.msra.mxu0 %v1960
        %2101 = vmatprep.subr.mxu0 0.0
        %2102 = vmatpush1.msra.mxu0 %v1961
        %2103 = vmatprep.mubr.f32.mxu0 %v1897
        %2104 = vmatmul.mubr.f32.gmra.mrb[0].mxu0 %v1896
        %v2105 = vpop.f32.mrb[0].mxu0
        %v2106 = vadd.f32 %v2036, %v2105
        %v2107 = vpop.f32.mrb[0].mxu0
        %2108 = vdwg.mxu0
        %v2109 = vmax.f32 %v2106, 0.0
        %v2110 = vld [vmem:[#allocation14] sm:$0xff]
        %v2111 = vld [vmem:[#allocation14 + $0x8] sm:$0xff]
        %v2112 = vld [vmem:[#allocation14 + $0x10] sm:$0xff]
        %v2113 = vld [vmem:[#allocation14 + $0x18] sm:$0xff]
        %v2114 = vld [vmem:[#allocation14 + $0x20] sm:$0xff]
        %v2115 = vld [vmem:[#allocation14 + $0x28] sm:$0xff]
        %v2116 = vld [vmem:[#allocation14 + $0x30] sm:$0xff]
        %v2117 = vld [vmem:[#allocation14 + $0x38] sm:$0xff]
        %v2118 = vld [vmem:[#allocation14 + $0x40] sm:$0xff]
        %v2119 = vld [vmem:[#allocation14 + $0x48] sm:$0xff]
        %v2120 = vld [vmem:[#allocation14 + $0x50] sm:$0xff]
        %v2121 = vld [vmem:[#allocation14 + $0x58] sm:$0xff]
        %v2122 = vld [vmem:[#allocation14 + $0x60] sm:$0xff]
        %v2123 = vld [vmem:[#allocation14 + $0x68] sm:$0xff]
        %v2124 = vld [vmem:[#allocation14 + $0x70] sm:$0xff]
        %v2125 = vld [vmem:[#allocation14 + $0x78] sm:$0xff]
        %v2126 = vld [vmem:[#allocation16] sm:$0x1]
        %v2128 = vlaneseq
        %v2129 = vshrl.u32 %v2128, 7
        %v2130 = vsub.s32 0, %v2129
        %v2131 = vrot.slane %v2126, %v2130
        %2133 = vmatprep.subr.mxu0 0.0
        %2134 = vmatpush1.msra.mxu0 %v2110
        %2135 = vmatprep.subr.mxu0 0.0
        %2136 = vmatpush1.msra.mxu0 %v2111
        %2137 = vmatprep.subr.mxu0 0.0
        %2138 = vmatpush1.msra.mxu0 %v2112
        %2139 = vmatprep.subr.mxu0 0.0
        %2140 = vmatpush1.msra.mxu0 %v2113
        %2141 = vmatprep.subr.mxu0 0.0
        %2142 = vmatpush1.msra.mxu0 %v2114
        %2143 = vmatprep.subr.mxu0 0.0
        %2144 = vmatpush1.msra.mxu0 %v2115
        %2145 = vmatprep.subr.mxu0 0.0
        %2146 = vmatpush1.msra.mxu0 %v2116
        %2147 = vmatprep.subr.mxu0 0.0
        %2148 = vmatpush1.msra.mxu0 %v2117
        %2149 = vmatprep.subr.mxu0 0.0
        %2150 = vmatpush1.msra.mxu0 %v2118
        %2151 = vmatprep.subr.mxu0 0.0
        %2152 = vmatpush1.msra.mxu0 %v2119
        %2153 = vmatprep.subr.mxu0 0.0
        %2154 = vmatpush1.msra.mxu0 %v2120
        %2155 = vmatprep.subr.mxu0 0.0
        %2156 = vmatpush1.msra.mxu0 %v2121
        %2157 = vmatprep.subr.mxu0 0.0
        %2158 = vmatpush1.msra.mxu0 %v2122
        %2159 = vmatprep.subr.mxu0 0.0
        %2160 = vmatpush1.msra.mxu0 %v2123
        %2161 = vmatprep.subr.mxu0 0.0
        %2162 = vmatpush1.msra.mxu0 %v2124
        %2163 = vmatprep.subr.mxu0 0.0
        %2164 = vmatpush1.msra.mxu0 %v2125
        %2165 = vmatprep.subr.mxu0 0.0
        %2166 = vmatpush1.msra.mxu0 0.0
        %2167 = vmatprep.subr.mxu0 0.0
        %2168 = vmatpush1.msra.mxu0 0.0
        %2169 = vmatprep.subr.mxu0 0.0
        %2170 = vmatpush1.msra.mxu0 0.0
        %2171 = vmatprep.subr.mxu0 0.0
        %2172 = vmatpush1.msra.mxu0 0.0
        %2173 = vmatprep.subr.mxu0 0.0
        %2174 = vmatpush1.msra.mxu0 0.0
        %2175 = vmatprep.subr.mxu0 0.0
        %2176 = vmatpush1.msra.mxu0 0.0
        %2177 = vmatprep.subr.mxu0 0.0
        %2178 = vmatpush1.msra.mxu0 0.0
        %2179 = vmatprep.subr.mxu0 0.0
        %2180 = vmatpush1.msra.mxu0 0.0
        %2181 = vmatprep.subr.mxu0 0.0
        %2182 = vmatpush1.msra.mxu0 0.0
        %2183 = vmatprep.subr.mxu0 0.0
        %2184 = vmatpush1.msra.mxu0 0.0
        %2185 = vmatprep.subr.mxu0 0.0
        %2186 = vmatpush1.msra.mxu0 0.0
        %2187 = vmatprep.subr.mxu0 0.0
        %2188 = vmatpush1.msra.mxu0 0.0
        %2189 = vmatprep.subr.mxu0 0.0
        %2190 = vmatpush1.msra.mxu0 0.0
        %2191 = vmatprep.subr.mxu0 0.0
        %2192 = vmatpush1.msra.mxu0 0.0
        %2193 = vmatprep.subr.mxu0 0.0
        %2194 = vmatpush1.msra.mxu0 0.0
        %2195 = vmatprep.subr.mxu0 0.0
        %2196 = vmatpush1.msra.mxu0 0.0
        %2197 = vmatprep.mubr.f32.mxu0 0.0
        %2198 = vmatmul.mubr.f32.gmra.mrb[0].mxu0 %v2109
        %v2199 = vpop.f32.mrb[0].mxu0
        %v2200 = vadd.f32 %v2131, %v2199
        %v2201 = vpop.f32.mrb[0].mxu0
        %2202 = vdwg.mxu0
        %v2203 = vmax.f32 %v2200, 0.0
        %2204 = vst [vmem:[%s456] sm:$0xff] %v2203
        %s2205 = sand.u32 %s232, 1
        %s2206 = scalar_lea.sflag [#allocation4], %s2205
        %s2207 = sand.u32 %s232, 1
        %s2208 = smul.addr %s2207, 8
        %s2209 = scalar_lea.vmem [#allocation17], %s2208
        // Predicated region
        $region93: #{tpu_custom_call.1} parent=55 // pred_check
          %p2210 = pneg %p242
        $region94: #{tpu_custom_call.1} parent=55 // pred_check_branch
          %2212 = sbr.rel (%p2210) target = $region96
        $region95: #{tpu_custom_call.1} parent=55 // pred_region
          %s2214 = ssub.s32 128, 128
          %2215 = vsyncadd %s2206, %s2214
          %s2216 = smul.addr %s30, 128
          %s2217 = scalar_lea.hbm %s9, %s2216
          %s2219 = sshll.u32 %s2209, 4
          %s2220 = int_to_ptr.vmem [resolvable:$true] %s2219
          %2222 = dma.vmem_to_hbm [thread:$0]  %s2220, 128, %s2217, %s2206
        $region96: #{tpu_custom_call.1} parent=55 // pred_fallthru
          _
      $region56: #{tpu_custom_call.1} parent=5 // pred_fallthru
        _
      %p2223 = scmp.le.s32.totalorder 2, %s25
      // Predicated region
      $region97: #{tpu_custom_call.1} parent=5 // pred_check
        %p2224 = pneg %p2223
      $region98: #{tpu_custom_call.1} parent=5 // pred_check_branch
        %2226 = sbr.rel (%p2224) target = $region100
      $region99: #{tpu_custom_call.1} parent=5 // pred_region
        %s2227 = ssub.s32 %s25, 2
        // Predicated region
        $region101: #{tpu_custom_call.1} parent=99 // pred_check
          %p2228 = pneg %p248
        $region102: #{tpu_custom_call.1} parent=99 // pred_check_branch
          %2230 = sbr.rel (%p2228) target = $region104
        $region103: #{tpu_custom_call.1} parent=99 // pred_region
          %s2231 = sand.u32 %s233, 1
          %s2232 = scalar_lea.sflag [#allocation4], %s2231
          %s2233 = sand.u32 %s233, 1
          %s2234 = smul.addr %s2233, 8
          %s2235 = scalar_lea.vmem [#allocation17], %s2234
          %2236 = dma.done %s2232, 128
        $region104: #{tpu_custom_call.1} parent=99 // pred_fallthru
          _
      $region100: #{tpu_custom_call.1} parent=5 // pred_fallthru
        _
    $region6: #{tpu_custom_call.1} parent=1 // loop_footer
      %s29 = sadd.s32 1, %s25
    $region7: #{tpu_custom_call.1} parent=1 // loop_footer_branch
      %24 = sbr.rel target = $region3
    $region8: #{tpu_custom_call.1} parent=1 // loop_exit
      _
    %2237 = vsyncpa [#allocation3], 1
    %s2238 = scalar_lea.sflag [#allocation3], 1
    %2239 = vsyncpa %s2238, 1
    %2240 = vsyncpa [#allocation6], 1
    %2241 = vsyncpa [#allocation9], 1
    %2242 = vsyncpa [#allocation12], 1
    %2243 = vsyncpa [#allocation15], 1
    %2244 = vsyncpa [#allocation4], 1
    %s2245 = scalar_lea.sflag [#allocation4], 1
    %2246 = vsyncpa %s2245, 1

</llo_original>
